<compile_context>
chip_gen: v5e
topology: v5e:2x2
jax: 0.10.0
libtpu: 0.0.40
codegen_flags: <defaults>
</compile_context>

<pallas_src>
import jax
import jax.numpy as jnp
from jax.experimental import pallas as pl
from jax.experimental.pallas import tpu as pltpu

IN_FEATURES = 64 * 8 * 8   # 4096
H1 = 256
H2 = 128
OUT = 10
OUT_PAD = 128              # lane-dense padded logits width (sliced back to 10 outside)


def _round_up(x, m):
    return (x + m - 1) // m * m


def _mlp_kernel(x_ref, w1_ref, b1_ref, w2_ref, b2_ref, w3_ref, b3_ref, o_ref):
    # x tile: (TM, 4096), caller dtype (f32 or bf16).  Weights: bf16, fed directly
    # to the MXU; all accumulation / bias / ReLU in f32.
    x = x_ref[...].astype(jnp.bfloat16)
    h1 = jnp.dot(x, w1_ref[...], preferred_element_type=jnp.float32) + b1_ref[...]
    h1 = jnp.maximum(h1, 0.0)
    h2 = jnp.dot(h1.astype(jnp.bfloat16), w2_ref[...],
                 preferred_element_type=jnp.float32) + b2_ref[...]
    h2 = jnp.maximum(h2, 0.0)
    y = jnp.dot(h2.astype(jnp.bfloat16), w3_ref[...],
                preferred_element_type=jnp.float32) + b3_ref[...]
    o_ref[...] = y.astype(o_ref.dtype)


def _pick_tm(batch, tm_cap):
    # 8-aligned, capped at tm_cap; aim for >= 2 grid steps so both v7x TCs get work.
    half = _round_up(max((batch + 1) // 2, 1), 8)
    return max(8, min(tm_cap, half))


def cifar_server_forward(x_nchw, params, *, tm=512):
    """x_nchw: (B, 64, 8, 8) float32 or bfloat16 smashed activations.

    params: dict of w1,b1,w2,b2,w3,b3 with w* bf16 stored as (in, out) and
    w3/b3 zero-padded to 128 output columns.
    """
    B = x_nchw.shape[0]
    # nn.Flatten(): row-major flatten of (C, H, W) -> (B, 4096).  Keep caller dtype
    # (pass bf16 from the producer to halve the dominant x HBM stream).
    x = x_nchw.reshape(B, IN_FEATURES)

    TM = _pick_tm(B, tm)
    B_eff = B
    if B < 8:  # only tiny batches get padded (negligible); large batches are un-padded
        B_eff = 8
        x = jnp.pad(x, ((0, B_eff - B), (0, 0)))

    grid = (pl.cdiv(B_eff, TM),)
    const = lambda i: (0, 0)  # weights/biases: same block every step -> VMEM-resident

    out_padded = pl.pallas_call(
        _mlp_kernel,
        out_shape=jax.ShapeDtypeStruct((B_eff, OUT_PAD), jnp.float32),
        grid_spec=pltpu.PrefetchScalarGridSpec(
            num_scalar_prefetch=0,
            grid=grid,
            in_specs=[
                pl.BlockSpec((TM, IN_FEATURES), lambda i: (i, 0)),   # x tile (pipelined)
                pl.BlockSpec((IN_FEATURES, H1), const),              # w1 (resident, bf16)
                pl.BlockSpec((1, H1), const),                        # b1 (f32)
                pl.BlockSpec((H1, H2), const),                       # w2
                pl.BlockSpec((1, H2), const),                        # b2
                pl.BlockSpec((H2, OUT_PAD), const),                  # w3 (padded, lane-dense)
                pl.BlockSpec((1, OUT_PAD), const),                   # b3 (padded)
            ],
            out_specs=pl.BlockSpec((TM, OUT_PAD), lambda i: (i, 0)),
        ),
        compiler_params=pltpu.CompilerParams(
            dimension_semantics=("parallel",),        # shard batch tiles across TCs
            vmem_limit_bytes=48 * 1024 * 1024,        # fits v7x's 64 MiB/TC with headroom
        ),
    )(
        x,
        params["w1"], params["b1"],
        params["w2"], params["b2"],
        params["w3"], params["b3"],
    )
    return out_padded[:B, :OUT]


def init_params(key):
    """Deterministic synthetic init (uniform like torch's default Linear init)."""
    ks = jax.random.split(key, 6)

    def lin(kw, kb, fan_in, fan_out):
        bound = 1.0 / (fan_in ** 0.5)
        # stored as (in, out) so the kernel does x @ W  (== torch's x @ W.T)
        w = jax.random.uniform(kw, (fan_in, fan_out), jnp.float32, -bound, bound)
        b = jax.random.uniform(kb, (1, fan_out), jnp.float32, -bound, bound)
        return w, b

    w1, b1 = lin(ks[0], ks[1], IN_FEATURES, H1)
    w2, b2 = lin(ks[2], ks[3], H1, H2)
    w3, b3 = lin(ks[4], ks[5], H2, OUT)

    # Pad the last layer to a lane-dense 128-wide output (zeros in cols 10..127).
    w3_pad = jnp.zeros((H2, OUT_PAD), jnp.float32).at[:, :OUT].set(w3)
    b3_pad = jnp.zeros((1, OUT_PAD), jnp.float32).at[:, :OUT].set(b3)

    # Weights in bf16 (MXU-native inputs + halved HBM bytes); biases stay f32.
    return {
        "w1": w1.astype(jnp.bfloat16), "b1": b1,
        "w2": w2.astype(jnp.bfloat16), "b2": b2,
        "w3": w3_pad.astype(jnp.bfloat16), "b3": b3_pad,
    }


def reference_forward(x_nchw, params):
    """Pure-JAX reference mirroring the kernel's bf16-input / f32-accumulate matmuls."""
    x = x_nchw.reshape(x_nchw.shape[0], IN_FEATURES).astype(jnp.bfloat16)
    h1 = jnp.dot(x, params["w1"], preferred_element_type=jnp.float32) + params["b1"]
    h1 = jnp.maximum(h1, 0.0)
    h2 = jnp.dot(h1.astype(jnp.bfloat16), params["w2"],
                 preferred_element_type=jnp.float32) + params["b2"]
    h2 = jnp.maximum(h2, 0.0)
    y = jnp.dot(h2.astype(jnp.bfloat16), params["w3"],
                preferred_element_type=jnp.float32) + params["b3"]
    return y[:, :OUT]


if __name__ == "__main__":
    key = jax.random.PRNGKey(0)
    k_params, k_x = jax.random.split(key)

    params = init_params(k_params)
    # Server-side input: smashed activations from the client, NCHW (B, 64, 8, 8)
    x = jax.random.normal(k_x, (2, 64, 8, 8), dtype=jnp.float32)

    out = cifar_server_forward(x, params)
    out = jax.block_until_ready(out)

    ref = reference_forward(x, params)
    assert out.shape == (2, OUT), out.shape
    assert jnp.allclose(out, ref, atol=2e-2, rtol=2e-2), "mismatch vs reference"

    print("KERNEL_OK")
</pallas_src>

<mosaic_0001>
module attributes {stable_mosaic.version = 11 : i64} {
  func.func @_mlp_kernel(%arg0: i32, %arg1: memref<8x4096xf32, #tpu.memory_space<vmem>>, %arg2: memref<4096x256xbf16, #tpu.memory_space<vmem>>, %arg3: memref<1x256xf32, #tpu.memory_space<vmem>>, %arg4: memref<256x128xbf16, #tpu.memory_space<vmem>>, %arg5: memref<1x128xf32, #tpu.memory_space<vmem>>, %arg6: memref<128x128xbf16, #tpu.memory_space<vmem>>, %arg7: memref<1x128xf32, #tpu.memory_space<vmem>>, %arg8: memref<8x128xf32, #tpu.memory_space<vmem>>) attributes {dimension_semantics = [#tpu.dimension_semantics<parallel>], iteration_bounds = array<i64: 1>, scalar_prefetch = 0 : i64, scratch_operands = 0 : i64, tpu.core_type = #tpu.core_type<tc>, window_params = [{transform_indices = @transform_0, window_bounds = array<i64: 8, 4096>}, {pipeline_mode = #tpu.pipeline_mode<synchronous>, transform_indices = @transform_1, window_bounds = array<i64: 4096, 256>}, {pipeline_mode = #tpu.pipeline_mode<synchronous>, transform_indices = @transform_2, window_bounds = array<i64: 1, 256>}, {pipeline_mode = #tpu.pipeline_mode<synchronous>, transform_indices = @transform_3, window_bounds = array<i64: 256, 128>}, {pipeline_mode = #tpu.pipeline_mode<synchronous>, transform_indices = @transform_4, window_bounds = array<i64: 1, 128>}, {pipeline_mode = #tpu.pipeline_mode<synchronous>, transform_indices = @transform_5, window_bounds = array<i64: 128, 128>}, {pipeline_mode = #tpu.pipeline_mode<synchronous>, transform_indices = @transform_6, window_bounds = array<i64: 1, 128>}, {transform_indices = @transform_7, window_bounds = array<i64: 8, 128>}]} {
    %c0 = arith.constant 0 : index
    %c0_0 = arith.constant 0 : index
    %0 = vector.load %arg1[%c0, %c0_0] : memref<8x4096xf32, #tpu.memory_space<vmem>>, vector<8x4096xf32>
    %1 = arith.truncf %0 : vector<8x4096xf32> to vector<8x4096xbf16>
    %c0_1 = arith.constant 0 : index
    %c0_2 = arith.constant 0 : index
    %2 = vector.load %arg2[%c0_1, %c0_2] : memref<4096x256xbf16, #tpu.memory_space<vmem>>, vector<4096x256xbf16>
    %cst = arith.constant dense<0.000000e+00> : vector<8x256xf32>
    %3 = tpu.matmul %1, %2, %cst {dimension_numbers = #tpu.dot_dimension_numbers<[1], [0], [0], [1], [0, 0, 1, 1], [], []>} : vector<8x4096xbf16>, vector<4096x256xbf16>, vector<8x256xf32> -> vector<8x256xf32>
    %c0_3 = arith.constant 0 : index
    %c0_4 = arith.constant 0 : index
    %4 = vector.load %arg3[%c0_3, %c0_4] : memref<1x256xf32, #tpu.memory_space<vmem>>, vector<1x256xf32>
    %5 = vector.broadcast %4 : vector<1x256xf32> to vector<8x256xf32>
    %6 = arith.addf %3, %5 : vector<8x256xf32>
    %cst_5 = arith.constant 0.000000e+00 : f32
    %7 = vector.broadcast %cst_5 : f32 to vector<8x256xf32>
    %8 = arith.maximumf %6, %7 : vector<8x256xf32>
    %9 = arith.truncf %8 : vector<8x256xf32> to vector<8x256xbf16>
    %c0_6 = arith.constant 0 : index
    %c0_7 = arith.constant 0 : index
    %10 = vector.load %arg4[%c0_6, %c0_7] : memref<256x128xbf16, #tpu.memory_space<vmem>>, vector<256x128xbf16>
    %cst_8 = arith.constant dense<0.000000e+00> : vector<8x128xf32>
    %11 = tpu.matmul %9, %10, %cst_8 {dimension_numbers = #tpu.dot_dimension_numbers<[1], [0], [0], [1], [0, 0, 1, 1], [], []>} : vector<8x256xbf16>, vector<256x128xbf16>, vector<8x128xf32> -> vector<8x128xf32>
    %c0_9 = arith.constant 0 : index
    %c0_10 = arith.constant 0 : index
    %12 = vector.load %arg5[%c0_9, %c0_10] : memref<1x128xf32, #tpu.memory_space<vmem>>, vector<1x128xf32>
    %13 = vector.broadcast %12 : vector<1x128xf32> to vector<8x128xf32>
    %14 = arith.addf %11, %13 : vector<8x128xf32>
    %cst_11 = arith.constant 0.000000e+00 : f32
    %15 = vector.broadcast %cst_11 : f32 to vector<8x128xf32>
    %16 = arith.maximumf %14, %15 : vector<8x128xf32>
    %17 = arith.truncf %16 : vector<8x128xf32> to vector<8x128xbf16>
    %c0_12 = arith.constant 0 : index
    %c0_13 = arith.constant 0 : index
    %18 = vector.load %arg6[%c0_12, %c0_13] : memref<128x128xbf16, #tpu.memory_space<vmem>>, vector<128x128xbf16>
    %cst_14 = arith.constant dense<0.000000e+00> : vector<8x128xf32>
    %19 = tpu.matmul %17, %18, %cst_14 {dimension_numbers = #tpu.dot_dimension_numbers<[1], [0], [0], [1], [0, 0, 1, 1], [], []>} : vector<8x128xbf16>, vector<128x128xbf16>, vector<8x128xf32> -> vector<8x128xf32>
    %c0_15 = arith.constant 0 : index
    %c0_16 = arith.constant 0 : index
    %20 = vector.load %arg7[%c0_15, %c0_16] : memref<1x128xf32, #tpu.memory_space<vmem>>, vector<1x128xf32>
    %21 = vector.broadcast %20 : vector<1x128xf32> to vector<8x128xf32>
    %22 = arith.addf %19, %21 : vector<8x128xf32>
    %c0_17 = arith.constant 0 : index
    %c0_18 = arith.constant 0 : index
    %23 = vector.load %arg8[%c0_17, %c0_18] : memref<8x128xf32, #tpu.memory_space<vmem>>, vector<8x128xf32>
    tpu.vector_store %arg8[%c0_17, %c0_18], %22 {strides = array<i32>} : memref<8x128xf32, #tpu.memory_space<vmem>>, vector<8x128xf32>,
    return
  }
  func.func @transform_0(%arg0: i32) -> (i32, i32) {
    %c0_i32 = arith.constant 0 : i32
    %c0_i32_0 = arith.constant 0 : i32
    return %arg0, %c0_i32 : i32, i32
  }
  func.func @transform_1(%arg0: i32) -> (i32, i32) {
    %c0_i32 = arith.constant 0 : i32
    %c0_i32_0 = arith.constant 0 : i32
    %c0_i32_1 = arith.constant 0 : i32
    return %c0_i32, %c0_i32_0 : i32, i32
  }
  func.func @transform_2(%arg0: i32) -> (i32, i32) {
    %c0_i32 = arith.constant 0 : i32
    %c0_i32_0 = arith.constant 0 : i32
    %c0_i32_1 = arith.constant 0 : i32
    return %c0_i32, %c0_i32_0 : i32, i32
  }
  func.func @transform_3(%arg0: i32) -> (i32, i32) {
    %c0_i32 = arith.constant 0 : i32
    %c0_i32_0 = arith.constant 0 : i32
    %c0_i32_1 = arith.constant 0 : i32
    return %c0_i32, %c0_i32_0 : i32, i32
  }
  func.func @transform_4(%arg0: i32) -> (i32, i32) {
    %c0_i32 = arith.constant 0 : i32
    %c0_i32_0 = arith.constant 0 : i32
    %c0_i32_1 = arith.constant 0 : i32
    return %c0_i32, %c0_i32_0 : i32, i32
  }
  func.func @transform_5(%arg0: i32) -> (i32, i32) {
    %c0_i32 = arith.constant 0 : i32
    %c0_i32_0 = arith.constant 0 : i32
    %c0_i32_1 = arith.constant 0 : i32
    return %c0_i32, %c0_i32_0 : i32, i32
  }
  func.func @transform_6(%arg0: i32) -> (i32, i32) {
    %c0_i32 = arith.constant 0 : i32
    %c0_i32_0 = arith.constant 0 : i32
    %c0_i32_1 = arith.constant 0 : i32
    return %c0_i32, %c0_i32_0 : i32, i32
  }
  func.func @transform_7(%arg0: i32) -> (i32, i32) {
    %c0_i32 = arith.constant 0 : i32
    %c0_i32_0 = arith.constant 0 : i32
    return %arg0, %c0_i32 : i32, i32
  }
}

</mosaic_0001>

<llo_original>
// kernel: tpu_custom_call.1
$region0: #{tpu_custom_call.1}
  #allocation0 [shape = 'u32[]', space=smem, size = 0x4, offset = 0x4, fixed_abs, tag = 'smem constant byte address 0x4 - core index']
  #allocation1 [shape = 'u32[72,128]{1,0:T(1,128)}', space=vmem, size = 0x9000, scoped, tag = 'internal scratch']
  %s0 = inlined_call_operand.hbm [shape: f32[8,4096], index: 0, kind: input, shape index: {}]
  %s1 = inlined_call_operand.hbm [shape: bf16[4096,256], index: 1, kind: input, shape index: {}]
  %s2 = inlined_call_operand.hbm [shape: f32[1,256], index: 2, kind: input, shape index: {}]
  %s3 = inlined_call_operand.hbm [shape: bf16[256,128], index: 3, kind: input, shape index: {}]
  %s4 = inlined_call_operand.hbm [shape: f32[1,128], index: 4, kind: input, shape index: {}]
  %s5 = inlined_call_operand.hbm [shape: bf16[128,128], index: 5, kind: input, shape index: {}]
  %s6 = inlined_call_operand.hbm [shape: f32[1,128], index: 6, kind: input, shape index: {}]
  %s7 = inlined_call_operand.hbm [shape: f32[8,128], index: 7, kind: output, shape index: {}]
  %s8 = sld [smem:[#allocation0]]
  $region66: #{tpu_custom_call.1} parent=0
    _
  %s10 = ssub.s32 1, %s8
  %s11 = scalar_select 0, %s10, %s8
  $region1: #{tpu_custom_call.1} parent=0
    #allocation2 [shape = 'u8[131072]{0}', space=vmem, size = 0x20000, scoped, tag = 'input window, operand 0, single buffered']
    #allocation3 [shape = 's32[1]{0}', space=sflag, size = 0x4, scoped, tag = 'scoped memory for tpu_custom_call.1']
    #allocation4 [shape = 's32[1]{0}', space=sflag, size = 0x4, scoped, tag = 'scoped memory for tpu_custom_call.1']
    #allocation5 [shape = 'u8[2097152]{0}', space=vmem, size = 0x200000, scoped, tag = 'input window, operand 1, single buffered']
    #allocation6 [shape = 's32[1]{0}', space=sflag, size = 0x4, scoped, tag = 'scoped memory for tpu_custom_call.1']
    #allocation7 [shape = 'u8[1024]{0}', space=vmem, size = 0x400, scoped, tag = 'input window, operand 2, single buffered']
    #allocation8 [shape = 'u8[65536]{0}', space=vmem, size = 0x10000, scoped, tag = 'input window, operand 3, single buffered']
    #allocation9 [shape = 's32[1]{0}', space=sflag, size = 0x4, scoped, tag = 'scoped memory for tpu_custom_call.1']
    #allocation10 [shape = 'u8[512]{0}', space=vmem, size = 0x400, scoped, tag = 'input window, operand 4, single buffered']
    #allocation11 [shape = 'u8[32768]{0}', space=vmem, size = 0x8000, scoped, tag = 'input window, operand 5, single buffered']
    #allocation12 [shape = 's32[1]{0}', space=sflag, size = 0x4, scoped, tag = 'scoped memory for tpu_custom_call.1']
    #allocation13 [shape = 'u8[512]{0}', space=vmem, size = 0x400, scoped, tag = 'input window, operand 6, single buffered']
    #allocation14 [shape = 'u8[4096]{0}', space=vmem, size = 0x1000, scoped, tag = 'output window, operand 0, single buffered']
    %12 = vsyncpa [#allocation3], 0
    %13 = vsyncpa [#allocation6], 0
    %14 = vsyncpa [#allocation9], 0
    %15 = vsyncpa [#allocation12], 0
    %16 = vsyncpa [#allocation4], 0
    // Predicated region
    $region2: #{tpu_custom_call.1} parent=1 // pred_check
      _
    $region3: #{tpu_custom_call.1} parent=1 // pred_check_branch
      %18 = sbr.rel (0) target = $region5
    $region4: #{tpu_custom_call.1} parent=1 // pred_region
      %20 = vsyncadd [#allocation3], 0
      %s22 = sshll.u32 %s0, 4
      %s23 = int_to_ptr.hbm [resolvable:$true] %s22
      %s24 = sshll.u32 [#allocation2], 4
      %s25 = int_to_ptr.vmem [resolvable:$true] %s24
      %27 = dma.hbm_to_vmem [thread:$0]  %s23, 4096, %s25, [#allocation3]
    $region5: #{tpu_custom_call.1} parent=1 // pred_fallthru
      _
    // Predicated region
    $region6: #{tpu_custom_call.1} parent=1 // pred_check
      _
    $region7: #{tpu_custom_call.1} parent=1 // pred_check_branch
      %29 = sbr.rel (0) target = $region9
    $region8: #{tpu_custom_call.1} parent=1 // pred_region
      %31 = vsyncadd [#allocation6], 0
      %s32 = sshll.u32 %s1, 4
      %s33 = int_to_ptr.hbm [resolvable:$true] %s32
      %s34 = sshll.u32 [#allocation5], 4
      %s35 = int_to_ptr.vmem [resolvable:$true] %s34
      %40 = dma.hbm_to_vmem [thread:$0]  %s33, 65536, %s35, [#allocation6], 128, 128, 8
    $region9: #{tpu_custom_call.1} parent=1 // pred_fallthru
      _
    // Predicated region
    $region10: #{tpu_custom_call.1} parent=1 // pred_check
      _
    $region11: #{tpu_custom_call.1} parent=1 // pred_check_branch
      %42 = sbr.rel (0) target = $region13
    $region12: #{tpu_custom_call.1} parent=1 // pred_region
      %44 = vsyncadd [#allocation6], 0
      %s46 = sshll.u32 %s2, 4
      %s47 = int_to_ptr.hbm [resolvable:$true] %s46
      %s48 = sshll.u32 [#allocation7], 4
      %s49 = int_to_ptr.vmem [resolvable:$true] %s48
      %51 = dma.hbm_to_vmem [thread:$0]  %s47, 32, %s49, [#allocation6]
    $region13: #{tpu_custom_call.1} parent=1 // pred_fallthru
      _
    // Predicated region
    $region14: #{tpu_custom_call.1} parent=1 // pred_check
      _
    $region15: #{tpu_custom_call.1} parent=1 // pred_check_branch
      %53 = sbr.rel (0) target = $region17
    $region16: #{tpu_custom_call.1} parent=1 // pred_region
      %55 = vsyncadd [#allocation9], 0
      %s56 = sshll.u32 %s3, 4
      %s57 = int_to_ptr.hbm [resolvable:$true] %s56
      %s58 = sshll.u32 [#allocation8], 4
      %s59 = int_to_ptr.vmem [resolvable:$true] %s58
      %64 = dma.hbm_to_vmem [thread:$0]  %s57, 2048, %s59, [#allocation9], 64, 64, 4
    $region17: #{tpu_custom_call.1} parent=1 // pred_fallthru
      _
    // Predicated region
    $region18: #{tpu_custom_call.1} parent=1 // pred_check
      _
    $region19: #{tpu_custom_call.1} parent=1 // pred_check_branch
      %66 = sbr.rel (0) target = $region21
    $region20: #{tpu_custom_call.1} parent=1 // pred_region
      %68 = vsyncadd [#allocation9], 0
      %s70 = sshll.u32 %s4, 4
      %s71 = int_to_ptr.hbm [resolvable:$true] %s70
      %s72 = sshll.u32 [#allocation10], 4
      %s73 = int_to_ptr.vmem [resolvable:$true] %s72
      %75 = dma.hbm_to_vmem [thread:$0]  %s71, 16, %s73, [#allocation9]
    $region21: #{tpu_custom_call.1} parent=1 // pred_fallthru
      _
    // Predicated region
    $region22: #{tpu_custom_call.1} parent=1 // pred_check
      _
    $region23: #{tpu_custom_call.1} parent=1 // pred_check_branch
      %77 = sbr.rel (0) target = $region25
    $region24: #{tpu_custom_call.1} parent=1 // pred_region
      %79 = vsyncadd [#allocation12], 0
      %s80 = sshll.u32 %s5, 4
      %s81 = int_to_ptr.hbm [resolvable:$true] %s80
      %s82 = sshll.u32 [#allocation11], 4
      %s83 = int_to_ptr.vmem [resolvable:$true] %s82
      %88 = dma.hbm_to_vmem [thread:$0]  %s81, 1024, %s83, [#allocation12], 64, 64, 4
    $region25: #{tpu_custom_call.1} parent=1 // pred_fallthru
      _
    // Predicated region
    $region26: #{tpu_custom_call.1} parent=1 // pred_check
      _
    $region27: #{tpu_custom_call.1} parent=1 // pred_check_branch
      %90 = sbr.rel (0) target = $region29
    $region28: #{tpu_custom_call.1} parent=1 // pred_region
      %92 = vsyncadd [#allocation12], 0
      %s94 = sshll.u32 %s6, 4
      %s95 = int_to_ptr.hbm [resolvable:$true] %s94
      %s96 = sshll.u32 [#allocation13], 4
      %s97 = int_to_ptr.vmem [resolvable:$true] %s96
      %99 = dma.hbm_to_vmem [thread:$0]  %s95, 16, %s97, [#allocation12]
    $region29: #{tpu_custom_call.1} parent=1 // pred_fallthru
      _
    // Predicated region
    $region30: #{tpu_custom_call.1} parent=1 // pred_check
      _
    $region31: #{tpu_custom_call.1} parent=1 // pred_check_branch
      %101 = sbr.rel (0) target = $region33
    $region32: #{tpu_custom_call.1} parent=1 // pred_region
      %103 = dma.done [#allocation3], 4096
    $region33: #{tpu_custom_call.1} parent=1 // pred_fallthru
      _
    // Predicated region
    $region34: #{tpu_custom_call.1} parent=1 // pred_check
      _
    $region35: #{tpu_custom_call.1} parent=1 // pred_check_branch
      %105 = sbr.rel (0) target = $region37
    $region36: #{tpu_custom_call.1} parent=1 // pred_region
      %107 = dma.done [#allocation6], 65536
    $region37: #{tpu_custom_call.1} parent=1 // pred_fallthru
      _
    // Predicated region
    $region38: #{tpu_custom_call.1} parent=1 // pred_check
      _
    $region39: #{tpu_custom_call.1} parent=1 // pred_check_branch
      %109 = sbr.rel (0) target = $region41
    $region40: #{tpu_custom_call.1} parent=1 // pred_region
      %111 = dma.done [#allocation6], 32
    $region41: #{tpu_custom_call.1} parent=1 // pred_fallthru
      _
    // Predicated region
    $region42: #{tpu_custom_call.1} parent=1 // pred_check
      _
    $region43: #{tpu_custom_call.1} parent=1 // pred_check_branch
      %113 = sbr.rel (0) target = $region45
    $region44: #{tpu_custom_call.1} parent=1 // pred_region
      %115 = dma.done [#allocation9], 2048
    $region45: #{tpu_custom_call.1} parent=1 // pred_fallthru
      _
    // Predicated region
    $region46: #{tpu_custom_call.1} parent=1 // pred_check
      _
    $region47: #{tpu_custom_call.1} parent=1 // pred_check_branch
      %117 = sbr.rel (0) target = $region49
    $region48: #{tpu_custom_call.1} parent=1 // pred_region
      %119 = dma.done [#allocation9], 16
    $region49: #{tpu_custom_call.1} parent=1 // pred_fallthru
      _
    // Predicated region
    $region50: #{tpu_custom_call.1} parent=1 // pred_check
      _
    $region51: #{tpu_custom_call.1} parent=1 // pred_check_branch
      %121 = sbr.rel (0) target = $region53
    $region52: #{tpu_custom_call.1} parent=1 // pred_region
      %123 = dma.done [#allocation12], 1024
    $region53: #{tpu_custom_call.1} parent=1 // pred_fallthru
      _
    // Predicated region
    $region54: #{tpu_custom_call.1} parent=1 // pred_check
      _
    $region55: #{tpu_custom_call.1} parent=1 // pred_check_branch
      %125 = sbr.rel (0) target = $region57
    $region56: #{tpu_custom_call.1} parent=1 // pred_region
      %127 = dma.done [#allocation12], 16
    $region57: #{tpu_custom_call.1} parent=1 // pred_fallthru
      _
    %v128 = vld [vmem:[#allocation2] sm:$0xff]
    %v129 = vld [vmem:[#allocation2 + $0x8] sm:$0xff]
    %v130 = vld [vmem:[#allocation2 + $0x10] sm:$0xff]
    %v131 = vld [vmem:[#allocation2 + $0x18] sm:$0xff]
    %v132 = vld [vmem:[#allocation2 + $0x20] sm:$0xff]
    %v133 = vld [vmem:[#allocation2 + $0x28] sm:$0xff]
    %v134 = vld [vmem:[#allocation2 + $0x30] sm:$0xff]
    %v135 = vld [vmem:[#allocation2 + $0x38] sm:$0xff]
    %v136 = vld [vmem:[#allocation2 + $0x40] sm:$0xff]
    %v137 = vld [vmem:[#allocation2 + $0x48] sm:$0xff]
    %v138 = vld [vmem:[#allocation2 + $0x50] sm:$0xff]
    %v139 = vld [vmem:[#allocation2 + $0x58] sm:$0xff]
    %v140 = vld [vmem:[#allocation2 + $0x60] sm:$0xff]
    %v141 = vld [vmem:[#allocation2 + $0x68] sm:$0xff]
    %v142 = vld [vmem:[#allocation2 + $0x70] sm:$0xff]
    %v143 = vld [vmem:[#allocation2 + $0x78] sm:$0xff]
    %v144 = vld [vmem:[#allocation2 + $0x80] sm:$0xff]
    %v145 = vld [vmem:[#allocation2 + $0x88] sm:$0xff]
    %v146 = vld [vmem:[#allocation2 + $0x90] sm:$0xff]
    %v147 = vld [vmem:[#allocation2 + $0x98] sm:$0xff]
    %v148 = vld [vmem:[#allocation2 + $0xa0] sm:$0xff]
    %v149 = vld [vmem:[#allocation2 + $0xa8] sm:$0xff]
    %v150 = vld [vmem:[#allocation2 + $0xb0] sm:$0xff]
    %v151 = vld [vmem:[#allocation2 + $0xb8] sm:$0xff]
    %v152 = vld [vmem:[#allocation2 + $0xc0] sm:$0xff]
    %v153 = vld [vmem:[#allocation2 + $0xc8] sm:$0xff]
    %v154 = vld [vmem:[#allocation2 + $0xd0] sm:$0xff]
    %v155 = vld [vmem:[#allocation2 + $0xd8] sm:$0xff]
    %v156 = vld [vmem:[#allocation2 + $0xe0] sm:$0xff]
    %v157 = vld [vmem:[#allocation2 + $0xe8] sm:$0xff]
    %v158 = vld [vmem:[#allocation2 + $0xf0] sm:$0xff]
    %v159 = vld [vmem:[#allocation2 + $0xf8] sm:$0xff]
    %v160 = vpack.c.bf16 %v128, %v128
    %v161 = vpack.c.bf16 %v129, %v129
    %v162 = vpack.c.bf16 %v130, %v130
    %v163 = vpack.c.bf16 %v131, %v131
    %v164 = vpack.c.bf16 %v132, %v132
    %v165 = vpack.c.bf16 %v133, %v133
    %v166 = vpack.c.bf16 %v134, %v134
    %v167 = vpack.c.bf16 %v135, %v135
    %v168 = vpack.c.bf16 %v136, %v136
    %v169 = vpack.c.bf16 %v137, %v137
    %v170 = vpack.c.bf16 %v138, %v138
    %v171 = vpack.c.bf16 %v139, %v139
    %v172 = vpack.c.bf16 %v140, %v140
    %v173 = vpack.c.bf16 %v141, %v141
    %v174 = vpack.c.bf16 %v142, %v142
    %v175 = vpack.c.bf16 %v143, %v143
    %v176 = vpack.c.bf16 %v144, %v144
    %v177 = vpack.c.bf16 %v145, %v145
    %v178 = vpack.c.bf16 %v146, %v146
    %v179 = vpack.c.bf16 %v147, %v147
    %v180 = vpack.c.bf16 %v148, %v148
    %v181 = vpack.c.bf16 %v149, %v149
    %v182 = vpack.c.bf16 %v150, %v150
    %v183 = vpack.c.bf16 %v151, %v151
    %v184 = vpack.c.bf16 %v152, %v152
    %v185 = vpack.c.bf16 %v153, %v153
    %v186 = vpack.c.bf16 %v154, %v154
    %v187 = vpack.c.bf16 %v155, %v155
    %v188 = vpack.c.bf16 %v156, %v156
    %v189 = vpack.c.bf16 %v157, %v157
    %v190 = vpack.c.bf16 %v158, %v158
    %v191 = vpack.c.bf16 %v159, %v159
    %v192 = vld [vmem:[#allocation5] sm:$0xff]
    %v193 = vld [vmem:[#allocation5 + $0x8] sm:$0xff]
    %v194 = vld [vmem:[#allocation5 + $0x10] sm:$0xff]
    %v195 = vld [vmem:[#allocation5 + $0x18] sm:$0xff]
    %v196 = vld [vmem:[#allocation5 + $0x20] sm:$0xff]
    %v197 = vld [vmem:[#allocation5 + $0x28] sm:$0xff]
    %v198 = vld [vmem:[#allocation5 + $0x30] sm:$0xff]
    %v199 = vld [vmem:[#allocation5 + $0x38] sm:$0xff]
    %v200 = vld [vmem:[#allocation5 + $0x40] sm:$0xff]
    %v201 = vld [vmem:[#allocation5 + $0x48] sm:$0xff]
    %v202 = vld [vmem:[#allocation5 + $0x50] sm:$0xff]
    %v203 = vld [vmem:[#allocation5 + $0x58] sm:$0xff]
    %v204 = vld [vmem:[#allocation5 + $0x60] sm:$0xff]
    %v205 = vld [vmem:[#allocation5 + $0x68] sm:$0xff]
    %v206 = vld [vmem:[#allocation5 + $0x70] sm:$0xff]
    %v207 = vld [vmem:[#allocation5 + $0x78] sm:$0xff]
    %v208 = vld [vmem:[#allocation5 + $0x80] sm:$0xff]
    %v209 = vld [vmem:[#allocation5 + $0x88] sm:$0xff]
    %v210 = vld [vmem:[#allocation5 + $0x90] sm:$0xff]
    %v211 = vld [vmem:[#allocation5 + $0x98] sm:$0xff]
    %v212 = vld [vmem:[#allocation5 + $0xa0] sm:$0xff]
    %v213 = vld [vmem:[#allocation5 + $0xa8] sm:$0xff]
    %v214 = vld [vmem:[#allocation5 + $0xb0] sm:$0xff]
    %v215 = vld [vmem:[#allocation5 + $0xb8] sm:$0xff]
    %v216 = vld [vmem:[#allocation5 + $0xc0] sm:$0xff]
    %v217 = vld [vmem:[#allocation5 + $0xc8] sm:$0xff]
    %v218 = vld [vmem:[#allocation5 + $0xd0] sm:$0xff]
    %v219 = vld [vmem:[#allocation5 + $0xd8] sm:$0xff]
    %v220 = vld [vmem:[#allocation5 + $0xe0] sm:$0xff]
    %v221 = vld [vmem:[#allocation5 + $0xe8] sm:$0xff]
    %v222 = vld [vmem:[#allocation5 + $0xf0] sm:$0xff]
    %v223 = vld [vmem:[#allocation5 + $0xf8] sm:$0xff]
    %v224 = vld [vmem:[#allocation5 + $0x100] sm:$0xff]
    %v225 = vld [vmem:[#allocation5 + $0x108] sm:$0xff]
    %v226 = vld [vmem:[#allocation5 + $0x110] sm:$0xff]
    %v227 = vld [vmem:[#allocation5 + $0x118] sm:$0xff]
    %v228 = vld [vmem:[#allocation5 + $0x120] sm:$0xff]
    %v229 = vld [vmem:[#allocation5 + $0x128] sm:$0xff]
    %v230 = vld [vmem:[#allocation5 + $0x130] sm:$0xff]
    %v231 = vld [vmem:[#allocation5 + $0x138] sm:$0xff]
    %v232 = vld [vmem:[#allocation5 + $0x140] sm:$0xff]
    %v233 = vld [vmem:[#allocation5 + $0x148] sm:$0xff]
    %v234 = vld [vmem:[#allocation5 + $0x150] sm:$0xff]
    %v235 = vld [vmem:[#allocation5 + $0x158] sm:$0xff]
    %v236 = vld [vmem:[#allocation5 + $0x160] sm:$0xff]
    %v237 = vld [vmem:[#allocation5 + $0x168] sm:$0xff]
    %v238 = vld [vmem:[#allocation5 + $0x170] sm:$0xff]
    %v239 = vld [vmem:[#allocation5 + $0x178] sm:$0xff]
    %v240 = vld [vmem:[#allocation5 + $0x180] sm:$0xff]
    %v241 = vld [vmem:[#allocation5 + $0x188] sm:$0xff]
    %v242 = vld [vmem:[#allocation5 + $0x190] sm:$0xff]
    %v243 = vld [vmem:[#allocation5 + $0x198] sm:$0xff]
    %v244 = vld [vmem:[#allocation5 + $0x1a0] sm:$0xff]
    %v245 = vld [vmem:[#allocation5 + $0x1a8] sm:$0xff]
    %v246 = vld [vmem:[#allocation5 + $0x1b0] sm:$0xff]
    %v247 = vld [vmem:[#allocation5 + $0x1b8] sm:$0xff]
    %v248 = vld [vmem:[#allocation5 + $0x1c0] sm:$0xff]
    %v249 = vld [vmem:[#allocation5 + $0x1c8] sm:$0xff]
    %v250 = vld [vmem:[#allocation5 + $0x1d0] sm:$0xff]
    %v251 = vld [vmem:[#allocation5 + $0x1d8] sm:$0xff]
    %v252 = vld [vmem:[#allocation5 + $0x1e0] sm:$0xff]
    %v253 = vld [vmem:[#allocation5 + $0x1e8] sm:$0xff]
    %v254 = vld [vmem:[#allocation5 + $0x1f0] sm:$0xff]
    %v255 = vld [vmem:[#allocation5 + $0x1f8] sm:$0xff]
    %v256 = vld [vmem:[#allocation5 + $0x200] sm:$0xff]
    %v257 = vld [vmem:[#allocation5 + $0x208] sm:$0xff]
    %v258 = vld [vmem:[#allocation5 + $0x210] sm:$0xff]
    %v259 = vld [vmem:[#allocation5 + $0x218] sm:$0xff]
    %v260 = vld [vmem:[#allocation5 + $0x220] sm:$0xff]
    %v261 = vld [vmem:[#allocation5 + $0x228] sm:$0xff]
    %v262 = vld [vmem:[#allocation5 + $0x230] sm:$0xff]
    %v263 = vld [vmem:[#allocation5 + $0x238] sm:$0xff]
    %v264 = vld [vmem:[#allocation5 + $0x240] sm:$0xff]
    %v265 = vld [vmem:[#allocation5 + $0x248] sm:$0xff]
    %v266 = vld [vmem:[#allocation5 + $0x250] sm:$0xff]
    %v267 = vld [vmem:[#allocation5 + $0x258] sm:$0xff]
    %v268 = vld [vmem:[#allocation5 + $0x260] sm:$0xff]
    %v269 = vld [vmem:[#allocation5 + $0x268] sm:$0xff]
    %v270 = vld [vmem:[#allocation5 + $0x270] sm:$0xff]
    %v271 = vld [vmem:[#allocation5 + $0x278] sm:$0xff]
    %v272 = vld [vmem:[#allocation5 + $0x280] sm:$0xff]
    %v273 = vld [vmem:[#allocation5 + $0x288] sm:$0xff]
    %v274 = vld [vmem:[#allocation5 + $0x290] sm:$0xff]
    %v275 = vld [vmem:[#allocation5 + $0x298] sm:$0xff]
    %v276 = vld [vmem:[#allocation5 + $0x2a0] sm:$0xff]
    %v277 = vld [vmem:[#allocation5 + $0x2a8] sm:$0xff]
    %v278 = vld [vmem:[#allocation5 + $0x2b0] sm:$0xff]
    %v279 = vld [vmem:[#allocation5 + $0x2b8] sm:$0xff]
    %v280 = vld [vmem:[#allocation5 + $0x2c0] sm:$0xff]
    %v281 = vld [vmem:[#allocation5 + $0x2c8] sm:$0xff]
    %v282 = vld [vmem:[#allocation5 + $0x2d0] sm:$0xff]
    %v283 = vld [vmem:[#allocation5 + $0x2d8] sm:$0xff]
    %v284 = vld [vmem:[#allocation5 + $0x2e0] sm:$0xff]
    %v285 = vld [vmem:[#allocation5 + $0x2e8] sm:$0xff]
    %v286 = vld [vmem:[#allocation5 + $0x2f0] sm:$0xff]
    %v287 = vld [vmem:[#allocation5 + $0x2f8] sm:$0xff]
    %v288 = vld [vmem:[#allocation5 + $0x300] sm:$0xff]
    %v289 = vld [vmem:[#allocation5 + $0x308] sm:$0xff]
    %v290 = vld [vmem:[#allocation5 + $0x310] sm:$0xff]
    %v291 = vld [vmem:[#allocation5 + $0x318] sm:$0xff]
    %v292 = vld [vmem:[#allocation5 + $0x320] sm:$0xff]
    %v293 = vld [vmem:[#allocation5 + $0x328] sm:$0xff]
    %v294 = vld [vmem:[#allocation5 + $0x330] sm:$0xff]
    %v295 = vld [vmem:[#allocation5 + $0x338] sm:$0xff]
    %v296 = vld [vmem:[#allocation5 + $0x340] sm:$0xff]
    %v297 = vld [vmem:[#allocation5 + $0x348] sm:$0xff]
    %v298 = vld [vmem:[#allocation5 + $0x350] sm:$0xff]
    %v299 = vld [vmem:[#allocation5 + $0x358] sm:$0xff]
    %v300 = vld [vmem:[#allocation5 + $0x360] sm:$0xff]
    %v301 = vld [vmem:[#allocation5 + $0x368] sm:$0xff]
    %v302 = vld [vmem:[#allocation5 + $0x370] sm:$0xff]
    %v303 = vld [vmem:[#allocation5 + $0x378] sm:$0xff]
    %v304 = vld [vmem:[#allocation5 + $0x380] sm:$0xff]
    %v305 = vld [vmem:[#allocation5 + $0x388] sm:$0xff]
    %v306 = vld [vmem:[#allocation5 + $0x390] sm:$0xff]
    %v307 = vld [vmem:[#allocation5 + $0x398] sm:$0xff]
    %v308 = vld [vmem:[#allocation5 + $0x3a0] sm:$0xff]
    %v309 = vld [vmem:[#allocation5 + $0x3a8] sm:$0xff]
    %v310 = vld [vmem:[#allocation5 + $0x3b0] sm:$0xff]
    %v311 = vld [vmem:[#allocation5 + $0x3b8] sm:$0xff]
    %v312 = vld [vmem:[#allocation5 + $0x3c0] sm:$0xff]
    %v313 = vld [vmem:[#allocation5 + $0x3c8] sm:$0xff]
    %v314 = vld [vmem:[#allocation5 + $0x3d0] sm:$0xff]
    %v315 = vld [vmem:[#allocation5 + $0x3d8] sm:$0xff]
    %v316 = vld [vmem:[#allocation5 + $0x3e0] sm:$0xff]
    %v317 = vld [vmem:[#allocation5 + $0x3e8] sm:$0xff]
    %v318 = vld [vmem:[#allocation5 + $0x3f0] sm:$0xff]
    %v319 = vld [vmem:[#allocation5 + $0x3f8] sm:$0xff]
    %v320 = vld [vmem:[#allocation5 + $0x400] sm:$0xff]
    %v321 = vld [vmem:[#allocation5 + $0x408] sm:$0xff]
    %v322 = vld [vmem:[#allocation5 + $0x410] sm:$0xff]
    %v323 = vld [vmem:[#allocation5 + $0x418] sm:$0xff]
    %v324 = vld [vmem:[#allocation5 + $0x420] sm:$0xff]
    %v325 = vld [vmem:[#allocation5 + $0x428] sm:$0xff]
    %v326 = vld [vmem:[#allocation5 + $0x430] sm:$0xff]
    %v327 = vld [vmem:[#allocation5 + $0x438] sm:$0xff]
    %v328 = vld [vmem:[#allocation5 + $0x440] sm:$0xff]
    %v329 = vld [vmem:[#allocation5 + $0x448] sm:$0xff]
    %v330 = vld [vmem:[#allocation5 + $0x450] sm:$0xff]
    %v331 = vld [vmem:[#allocation5 + $0x458] sm:$0xff]
    %v332 = vld [vmem:[#allocation5 + $0x460] sm:$0xff]
    %v333 = vld [vmem:[#allocation5 + $0x468] sm:$0xff]
    %v334 = vld [vmem:[#allocation5 + $0x470] sm:$0xff]
    %v335 = vld [vmem:[#allocation5 + $0x478] sm:$0xff]
    %v336 = vld [vmem:[#allocation5 + $0x480] sm:$0xff]
    %v337 = vld [vmem:[#allocation5 + $0x488] sm:$0xff]
    %v338 = vld [vmem:[#allocation5 + $0x490] sm:$0xff]
    %v339 = vld [vmem:[#allocation5 + $0x498] sm:$0xff]
    %v340 = vld [vmem:[#allocation5 + $0x4a0] sm:$0xff]
    %v341 = vld [vmem:[#allocation5 + $0x4a8] sm:$0xff]
    %v342 = vld [vmem:[#allocation5 + $0x4b0] sm:$0xff]
    %v343 = vld [vmem:[#allocation5 + $0x4b8] sm:$0xff]
    %v344 = vld [vmem:[#allocation5 + $0x4c0] sm:$0xff]
    %v345 = vld [vmem:[#allocation5 + $0x4c8] sm:$0xff]
    %v346 = vld [vmem:[#allocation5 + $0x4d0] sm:$0xff]
    %v347 = vld [vmem:[#allocation5 + $0x4d8] sm:$0xff]
    %v348 = vld [vmem:[#allocation5 + $0x4e0] sm:$0xff]
    %v349 = vld [vmem:[#allocation5 + $0x4e8] sm:$0xff]
    %v350 = vld [vmem:[#allocation5 + $0x4f0] sm:$0xff]
    %v351 = vld [vmem:[#allocation5 + $0x4f8] sm:$0xff]
    %v352 = vld [vmem:[#allocation5 + $0x500] sm:$0xff]
    %v353 = vld [vmem:[#allocation5 + $0x508] sm:$0xff]
    %v354 = vld [vmem:[#allocation5 + $0x510] sm:$0xff]
    %v355 = vld [vmem:[#allocation5 + $0x518] sm:$0xff]
    %v356 = vld [vmem:[#allocation5 + $0x520] sm:$0xff]
    %v357 = vld [vmem:[#allocation5 + $0x528] sm:$0xff]
    %v358 = vld [vmem:[#allocation5 + $0x530] sm:$0xff]
    %v359 = vld [vmem:[#allocation5 + $0x538] sm:$0xff]
    %v360 = vld [vmem:[#allocation5 + $0x540] sm:$0xff]
    %v361 = vld [vmem:[#allocation5 + $0x548] sm:$0xff]
    %v362 = vld [vmem:[#allocation5 + $0x550] sm:$0xff]
    %v363 = vld [vmem:[#allocation5 + $0x558] sm:$0xff]
    %v364 = vld [vmem:[#allocation5 + $0x560] sm:$0xff]
    %v365 = vld [vmem:[#allocation5 + $0x568] sm:$0xff]
    %v366 = vld [vmem:[#allocation5 + $0x570] sm:$0xff]
    %v367 = vld [vmem:[#allocation5 + $0x578] sm:$0xff]
    %v368 = vld [vmem:[#allocation5 + $0x580] sm:$0xff]
    %v369 = vld [vmem:[#allocation5 + $0x588] sm:$0xff]
    %v370 = vld [vmem:[#allocation5 + $0x590] sm:$0xff]
    %v371 = vld [vmem:[#allocation5 + $0x598] sm:$0xff]
    %v372 = vld [vmem:[#allocation5 + $0x5a0] sm:$0xff]
    %v373 = vld [vmem:[#allocation5 + $0x5a8] sm:$0xff]
    %v374 = vld [vmem:[#allocation5 + $0x5b0] sm:$0xff]
    %v375 = vld [vmem:[#allocation5 + $0x5b8] sm:$0xff]
    %v376 = vld [vmem:[#allocation5 + $0x5c0] sm:$0xff]
    %v377 = vld [vmem:[#allocation5 + $0x5c8] sm:$0xff]
    %v378 = vld [vmem:[#allocation5 + $0x5d0] sm:$0xff]
    %v379 = vld [vmem:[#allocation5 + $0x5d8] sm:$0xff]
    %v380 = vld [vmem:[#allocation5 + $0x5e0] sm:$0xff]
    %v381 = vld [vmem:[#allocation5 + $0x5e8] sm:$0xff]
    %v382 = vld [vmem:[#allocation5 + $0x5f0] sm:$0xff]
    %v383 = vld [vmem:[#allocation5 + $0x5f8] sm:$0xff]
    %v384 = vld [vmem:[#allocation5 + $0x600] sm:$0xff]
    %v385 = vld [vmem:[#allocation5 + $0x608] sm:$0xff]
    %v386 = vld [vmem:[#allocation5 + $0x610] sm:$0xff]
    %v387 = vld [vmem:[#allocation5 + $0x618] sm:$0xff]
    %v388 = vld [vmem:[#allocation5 + $0x620] sm:$0xff]
    %v389 = vld [vmem:[#allocation5 + $0x628] sm:$0xff]
    %v390 = vld [vmem:[#allocation5 + $0x630] sm:$0xff]
    %v391 = vld [vmem:[#allocation5 + $0x638] sm:$0xff]
    %v392 = vld [vmem:[#allocation5 + $0x640] sm:$0xff]
    %v393 = vld [vmem:[#allocation5 + $0x648] sm:$0xff]
    %v394 = vld [vmem:[#allocation5 + $0x650] sm:$0xff]
    %v395 = vld [vmem:[#allocation5 + $0x658] sm:$0xff]
    %v396 = vld [vmem:[#allocation5 + $0x660] sm:$0xff]
    %v397 = vld [vmem:[#allocation5 + $0x668] sm:$0xff]
    %v398 = vld [vmem:[#allocation5 + $0x670] sm:$0xff]
    %v399 = vld [vmem:[#allocation5 + $0x678] sm:$0xff]
    %v400 = vld [vmem:[#allocation5 + $0x680] sm:$0xff]
    %v401 = vld [vmem:[#allocation5 + $0x688] sm:$0xff]
    %v402 = vld [vmem:[#allocation5 + $0x690] sm:$0xff]
    %v403 = vld [vmem:[#allocation5 + $0x698] sm:$0xff]
    %v404 = vld [vmem:[#allocation5 + $0x6a0] sm:$0xff]
    %v405 = vld [vmem:[#allocation5 + $0x6a8] sm:$0xff]
    %v406 = vld [vmem:[#allocation5 + $0x6b0] sm:$0xff]
    %v407 = vld [vmem:[#allocation5 + $0x6b8] sm:$0xff]
    %v408 = vld [vmem:[#allocation5 + $0x6c0] sm:$0xff]
    %v409 = vld [vmem:[#allocation5 + $0x6c8] sm:$0xff]
    %v410 = vld [vmem:[#allocation5 + $0x6d0] sm:$0xff]
    %v411 = vld [vmem:[#allocation5 + $0x6d8] sm:$0xff]
    %v412 = vld [vmem:[#allocation5 + $0x6e0] sm:$0xff]
    %v413 = vld [vmem:[#allocation5 + $0x6e8] sm:$0xff]
    %v414 = vld [vmem:[#allocation5 + $0x6f0] sm:$0xff]
    %v415 = vld [vmem:[#allocation5 + $0x6f8] sm:$0xff]
    %v416 = vld [vmem:[#allocation5 + $0x700] sm:$0xff]
    %v417 = vld [vmem:[#allocation5 + $0x708] sm:$0xff]
    %v418 = vld [vmem:[#allocation5 + $0x710] sm:$0xff]
    %v419 = vld [vmem:[#allocation5 + $0x718] sm:$0xff]
    %v420 = vld [vmem:[#allocation5 + $0x720] sm:$0xff]
    %v421 = vld [vmem:[#allocation5 + $0x728] sm:$0xff]
    %v422 = vld [vmem:[#allocation5 + $0x730] sm:$0xff]
    %v423 = vld [vmem:[#allocation5 + $0x738] sm:$0xff]
    %v424 = vld [vmem:[#allocation5 + $0x740] sm:$0xff]
    %v425 = vld [vmem:[#allocation5 + $0x748] sm:$0xff]
    %v426 = vld [vmem:[#allocation5 + $0x750] sm:$0xff]
    %v427 = vld [vmem:[#allocation5 + $0x758] sm:$0xff]
    %v428 = vld [vmem:[#allocation5 + $0x760] sm:$0xff]
    %v429 = vld [vmem:[#allocation5 + $0x768] sm:$0xff]
    %v430 = vld [vmem:[#allocation5 + $0x770] sm:$0xff]
    %v431 = vld [vmem:[#allocation5 + $0x778] sm:$0xff]
    %v432 = vld [vmem:[#allocation5 + $0x780] sm:$0xff]
    %v433 = vld [vmem:[#allocation5 + $0x788] sm:$0xff]
    %v434 = vld [vmem:[#allocation5 + $0x790] sm:$0xff]
    %v435 = vld [vmem:[#allocation5 + $0x798] sm:$0xff]
    %v436 = vld [vmem:[#allocation5 + $0x7a0] sm:$0xff]
    %v437 = vld [vmem:[#allocation5 + $0x7a8] sm:$0xff]
    %v438 = vld [vmem:[#allocation5 + $0x7b0] sm:$0xff]
    %v439 = vld [vmem:[#allocation5 + $0x7b8] sm:$0xff]
    %v440 = vld [vmem:[#allocation5 + $0x7c0] sm:$0xff]
    %v441 = vld [vmem:[#allocation5 + $0x7c8] sm:$0xff]
    %v442 = vld [vmem:[#allocation5 + $0x7d0] sm:$0xff]
    %v443 = vld [vmem:[#allocation5 + $0x7d8] sm:$0xff]
    %v444 = vld [vmem:[#allocation5 + $0x7e0] sm:$0xff]
    %v445 = vld [vmem:[#allocation5 + $0x7e8] sm:$0xff]
    %v446 = vld [vmem:[#allocation5 + $0x7f0] sm:$0xff]
    %v447 = vld [vmem:[#allocation5 + $0x7f8] sm:$0xff]
    %v448 = vld [vmem:[#allocation5 + $0x800] sm:$0xff]
    %v449 = vld [vmem:[#allocation5 + $0x808] sm:$0xff]
    %v450 = vld [vmem:[#allocation5 + $0x810] sm:$0xff]
    %v451 = vld [vmem:[#allocation5 + $0x818] sm:$0xff]
    %v452 = vld [vmem:[#allocation5 + $0x820] sm:$0xff]
    %v453 = vld [vmem:[#allocation5 + $0x828] sm:$0xff]
    %v454 = vld [vmem:[#allocation5 + $0x830] sm:$0xff]
    %v455 = vld [vmem:[#allocation5 + $0x838] sm:$0xff]
    %v456 = vld [vmem:[#allocation5 + $0x840] sm:$0xff]
    %v457 = vld [vmem:[#allocation5 + $0x848] sm:$0xff]
    %v458 = vld [vmem:[#allocation5 + $0x850] sm:$0xff]
    %v459 = vld [vmem:[#allocation5 + $0x858] sm:$0xff]
    %v460 = vld [vmem:[#allocation5 + $0x860] sm:$0xff]
    %v461 = vld [vmem:[#allocation5 + $0x868] sm:$0xff]
    %v462 = vld [vmem:[#allocation5 + $0x870] sm:$0xff]
    %v463 = vld [vmem:[#allocation5 + $0x878] sm:$0xff]
    %v464 = vld [vmem:[#allocation5 + $0x880] sm:$0xff]
    %v465 = vld [vmem:[#allocation5 + $0x888] sm:$0xff]
    %v466 = vld [vmem:[#allocation5 + $0x890] sm:$0xff]
    %v467 = vld [vmem:[#allocation5 + $0x898] sm:$0xff]
    %v468 = vld [vmem:[#allocation5 + $0x8a0] sm:$0xff]
    %v469 = vld [vmem:[#allocation5 + $0x8a8] sm:$0xff]
    %v470 = vld [vmem:[#allocation5 + $0x8b0] sm:$0xff]
    %v471 = vld [vmem:[#allocation5 + $0x8b8] sm:$0xff]
    %v472 = vld [vmem:[#allocation5 + $0x8c0] sm:$0xff]
    %v473 = vld [vmem:[#allocation5 + $0x8c8] sm:$0xff]
    %v474 = vld [vmem:[#allocation5 + $0x8d0] sm:$0xff]
    %v475 = vld [vmem:[#allocation5 + $0x8d8] sm:$0xff]
    %v476 = vld [vmem:[#allocation5 + $0x8e0] sm:$0xff]
    %v477 = vld [vmem:[#allocation5 + $0x8e8] sm:$0xff]
    %v478 = vld [vmem:[#allocation5 + $0x8f0] sm:$0xff]
    %v479 = vld [vmem:[#allocation5 + $0x8f8] sm:$0xff]
    %v480 = vld [vmem:[#allocation5 + $0x900] sm:$0xff]
    %v481 = vld [vmem:[#allocation5 + $0x908] sm:$0xff]
    %v482 = vld [vmem:[#allocation5 + $0x910] sm:$0xff]
    %v483 = vld [vmem:[#allocation5 + $0x918] sm:$0xff]
    %v484 = vld [vmem:[#allocation5 + $0x920] sm:$0xff]
    %v485 = vld [vmem:[#allocation5 + $0x928] sm:$0xff]
    %v486 = vld [vmem:[#allocation5 + $0x930] sm:$0xff]
    %v487 = vld [vmem:[#allocation5 + $0x938] sm:$0xff]
    %v488 = vld [vmem:[#allocation5 + $0x940] sm:$0xff]
    %v489 = vld [vmem:[#allocation5 + $0x948] sm:$0xff]
    %v490 = vld [vmem:[#allocation5 + $0x950] sm:$0xff]
    %v491 = vld [vmem:[#allocation5 + $0x958] sm:$0xff]
    %v492 = vld [vmem:[#allocation5 + $0x960] sm:$0xff]
    %v493 = vld [vmem:[#allocation5 + $0x968] sm:$0xff]
    %v494 = vld [vmem:[#allocation5 + $0x970] sm:$0xff]
    %v495 = vld [vmem:[#allocation5 + $0x978] sm:$0xff]
    %v496 = vld [vmem:[#allocation5 + $0x980] sm:$0xff]
    %v497 = vld [vmem:[#allocation5 + $0x988] sm:$0xff]
    %v498 = vld [vmem:[#allocation5 + $0x990] sm:$0xff]
    %v499 = vld [vmem:[#allocation5 + $0x998] sm:$0xff]
    %v500 = vld [vmem:[#allocation5 + $0x9a0] sm:$0xff]
    %v501 = vld [vmem:[#allocation5 + $0x9a8] sm:$0xff]
    %v502 = vld [vmem:[#allocation5 + $0x9b0] sm:$0xff]
    %v503 = vld [vmem:[#allocation5 + $0x9b8] sm:$0xff]
    %v504 = vld [vmem:[#allocation5 + $0x9c0] sm:$0xff]
    %v505 = vld [vmem:[#allocation5 + $0x9c8] sm:$0xff]
    %v506 = vld [vmem:[#allocation5 + $0x9d0] sm:$0xff]
    %v507 = vld [vmem:[#allocation5 + $0x9d8] sm:$0xff]
    %v508 = vld [vmem:[#allocation5 + $0x9e0] sm:$0xff]
    %v509 = vld [vmem:[#allocation5 + $0x9e8] sm:$0xff]
    %v510 = vld [vmem:[#allocation5 + $0x9f0] sm:$0xff]
    %v511 = vld [vmem:[#allocation5 + $0x9f8] sm:$0xff]
    %v512 = vld [vmem:[#allocation5 + $0xa00] sm:$0xff]
    %v513 = vld [vmem:[#allocation5 + $0xa08] sm:$0xff]
    %v514 = vld [vmem:[#allocation5 + $0xa10] sm:$0xff]
    %v515 = vld [vmem:[#allocation5 + $0xa18] sm:$0xff]
    %v516 = vld [vmem:[#allocation5 + $0xa20] sm:$0xff]
    %v517 = vld [vmem:[#allocation5 + $0xa28] sm:$0xff]
    %v518 = vld [vmem:[#allocation5 + $0xa30] sm:$0xff]
    %v519 = vld [vmem:[#allocation5 + $0xa38] sm:$0xff]
    %v520 = vld [vmem:[#allocation5 + $0xa40] sm:$0xff]
    %v521 = vld [vmem:[#allocation5 + $0xa48] sm:$0xff]
    %v522 = vld [vmem:[#allocation5 + $0xa50] sm:$0xff]
    %v523 = vld [vmem:[#allocation5 + $0xa58] sm:$0xff]
    %v524 = vld [vmem:[#allocation5 + $0xa60] sm:$0xff]
    %v525 = vld [vmem:[#allocation5 + $0xa68] sm:$0xff]
    %v526 = vld [vmem:[#allocation5 + $0xa70] sm:$0xff]
    %v527 = vld [vmem:[#allocation5 + $0xa78] sm:$0xff]
    %v528 = vld [vmem:[#allocation5 + $0xa80] sm:$0xff]
    %v529 = vld [vmem:[#allocation5 + $0xa88] sm:$0xff]
    %v530 = vld [vmem:[#allocation5 + $0xa90] sm:$0xff]
    %v531 = vld [vmem:[#allocation5 + $0xa98] sm:$0xff]
    %v532 = vld [vmem:[#allocation5 + $0xaa0] sm:$0xff]
    %v533 = vld [vmem:[#allocation5 + $0xaa8] sm:$0xff]
    %v534 = vld [vmem:[#allocation5 + $0xab0] sm:$0xff]
    %v535 = vld [vmem:[#allocation5 + $0xab8] sm:$0xff]
    %v536 = vld [vmem:[#allocation5 + $0xac0] sm:$0xff]
    %v537 = vld [vmem:[#allocation5 + $0xac8] sm:$0xff]
    %v538 = vld [vmem:[#allocation5 + $0xad0] sm:$0xff]
    %v539 = vld [vmem:[#allocation5 + $0xad8] sm:$0xff]
    %v540 = vld [vmem:[#allocation5 + $0xae0] sm:$0xff]
    %v541 = vld [vmem:[#allocation5 + $0xae8] sm:$0xff]
    %v542 = vld [vmem:[#allocation5 + $0xaf0] sm:$0xff]
    %v543 = vld [vmem:[#allocation5 + $0xaf8] sm:$0xff]
    %v544 = vld [vmem:[#allocation5 + $0xb00] sm:$0xff]
    %v545 = vld [vmem:[#allocation5 + $0xb08] sm:$0xff]
    %v546 = vld [vmem:[#allocation5 + $0xb10] sm:$0xff]
    %v547 = vld [vmem:[#allocation5 + $0xb18] sm:$0xff]
    %v548 = vld [vmem:[#allocation5 + $0xb20] sm:$0xff]
    %v549 = vld [vmem:[#allocation5 + $0xb28] sm:$0xff]
    %v550 = vld [vmem:[#allocation5 + $0xb30] sm:$0xff]
    %v551 = vld [vmem:[#allocation5 + $0xb38] sm:$0xff]
    %v552 = vld [vmem:[#allocation5 + $0xb40] sm:$0xff]
    %v553 = vld [vmem:[#allocation5 + $0xb48] sm:$0xff]
    %v554 = vld [vmem:[#allocation5 + $0xb50] sm:$0xff]
    %v555 = vld [vmem:[#allocation5 + $0xb58] sm:$0xff]
    %v556 = vld [vmem:[#allocation5 + $0xb60] sm:$0xff]
    %v557 = vld [vmem:[#allocation5 + $0xb68] sm:$0xff]
    %v558 = vld [vmem:[#allocation5 + $0xb70] sm:$0xff]
    %v559 = vld [vmem:[#allocation5 + $0xb78] sm:$0xff]
    %v560 = vld [vmem:[#allocation5 + $0xb80] sm:$0xff]
    %v561 = vld [vmem:[#allocation5 + $0xb88] sm:$0xff]
    %v562 = vld [vmem:[#allocation5 + $0xb90] sm:$0xff]
    %v563 = vld [vmem:[#allocation5 + $0xb98] sm:$0xff]
    %v564 = vld [vmem:[#allocation5 + $0xba0] sm:$0xff]
    %v565 = vld [vmem:[#allocation5 + $0xba8] sm:$0xff]
    %v566 = vld [vmem:[#allocation5 + $0xbb0] sm:$0xff]
    %v567 = vld [vmem:[#allocation5 + $0xbb8] sm:$0xff]
    %v568 = vld [vmem:[#allocation5 + $0xbc0] sm:$0xff]
    %v569 = vld [vmem:[#allocation5 + $0xbc8] sm:$0xff]
    %v570 = vld [vmem:[#allocation5 + $0xbd0] sm:$0xff]
    %v571 = vld [vmem:[#allocation5 + $0xbd8] sm:$0xff]
    %v572 = vld [vmem:[#allocation5 + $0xbe0] sm:$0xff]
    %v573 = vld [vmem:[#allocation5 + $0xbe8] sm:$0xff]
    %v574 = vld [vmem:[#allocation5 + $0xbf0] sm:$0xff]
    %v575 = vld [vmem:[#allocation5 + $0xbf8] sm:$0xff]
    %v576 = vld [vmem:[#allocation5 + $0xc00] sm:$0xff]
    %v577 = vld [vmem:[#allocation5 + $0xc08] sm:$0xff]
    %v578 = vld [vmem:[#allocation5 + $0xc10] sm:$0xff]
    %v579 = vld [vmem:[#allocation5 + $0xc18] sm:$0xff]
    %v580 = vld [vmem:[#allocation5 + $0xc20] sm:$0xff]
    %v581 = vld [vmem:[#allocation5 + $0xc28] sm:$0xff]
    %v582 = vld [vmem:[#allocation5 + $0xc30] sm:$0xff]
    %v583 = vld [vmem:[#allocation5 + $0xc38] sm:$0xff]
    %v584 = vld [vmem:[#allocation5 + $0xc40] sm:$0xff]
    %v585 = vld [vmem:[#allocation5 + $0xc48] sm:$0xff]
    %v586 = vld [vmem:[#allocation5 + $0xc50] sm:$0xff]
    %v587 = vld [vmem:[#allocation5 + $0xc58] sm:$0xff]
    %v588 = vld [vmem:[#allocation5 + $0xc60] sm:$0xff]
    %v589 = vld [vmem:[#allocation5 + $0xc68] sm:$0xff]
    %v590 = vld [vmem:[#allocation5 + $0xc70] sm:$0xff]
    %v591 = vld [vmem:[#allocation5 + $0xc78] sm:$0xff]
    %v592 = vld [vmem:[#allocation5 + $0xc80] sm:$0xff]
    %v593 = vld [vmem:[#allocation5 + $0xc88] sm:$0xff]
    %v594 = vld [vmem:[#allocation5 + $0xc90] sm:$0xff]
    %v595 = vld [vmem:[#allocation5 + $0xc98] sm:$0xff]
    %v596 = vld [vmem:[#allocation5 + $0xca0] sm:$0xff]
    %v597 = vld [vmem:[#allocation5 + $0xca8] sm:$0xff]
    %v598 = vld [vmem:[#allocation5 + $0xcb0] sm:$0xff]
    %v599 = vld [vmem:[#allocation5 + $0xcb8] sm:$0xff]
    %v600 = vld [vmem:[#allocation5 + $0xcc0] sm:$0xff]
    %v601 = vld [vmem:[#allocation5 + $0xcc8] sm:$0xff]
    %v602 = vld [vmem:[#allocation5 + $0xcd0] sm:$0xff]
    %v603 = vld [vmem:[#allocation5 + $0xcd8] sm:$0xff]
    %v604 = vld [vmem:[#allocation5 + $0xce0] sm:$0xff]
    %v605 = vld [vmem:[#allocation5 + $0xce8] sm:$0xff]
    %v606 = vld [vmem:[#allocation5 + $0xcf0] sm:$0xff]
    %v607 = vld [vmem:[#allocation5 + $0xcf8] sm:$0xff]
    %v608 = vld [vmem:[#allocation5 + $0xd00] sm:$0xff]
    %v609 = vld [vmem:[#allocation5 + $0xd08] sm:$0xff]
    %v610 = vld [vmem:[#allocation5 + $0xd10] sm:$0xff]
    %v611 = vld [vmem:[#allocation5 + $0xd18] sm:$0xff]
    %v612 = vld [vmem:[#allocation5 + $0xd20] sm:$0xff]
    %v613 = vld [vmem:[#allocation5 + $0xd28] sm:$0xff]
    %v614 = vld [vmem:[#allocation5 + $0xd30] sm:$0xff]
    %v615 = vld [vmem:[#allocation5 + $0xd38] sm:$0xff]
    %v616 = vld [vmem:[#allocation5 + $0xd40] sm:$0xff]
    %v617 = vld [vmem:[#allocation5 + $0xd48] sm:$0xff]
    %v618 = vld [vmem:[#allocation5 + $0xd50] sm:$0xff]
    %v619 = vld [vmem:[#allocation5 + $0xd58] sm:$0xff]
    %v620 = vld [vmem:[#allocation5 + $0xd60] sm:$0xff]
    %v621 = vld [vmem:[#allocation5 + $0xd68] sm:$0xff]
    %v622 = vld [vmem:[#allocation5 + $0xd70] sm:$0xff]
    %v623 = vld [vmem:[#allocation5 + $0xd78] sm:$0xff]
    %v624 = vld [vmem:[#allocation5 + $0xd80] sm:$0xff]
    %v625 = vld [vmem:[#allocation5 + $0xd88] sm:$0xff]
    %v626 = vld [vmem:[#allocation5 + $0xd90] sm:$0xff]
    %v627 = vld [vmem:[#allocation5 + $0xd98] sm:$0xff]
    %v628 = vld [vmem:[#allocation5 + $0xda0] sm:$0xff]
    %v629 = vld [vmem:[#allocation5 + $0xda8] sm:$0xff]
    %v630 = vld [vmem:[#allocation5 + $0xdb0] sm:$0xff]
    %v631 = vld [vmem:[#allocation5 + $0xdb8] sm:$0xff]
    %v632 = vld [vmem:[#allocation5 + $0xdc0] sm:$0xff]
    %v633 = vld [vmem:[#allocation5 + $0xdc8] sm:$0xff]
    %v634 = vld [vmem:[#allocation5 + $0xdd0] sm:$0xff]
    %v635 = vld [vmem:[#allocation5 + $0xdd8] sm:$0xff]
    %v636 = vld [vmem:[#allocation5 + $0xde0] sm:$0xff]
    %v637 = vld [vmem:[#allocation5 + $0xde8] sm:$0xff]
    %v638 = vld [vmem:[#allocation5 + $0xdf0] sm:$0xff]
    %v639 = vld [vmem:[#allocation5 + $0xdf8] sm:$0xff]
    %v640 = vld [vmem:[#allocation5 + $0xe00] sm:$0xff]
    %v641 = vld [vmem:[#allocation5 + $0xe08] sm:$0xff]
    %v642 = vld [vmem:[#allocation5 + $0xe10] sm:$0xff]
    %v643 = vld [vmem:[#allocation5 + $0xe18] sm:$0xff]
    %v644 = vld [vmem:[#allocation5 + $0xe20] sm:$0xff]
    %v645 = vld [vmem:[#allocation5 + $0xe28] sm:$0xff]
    %v646 = vld [vmem:[#allocation5 + $0xe30] sm:$0xff]
    %v647 = vld [vmem:[#allocation5 + $0xe38] sm:$0xff]
    %v648 = vld [vmem:[#allocation5 + $0xe40] sm:$0xff]
    %v649 = vld [vmem:[#allocation5 + $0xe48] sm:$0xff]
    %v650 = vld [vmem:[#allocation5 + $0xe50] sm:$0xff]
    %v651 = vld [vmem:[#allocation5 + $0xe58] sm:$0xff]
    %v652 = vld [vmem:[#allocation5 + $0xe60] sm:$0xff]
    %v653 = vld [vmem:[#allocation5 + $0xe68] sm:$0xff]
    %v654 = vld [vmem:[#allocation5 + $0xe70] sm:$0xff]
    %v655 = vld [vmem:[#allocation5 + $0xe78] sm:$0xff]
    %v656 = vld [vmem:[#allocation5 + $0xe80] sm:$0xff]
    %v657 = vld [vmem:[#allocation5 + $0xe88] sm:$0xff]
    %v658 = vld [vmem:[#allocation5 + $0xe90] sm:$0xff]
    %v659 = vld [vmem:[#allocation5 + $0xe98] sm:$0xff]
    %v660 = vld [vmem:[#allocation5 + $0xea0] sm:$0xff]
    %v661 = vld [vmem:[#allocation5 + $0xea8] sm:$0xff]
    %v662 = vld [vmem:[#allocation5 + $0xeb0] sm:$0xff]
    %v663 = vld [vmem:[#allocation5 + $0xeb8] sm:$0xff]
    %v664 = vld [vmem:[#allocation5 + $0xec0] sm:$0xff]
    %v665 = vld [vmem:[#allocation5 + $0xec8] sm:$0xff]
    %v666 = vld [vmem:[#allocation5 + $0xed0] sm:$0xff]
    %v667 = vld [vmem:[#allocation5 + $0xed8] sm:$0xff]
    %v668 = vld [vmem:[#allocation5 + $0xee0] sm:$0xff]
    %v669 = vld [vmem:[#allocation5 + $0xee8] sm:$0xff]
    %v670 = vld [vmem:[#allocation5 + $0xef0] sm:$0xff]
    %v671 = vld [vmem:[#allocation5 + $0xef8] sm:$0xff]
    %v672 = vld [vmem:[#allocation5 + $0xf00] sm:$0xff]
    %v673 = vld [vmem:[#allocation5 + $0xf08] sm:$0xff]
    %v674 = vld [vmem:[#allocation5 + $0xf10] sm:$0xff]
    %v675 = vld [vmem:[#allocation5 + $0xf18] sm:$0xff]
    %v676 = vld [vmem:[#allocation5 + $0xf20] sm:$0xff]
    %v677 = vld [vmem:[#allocation5 + $0xf28] sm:$0xff]
    %v678 = vld [vmem:[#allocation5 + $0xf30] sm:$0xff]
    %v679 = vld [vmem:[#allocation5 + $0xf38] sm:$0xff]
    %v680 = vld [vmem:[#allocation5 + $0xf40] sm:$0xff]
    %v681 = vld [vmem:[#allocation5 + $0xf48] sm:$0xff]
    %v682 = vld [vmem:[#allocation5 + $0xf50] sm:$0xff]
    %v683 = vld [vmem:[#allocation5 + $0xf58] sm:$0xff]
    %v684 = vld [vmem:[#allocation5 + $0xf60] sm:$0xff]
    %v685 = vld [vmem:[#allocation5 + $0xf68] sm:$0xff]
    %v686 = vld [vmem:[#allocation5 + $0xf70] sm:$0xff]
    %v687 = vld [vmem:[#allocation5 + $0xf78] sm:$0xff]
    %v688 = vld [vmem:[#allocation5 + $0xf80] sm:$0xff]
    %v689 = vld [vmem:[#allocation5 + $0xf88] sm:$0xff]
    %v690 = vld [vmem:[#allocation5 + $0xf90] sm:$0xff]
    %v691 = vld [vmem:[#allocation5 + $0xf98] sm:$0xff]
    %v692 = vld [vmem:[#allocation5 + $0xfa0] sm:$0xff]
    %v693 = vld [vmem:[#allocation5 + $0xfa8] sm:$0xff]
    %v694 = vld [vmem:[#allocation5 + $0xfb0] sm:$0xff]
    %v695 = vld [vmem:[#allocation5 + $0xfb8] sm:$0xff]
    %v696 = vld [vmem:[#allocation5 + $0xfc0] sm:$0xff]
    %v697 = vld [vmem:[#allocation5 + $0xfc8] sm:$0xff]
    %v698 = vld [vmem:[#allocation5 + $0xfd0] sm:$0xff]
    %v699 = vld [vmem:[#allocation5 + $0xfd8] sm:$0xff]
    %v700 = vld [vmem:[#allocation5 + $0xfe0] sm:$0xff]
    %v701 = vld [vmem:[#allocation5 + $0xfe8] sm:$0xff]
    %v702 = vld [vmem:[#allocation5 + $0xff0] sm:$0xff]
    %v703 = vld [vmem:[#allocation5 + $0xff8] sm:$0xff]
    %v704 = vld [vmem:[#allocation7] sm:$0x3]
    %v706 = vperm.slane %v704, 0
    %v707 = vperm.slane %v704, 1
    %v1222 = vunpack.c.l.b16 %v192
    %v1223 = vunpack.c.h.b16 %v192
    %v1224 = vunpack.c.l.b16 %v193
    %v1225 = vunpack.c.h.b16 %v193
    %v1226 = vunpack.c.l.b16 %v194
    %v1227 = vunpack.c.h.b16 %v194
    %v1228 = vunpack.c.l.b16 %v195
    %v1229 = vunpack.c.h.b16 %v195
    %v1230 = vunpack.c.l.b16 %v196
    %v1231 = vunpack.c.h.b16 %v196
    %v1232 = vunpack.c.l.b16 %v197
    %v1233 = vunpack.c.h.b16 %v197
    %v1234 = vunpack.c.l.b16 %v198
    %v1235 = vunpack.c.h.b16 %v198
    %v1236 = vunpack.c.l.b16 %v199
    %v1237 = vunpack.c.h.b16 %v199
    %v1238 = vunpack.c.l.b16 %v200
    %v1239 = vunpack.c.h.b16 %v200
    %v1240 = vunpack.c.l.b16 %v201
    %v1241 = vunpack.c.h.b16 %v201
    %v1242 = vunpack.c.l.b16 %v202
    %v1243 = vunpack.c.h.b16 %v202
    %v1244 = vunpack.c.l.b16 %v203
    %v1245 = vunpack.c.h.b16 %v203
    %v1246 = vunpack.c.l.b16 %v204
    %v1247 = vunpack.c.h.b16 %v204
    %v1248 = vunpack.c.l.b16 %v205
    %v1249 = vunpack.c.h.b16 %v205
    %v1250 = vunpack.c.l.b16 %v206
    %v1251 = vunpack.c.h.b16 %v206
    %v1252 = vunpack.c.l.b16 %v207
    %v1253 = vunpack.c.h.b16 %v207
    %v1254 = vunpack.c.l.b16 %v208
    %v1255 = vunpack.c.h.b16 %v208
    %v1256 = vunpack.c.l.b16 %v209
    %v1257 = vunpack.c.h.b16 %v209
    %v1258 = vunpack.c.l.b16 %v210
    %v1259 = vunpack.c.h.b16 %v210
    %v1260 = vunpack.c.l.b16 %v211
    %v1261 = vunpack.c.h.b16 %v211
    %v1262 = vunpack.c.l.b16 %v212
    %v1263 = vunpack.c.h.b16 %v212
    %v1264 = vunpack.c.l.b16 %v213
    %v1265 = vunpack.c.h.b16 %v213
    %v1266 = vunpack.c.l.b16 %v214
    %v1267 = vunpack.c.h.b16 %v214
    %v1268 = vunpack.c.l.b16 %v215
    %v1269 = vunpack.c.h.b16 %v215
    %v1270 = vunpack.c.l.b16 %v216
    %v1271 = vunpack.c.h.b16 %v216
    %v1272 = vunpack.c.l.b16 %v217
    %v1273 = vunpack.c.h.b16 %v217
    %v1274 = vunpack.c.l.b16 %v218
    %v1275 = vunpack.c.h.b16 %v218
    %v1276 = vunpack.c.l.b16 %v219
    %v1277 = vunpack.c.h.b16 %v219
    %v1278 = vunpack.c.l.b16 %v220
    %v1279 = vunpack.c.h.b16 %v220
    %v1280 = vunpack.c.l.b16 %v221
    %v1281 = vunpack.c.h.b16 %v221
    %v1282 = vunpack.c.l.b16 %v222
    %v1283 = vunpack.c.h.b16 %v222
    %v1284 = vunpack.c.l.b16 %v223
    %v1285 = vunpack.c.h.b16 %v223
    %v1286 = vunpack.c.l.b16 %v224
    %v1287 = vunpack.c.h.b16 %v224
    %v1288 = vunpack.c.l.b16 %v225
    %v1289 = vunpack.c.h.b16 %v225
    %v1290 = vunpack.c.l.b16 %v226
    %v1291 = vunpack.c.h.b16 %v226
    %v1292 = vunpack.c.l.b16 %v227
    %v1293 = vunpack.c.h.b16 %v227
    %v1294 = vunpack.c.l.b16 %v228
    %v1295 = vunpack.c.h.b16 %v228
    %v1296 = vunpack.c.l.b16 %v229
    %v1297 = vunpack.c.h.b16 %v229
    %v1298 = vunpack.c.l.b16 %v230
    %v1299 = vunpack.c.h.b16 %v230
    %v1300 = vunpack.c.l.b16 %v231
    %v1301 = vunpack.c.h.b16 %v231
    %v1302 = vunpack.c.l.b16 %v232
    %v1303 = vunpack.c.h.b16 %v232
    %v1304 = vunpack.c.l.b16 %v233
    %v1305 = vunpack.c.h.b16 %v233
    %v1306 = vunpack.c.l.b16 %v234
    %v1307 = vunpack.c.h.b16 %v234
    %v1308 = vunpack.c.l.b16 %v235
    %v1309 = vunpack.c.h.b16 %v235
    %v1310 = vunpack.c.l.b16 %v236
    %v1311 = vunpack.c.h.b16 %v236
    %v1312 = vunpack.c.l.b16 %v237
    %v1313 = vunpack.c.h.b16 %v237
    %v1314 = vunpack.c.l.b16 %v238
    %v1315 = vunpack.c.h.b16 %v238
    %v1316 = vunpack.c.l.b16 %v239
    %v1317 = vunpack.c.h.b16 %v239
    %v1318 = vunpack.c.l.b16 %v240
    %v1319 = vunpack.c.h.b16 %v240
    %v1320 = vunpack.c.l.b16 %v241
    %v1321 = vunpack.c.h.b16 %v241
    %v1322 = vunpack.c.l.b16 %v242
    %v1323 = vunpack.c.h.b16 %v242
    %v1324 = vunpack.c.l.b16 %v243
    %v1325 = vunpack.c.h.b16 %v243
    %v1326 = vunpack.c.l.b16 %v244
    %v1327 = vunpack.c.h.b16 %v244
    %v1328 = vunpack.c.l.b16 %v245
    %v1329 = vunpack.c.h.b16 %v245
    %v1330 = vunpack.c.l.b16 %v246
    %v1331 = vunpack.c.h.b16 %v246
    %v1332 = vunpack.c.l.b16 %v247
    %v1333 = vunpack.c.h.b16 %v247
    %v1334 = vunpack.c.l.b16 %v248
    %v1335 = vunpack.c.h.b16 %v248
    %v1336 = vunpack.c.l.b16 %v249
    %v1337 = vunpack.c.h.b16 %v249
    %v1338 = vunpack.c.l.b16 %v250
    %v1339 = vunpack.c.h.b16 %v250
    %v1340 = vunpack.c.l.b16 %v251
    %v1341 = vunpack.c.h.b16 %v251
    %v1342 = vunpack.c.l.b16 %v252
    %v1343 = vunpack.c.h.b16 %v252
    %v1344 = vunpack.c.l.b16 %v253
    %v1345 = vunpack.c.h.b16 %v253
    %v1346 = vunpack.c.l.b16 %v254
    %v1347 = vunpack.c.h.b16 %v254
    %v1348 = vunpack.c.l.b16 %v255
    %v1349 = vunpack.c.h.b16 %v255
    %v1350 = vunpack.c.l.b16 %v256
    %v1351 = vunpack.c.h.b16 %v256
    %v1352 = vunpack.c.l.b16 %v257
    %v1353 = vunpack.c.h.b16 %v257
    %v1354 = vunpack.c.l.b16 %v258
    %v1355 = vunpack.c.h.b16 %v258
    %v1356 = vunpack.c.l.b16 %v259
    %v1357 = vunpack.c.h.b16 %v259
    %v1358 = vunpack.c.l.b16 %v260
    %v1359 = vunpack.c.h.b16 %v260
    %v1360 = vunpack.c.l.b16 %v261
    %v1361 = vunpack.c.h.b16 %v261
    %v1362 = vunpack.c.l.b16 %v262
    %v1363 = vunpack.c.h.b16 %v262
    %v1364 = vunpack.c.l.b16 %v263
    %v1365 = vunpack.c.h.b16 %v263
    %v1366 = vunpack.c.l.b16 %v264
    %v1367 = vunpack.c.h.b16 %v264
    %v1368 = vunpack.c.l.b16 %v265
    %v1369 = vunpack.c.h.b16 %v265
    %v1370 = vunpack.c.l.b16 %v266
    %v1371 = vunpack.c.h.b16 %v266
    %v1372 = vunpack.c.l.b16 %v267
    %v1373 = vunpack.c.h.b16 %v267
    %v1374 = vunpack.c.l.b16 %v268
    %v1375 = vunpack.c.h.b16 %v268
    %v1376 = vunpack.c.l.b16 %v269
    %v1377 = vunpack.c.h.b16 %v269
    %v1378 = vunpack.c.l.b16 %v270
    %v1379 = vunpack.c.h.b16 %v270
    %v1380 = vunpack.c.l.b16 %v271
    %v1381 = vunpack.c.h.b16 %v271
    %v1382 = vunpack.c.l.b16 %v272
    %v1383 = vunpack.c.h.b16 %v272
    %v1384 = vunpack.c.l.b16 %v273
    %v1385 = vunpack.c.h.b16 %v273
    %v1386 = vunpack.c.l.b16 %v274
    %v1387 = vunpack.c.h.b16 %v274
    %v1388 = vunpack.c.l.b16 %v275
    %v1389 = vunpack.c.h.b16 %v275
    %v1390 = vunpack.c.l.b16 %v276
    %v1391 = vunpack.c.h.b16 %v276
    %v1392 = vunpack.c.l.b16 %v277
    %v1393 = vunpack.c.h.b16 %v277
    %v1394 = vunpack.c.l.b16 %v278
    %v1395 = vunpack.c.h.b16 %v278
    %v1396 = vunpack.c.l.b16 %v279
    %v1397 = vunpack.c.h.b16 %v279
    %v1398 = vunpack.c.l.b16 %v280
    %v1399 = vunpack.c.h.b16 %v280
    %v1400 = vunpack.c.l.b16 %v281
    %v1401 = vunpack.c.h.b16 %v281
    %v1402 = vunpack.c.l.b16 %v282
    %v1403 = vunpack.c.h.b16 %v282
    %v1404 = vunpack.c.l.b16 %v283
    %v1405 = vunpack.c.h.b16 %v283
    %v1406 = vunpack.c.l.b16 %v284
    %v1407 = vunpack.c.h.b16 %v284
    %v1408 = vunpack.c.l.b16 %v285
    %v1409 = vunpack.c.h.b16 %v285
    %v1410 = vunpack.c.l.b16 %v286
    %v1411 = vunpack.c.h.b16 %v286
    %v1412 = vunpack.c.l.b16 %v287
    %v1413 = vunpack.c.h.b16 %v287
    %v1414 = vunpack.c.l.b16 %v288
    %v1415 = vunpack.c.h.b16 %v288
    %v1416 = vunpack.c.l.b16 %v289
    %v1417 = vunpack.c.h.b16 %v289
    %v1418 = vunpack.c.l.b16 %v290
    %v1419 = vunpack.c.h.b16 %v290
    %v1420 = vunpack.c.l.b16 %v291
    %v1421 = vunpack.c.h.b16 %v291
    %v1422 = vunpack.c.l.b16 %v292
    %v1423 = vunpack.c.h.b16 %v292
    %v1424 = vunpack.c.l.b16 %v293
    %v1425 = vunpack.c.h.b16 %v293
    %v1426 = vunpack.c.l.b16 %v294
    %v1427 = vunpack.c.h.b16 %v294
    %v1428 = vunpack.c.l.b16 %v295
    %v1429 = vunpack.c.h.b16 %v295
    %v1430 = vunpack.c.l.b16 %v296
    %v1431 = vunpack.c.h.b16 %v296
    %v1432 = vunpack.c.l.b16 %v297
    %v1433 = vunpack.c.h.b16 %v297
    %v1434 = vunpack.c.l.b16 %v298
    %v1435 = vunpack.c.h.b16 %v298
    %v1436 = vunpack.c.l.b16 %v299
    %v1437 = vunpack.c.h.b16 %v299
    %v1438 = vunpack.c.l.b16 %v300
    %v1439 = vunpack.c.h.b16 %v300
    %v1440 = vunpack.c.l.b16 %v301
    %v1441 = vunpack.c.h.b16 %v301
    %v1442 = vunpack.c.l.b16 %v302
    %v1443 = vunpack.c.h.b16 %v302
    %v1444 = vunpack.c.l.b16 %v303
    %v1445 = vunpack.c.h.b16 %v303
    %v1446 = vunpack.c.l.b16 %v304
    %v1447 = vunpack.c.h.b16 %v304
    %v1448 = vunpack.c.l.b16 %v305
    %v1449 = vunpack.c.h.b16 %v305
    %v1450 = vunpack.c.l.b16 %v306
    %v1451 = vunpack.c.h.b16 %v306
    %v1452 = vunpack.c.l.b16 %v307
    %v1453 = vunpack.c.h.b16 %v307
    %v1454 = vunpack.c.l.b16 %v308
    %v1455 = vunpack.c.h.b16 %v308
    %v1456 = vunpack.c.l.b16 %v309
    %v1457 = vunpack.c.h.b16 %v309
    %v1458 = vunpack.c.l.b16 %v310
    %v1459 = vunpack.c.h.b16 %v310
    %v1460 = vunpack.c.l.b16 %v311
    %v1461 = vunpack.c.h.b16 %v311
    %v1462 = vunpack.c.l.b16 %v312
    %v1463 = vunpack.c.h.b16 %v312
    %v1464 = vunpack.c.l.b16 %v313
    %v1465 = vunpack.c.h.b16 %v313
    %v1466 = vunpack.c.l.b16 %v314
    %v1467 = vunpack.c.h.b16 %v314
    %v1468 = vunpack.c.l.b16 %v315
    %v1469 = vunpack.c.h.b16 %v315
    %v1470 = vunpack.c.l.b16 %v316
    %v1471 = vunpack.c.h.b16 %v316
    %v1472 = vunpack.c.l.b16 %v317
    %v1473 = vunpack.c.h.b16 %v317
    %v1474 = vunpack.c.l.b16 %v318
    %v1475 = vunpack.c.h.b16 %v318
    %v1476 = vunpack.c.l.b16 %v319
    %v1477 = vunpack.c.h.b16 %v319
    %v1478 = vunpack.c.l.b16 %v320
    %v1479 = vunpack.c.h.b16 %v320
    %v1480 = vunpack.c.l.b16 %v321
    %v1481 = vunpack.c.h.b16 %v321
    %v1482 = vunpack.c.l.b16 %v322
    %v1483 = vunpack.c.h.b16 %v322
    %v1484 = vunpack.c.l.b16 %v323
    %v1485 = vunpack.c.h.b16 %v323
    %v1486 = vunpack.c.l.b16 %v324
    %v1487 = vunpack.c.h.b16 %v324
    %v1488 = vunpack.c.l.b16 %v325
    %v1489 = vunpack.c.h.b16 %v325
    %v1490 = vunpack.c.l.b16 %v326
    %v1491 = vunpack.c.h.b16 %v326
    %v1492 = vunpack.c.l.b16 %v327
    %v1493 = vunpack.c.h.b16 %v327
    %v1494 = vunpack.c.l.b16 %v328
    %v1495 = vunpack.c.h.b16 %v328
    %v1496 = vunpack.c.l.b16 %v329
    %v1497 = vunpack.c.h.b16 %v329
    %v1498 = vunpack.c.l.b16 %v330
    %v1499 = vunpack.c.h.b16 %v330
    %v1500 = vunpack.c.l.b16 %v331
    %v1501 = vunpack.c.h.b16 %v331
    %v1502 = vunpack.c.l.b16 %v332
    %v1503 = vunpack.c.h.b16 %v332
    %v1504 = vunpack.c.l.b16 %v333
    %v1505 = vunpack.c.h.b16 %v333
    %v1506 = vunpack.c.l.b16 %v334
    %v1507 = vunpack.c.h.b16 %v334
    %v1508 = vunpack.c.l.b16 %v335
    %v1509 = vunpack.c.h.b16 %v335
    %v1510 = vunpack.c.l.b16 %v336
    %v1511 = vunpack.c.h.b16 %v336
    %v1512 = vunpack.c.l.b16 %v337
    %v1513 = vunpack.c.h.b16 %v337
    %v1514 = vunpack.c.l.b16 %v338
    %v1515 = vunpack.c.h.b16 %v338
    %v1516 = vunpack.c.l.b16 %v339
    %v1517 = vunpack.c.h.b16 %v339
    %v1518 = vunpack.c.l.b16 %v340
    %v1519 = vunpack.c.h.b16 %v340
    %v1520 = vunpack.c.l.b16 %v341
    %v1521 = vunpack.c.h.b16 %v341
    %v1522 = vunpack.c.l.b16 %v342
    %v1523 = vunpack.c.h.b16 %v342
    %v1524 = vunpack.c.l.b16 %v343
    %v1525 = vunpack.c.h.b16 %v343
    %v1526 = vunpack.c.l.b16 %v344
    %v1527 = vunpack.c.h.b16 %v344
    %v1528 = vunpack.c.l.b16 %v345
    %v1529 = vunpack.c.h.b16 %v345
    %v1530 = vunpack.c.l.b16 %v346
    %v1531 = vunpack.c.h.b16 %v346
    %v1532 = vunpack.c.l.b16 %v347
    %v1533 = vunpack.c.h.b16 %v347
    %v1534 = vunpack.c.l.b16 %v348
    %v1535 = vunpack.c.h.b16 %v348
    %v1536 = vunpack.c.l.b16 %v349
    %v1537 = vunpack.c.h.b16 %v349
    %v1538 = vunpack.c.l.b16 %v350
    %v1539 = vunpack.c.h.b16 %v350
    %v1540 = vunpack.c.l.b16 %v351
    %v1541 = vunpack.c.h.b16 %v351
    %v1542 = vunpack.c.l.b16 %v352
    %v1543 = vunpack.c.h.b16 %v352
    %v1544 = vunpack.c.l.b16 %v353
    %v1545 = vunpack.c.h.b16 %v353
    %v1546 = vunpack.c.l.b16 %v354
    %v1547 = vunpack.c.h.b16 %v354
    %v1548 = vunpack.c.l.b16 %v355
    %v1549 = vunpack.c.h.b16 %v355
    %v1550 = vunpack.c.l.b16 %v356
    %v1551 = vunpack.c.h.b16 %v356
    %v1552 = vunpack.c.l.b16 %v357
    %v1553 = vunpack.c.h.b16 %v357
    %v1554 = vunpack.c.l.b16 %v358
    %v1555 = vunpack.c.h.b16 %v358
    %v1556 = vunpack.c.l.b16 %v359
    %v1557 = vunpack.c.h.b16 %v359
    %v1558 = vunpack.c.l.b16 %v360
    %v1559 = vunpack.c.h.b16 %v360
    %v1560 = vunpack.c.l.b16 %v361
    %v1561 = vunpack.c.h.b16 %v361
    %v1562 = vunpack.c.l.b16 %v362
    %v1563 = vunpack.c.h.b16 %v362
    %v1564 = vunpack.c.l.b16 %v363
    %v1565 = vunpack.c.h.b16 %v363
    %v1566 = vunpack.c.l.b16 %v364
    %v1567 = vunpack.c.h.b16 %v364
    %v1568 = vunpack.c.l.b16 %v365
    %v1569 = vunpack.c.h.b16 %v365
    %v1570 = vunpack.c.l.b16 %v366
    %v1571 = vunpack.c.h.b16 %v366
    %v1572 = vunpack.c.l.b16 %v367
    %v1573 = vunpack.c.h.b16 %v367
    %v1574 = vunpack.c.l.b16 %v368
    %v1575 = vunpack.c.h.b16 %v368
    %v1576 = vunpack.c.l.b16 %v369
    %v1577 = vunpack.c.h.b16 %v369
    %v1578 = vunpack.c.l.b16 %v370
    %v1579 = vunpack.c.h.b16 %v370
    %v1580 = vunpack.c.l.b16 %v371
    %v1581 = vunpack.c.h.b16 %v371
    %v1582 = vunpack.c.l.b16 %v372
    %v1583 = vunpack.c.h.b16 %v372
    %v1584 = vunpack.c.l.b16 %v373
    %v1585 = vunpack.c.h.b16 %v373
    %v1586 = vunpack.c.l.b16 %v374
    %v1587 = vunpack.c.h.b16 %v374
    %v1588 = vunpack.c.l.b16 %v375
    %v1589 = vunpack.c.h.b16 %v375
    %v1590 = vunpack.c.l.b16 %v376
    %v1591 = vunpack.c.h.b16 %v376
    %v1592 = vunpack.c.l.b16 %v377
    %v1593 = vunpack.c.h.b16 %v377
    %v1594 = vunpack.c.l.b16 %v378
    %v1595 = vunpack.c.h.b16 %v378
    %v1596 = vunpack.c.l.b16 %v379
    %v1597 = vunpack.c.h.b16 %v379
    %v1598 = vunpack.c.l.b16 %v380
    %v1599 = vunpack.c.h.b16 %v380
    %v1600 = vunpack.c.l.b16 %v381
    %v1601 = vunpack.c.h.b16 %v381
    %v1602 = vunpack.c.l.b16 %v382
    %v1603 = vunpack.c.h.b16 %v382
    %v1604 = vunpack.c.l.b16 %v383
    %v1605 = vunpack.c.h.b16 %v383
    %v1606 = vunpack.c.l.b16 %v384
    %v1607 = vunpack.c.h.b16 %v384
    %v1608 = vunpack.c.l.b16 %v385
    %v1609 = vunpack.c.h.b16 %v385
    %v1610 = vunpack.c.l.b16 %v386
    %v1611 = vunpack.c.h.b16 %v386
    %v1612 = vunpack.c.l.b16 %v387
    %v1613 = vunpack.c.h.b16 %v387
    %v1614 = vunpack.c.l.b16 %v388
    %v1615 = vunpack.c.h.b16 %v388
    %v1616 = vunpack.c.l.b16 %v389
    %v1617 = vunpack.c.h.b16 %v389
    %v1618 = vunpack.c.l.b16 %v390
    %v1619 = vunpack.c.h.b16 %v390
    %v1620 = vunpack.c.l.b16 %v391
    %v1621 = vunpack.c.h.b16 %v391
    %v1622 = vunpack.c.l.b16 %v392
    %v1623 = vunpack.c.h.b16 %v392
    %v1624 = vunpack.c.l.b16 %v393
    %v1625 = vunpack.c.h.b16 %v393
    %v1626 = vunpack.c.l.b16 %v394
    %v1627 = vunpack.c.h.b16 %v394
    %v1628 = vunpack.c.l.b16 %v395
    %v1629 = vunpack.c.h.b16 %v395
    %v1630 = vunpack.c.l.b16 %v396
    %v1631 = vunpack.c.h.b16 %v396
    %v1632 = vunpack.c.l.b16 %v397
    %v1633 = vunpack.c.h.b16 %v397
    %v1634 = vunpack.c.l.b16 %v398
    %v1635 = vunpack.c.h.b16 %v398
    %v1636 = vunpack.c.l.b16 %v399
    %v1637 = vunpack.c.h.b16 %v399
    %v1638 = vunpack.c.l.b16 %v400
    %v1639 = vunpack.c.h.b16 %v400
    %v1640 = vunpack.c.l.b16 %v401
    %v1641 = vunpack.c.h.b16 %v401
    %v1642 = vunpack.c.l.b16 %v402
    %v1643 = vunpack.c.h.b16 %v402
    %v1644 = vunpack.c.l.b16 %v403
    %v1645 = vunpack.c.h.b16 %v403
    %v1646 = vunpack.c.l.b16 %v404
    %v1647 = vunpack.c.h.b16 %v404
    %v1648 = vunpack.c.l.b16 %v405
    %v1649 = vunpack.c.h.b16 %v405
    %v1650 = vunpack.c.l.b16 %v406
    %v1651 = vunpack.c.h.b16 %v406
    %v1652 = vunpack.c.l.b16 %v407
    %v1653 = vunpack.c.h.b16 %v407
    %v1654 = vunpack.c.l.b16 %v408
    %v1655 = vunpack.c.h.b16 %v408
    %v1656 = vunpack.c.l.b16 %v409
    %v1657 = vunpack.c.h.b16 %v409
    %v1658 = vunpack.c.l.b16 %v410
    %v1659 = vunpack.c.h.b16 %v410
    %v1660 = vunpack.c.l.b16 %v411
    %v1661 = vunpack.c.h.b16 %v411
    %v1662 = vunpack.c.l.b16 %v412
    %v1663 = vunpack.c.h.b16 %v412
    %v1664 = vunpack.c.l.b16 %v413
    %v1665 = vunpack.c.h.b16 %v413
    %v1666 = vunpack.c.l.b16 %v414
    %v1667 = vunpack.c.h.b16 %v414
    %v1668 = vunpack.c.l.b16 %v415
    %v1669 = vunpack.c.h.b16 %v415
    %v1670 = vunpack.c.l.b16 %v416
    %v1671 = vunpack.c.h.b16 %v416
    %v1672 = vunpack.c.l.b16 %v417
    %v1673 = vunpack.c.h.b16 %v417
    %v1674 = vunpack.c.l.b16 %v418
    %v1675 = vunpack.c.h.b16 %v418
    %v1676 = vunpack.c.l.b16 %v419
    %v1677 = vunpack.c.h.b16 %v419
    %v1678 = vunpack.c.l.b16 %v420
    %v1679 = vunpack.c.h.b16 %v420
    %v1680 = vunpack.c.l.b16 %v421
    %v1681 = vunpack.c.h.b16 %v421
    %v1682 = vunpack.c.l.b16 %v422
    %v1683 = vunpack.c.h.b16 %v422
    %v1684 = vunpack.c.l.b16 %v423
    %v1685 = vunpack.c.h.b16 %v423
    %v1686 = vunpack.c.l.b16 %v424
    %v1687 = vunpack.c.h.b16 %v424
    %v1688 = vunpack.c.l.b16 %v425
    %v1689 = vunpack.c.h.b16 %v425
    %v1690 = vunpack.c.l.b16 %v426
    %v1691 = vunpack.c.h.b16 %v426
    %v1692 = vunpack.c.l.b16 %v427
    %v1693 = vunpack.c.h.b16 %v427
    %v1694 = vunpack.c.l.b16 %v428
    %v1695 = vunpack.c.h.b16 %v428
    %v1696 = vunpack.c.l.b16 %v429
    %v1697 = vunpack.c.h.b16 %v429
    %v1698 = vunpack.c.l.b16 %v430
    %v1699 = vunpack.c.h.b16 %v430
    %v1700 = vunpack.c.l.b16 %v431
    %v1701 = vunpack.c.h.b16 %v431
    %v1702 = vunpack.c.l.b16 %v432
    %v1703 = vunpack.c.h.b16 %v432
    %v1704 = vunpack.c.l.b16 %v433
    %v1705 = vunpack.c.h.b16 %v433
    %v1706 = vunpack.c.l.b16 %v434
    %v1707 = vunpack.c.h.b16 %v434
    %v1708 = vunpack.c.l.b16 %v435
    %v1709 = vunpack.c.h.b16 %v435
    %v1710 = vunpack.c.l.b16 %v436
    %v1711 = vunpack.c.h.b16 %v436
    %v1712 = vunpack.c.l.b16 %v437
    %v1713 = vunpack.c.h.b16 %v437
    %v1714 = vunpack.c.l.b16 %v438
    %v1715 = vunpack.c.h.b16 %v438
    %v1716 = vunpack.c.l.b16 %v439
    %v1717 = vunpack.c.h.b16 %v439
    %v1718 = vunpack.c.l.b16 %v440
    %v1719 = vunpack.c.h.b16 %v440
    %v1720 = vunpack.c.l.b16 %v441
    %v1721 = vunpack.c.h.b16 %v441
    %v1722 = vunpack.c.l.b16 %v442
    %v1723 = vunpack.c.h.b16 %v442
    %v1724 = vunpack.c.l.b16 %v443
    %v1725 = vunpack.c.h.b16 %v443
    %v1726 = vunpack.c.l.b16 %v444
    %v1727 = vunpack.c.h.b16 %v444
    %v1728 = vunpack.c.l.b16 %v445
    %v1729 = vunpack.c.h.b16 %v445
    %v1730 = vunpack.c.l.b16 %v446
    %v1731 = vunpack.c.h.b16 %v446
    %v1732 = vunpack.c.l.b16 %v447
    %v1733 = vunpack.c.h.b16 %v447
    %v1734 = vunpack.c.l.b16 %v448
    %v1735 = vunpack.c.h.b16 %v448
    %v1736 = vunpack.c.l.b16 %v449
    %v1737 = vunpack.c.h.b16 %v449
    %v1738 = vunpack.c.l.b16 %v450
    %v1739 = vunpack.c.h.b16 %v450
    %v1740 = vunpack.c.l.b16 %v451
    %v1741 = vunpack.c.h.b16 %v451
    %v1742 = vunpack.c.l.b16 %v452
    %v1743 = vunpack.c.h.b16 %v452
    %v1744 = vunpack.c.l.b16 %v453
    %v1745 = vunpack.c.h.b16 %v453
    %v1746 = vunpack.c.l.b16 %v454
    %v1747 = vunpack.c.h.b16 %v454
    %v1748 = vunpack.c.l.b16 %v455
    %v1749 = vunpack.c.h.b16 %v455
    %v1750 = vunpack.c.l.b16 %v456
    %v1751 = vunpack.c.h.b16 %v456
    %v1752 = vunpack.c.l.b16 %v457
    %v1753 = vunpack.c.h.b16 %v457
    %v1754 = vunpack.c.l.b16 %v458
    %v1755 = vunpack.c.h.b16 %v458
    %v1756 = vunpack.c.l.b16 %v459
    %v1757 = vunpack.c.h.b16 %v459
    %v1758 = vunpack.c.l.b16 %v460
    %v1759 = vunpack.c.h.b16 %v460
    %v1760 = vunpack.c.l.b16 %v461
    %v1761 = vunpack.c.h.b16 %v461
    %v1762 = vunpack.c.l.b16 %v462
    %v1763 = vunpack.c.h.b16 %v462
    %v1764 = vunpack.c.l.b16 %v463
    %v1765 = vunpack.c.h.b16 %v463
    %v1766 = vunpack.c.l.b16 %v464
    %v1767 = vunpack.c.h.b16 %v464
    %v1768 = vunpack.c.l.b16 %v465
    %v1769 = vunpack.c.h.b16 %v465
    %v1770 = vunpack.c.l.b16 %v466
    %v1771 = vunpack.c.h.b16 %v466
    %v1772 = vunpack.c.l.b16 %v467
    %v1773 = vunpack.c.h.b16 %v467
    %v1774 = vunpack.c.l.b16 %v468
    %v1775 = vunpack.c.h.b16 %v468
    %v1776 = vunpack.c.l.b16 %v469
    %v1777 = vunpack.c.h.b16 %v469
    %v1778 = vunpack.c.l.b16 %v470
    %v1779 = vunpack.c.h.b16 %v470
    %v1780 = vunpack.c.l.b16 %v471
    %v1781 = vunpack.c.h.b16 %v471
    %v1782 = vunpack.c.l.b16 %v472
    %v1783 = vunpack.c.h.b16 %v472
    %v1784 = vunpack.c.l.b16 %v473
    %v1785 = vunpack.c.h.b16 %v473
    %v1786 = vunpack.c.l.b16 %v474
    %v1787 = vunpack.c.h.b16 %v474
    %v1788 = vunpack.c.l.b16 %v475
    %v1789 = vunpack.c.h.b16 %v475
    %v1790 = vunpack.c.l.b16 %v476
    %v1791 = vunpack.c.h.b16 %v476
    %v1792 = vunpack.c.l.b16 %v477
    %v1793 = vunpack.c.h.b16 %v477
    %v1794 = vunpack.c.l.b16 %v478
    %v1795 = vunpack.c.h.b16 %v478
    %v1796 = vunpack.c.l.b16 %v479
    %v1797 = vunpack.c.h.b16 %v479
    %v1798 = vunpack.c.l.b16 %v480
    %v1799 = vunpack.c.h.b16 %v480
    %v1800 = vunpack.c.l.b16 %v481
    %v1801 = vunpack.c.h.b16 %v481
    %v1802 = vunpack.c.l.b16 %v482
    %v1803 = vunpack.c.h.b16 %v482
    %v1804 = vunpack.c.l.b16 %v483
    %v1805 = vunpack.c.h.b16 %v483
    %v1806 = vunpack.c.l.b16 %v484
    %v1807 = vunpack.c.h.b16 %v484
    %v1808 = vunpack.c.l.b16 %v485
    %v1809 = vunpack.c.h.b16 %v485
    %v1810 = vunpack.c.l.b16 %v486
    %v1811 = vunpack.c.h.b16 %v486
    %v1812 = vunpack.c.l.b16 %v487
    %v1813 = vunpack.c.h.b16 %v487
    %v1814 = vunpack.c.l.b16 %v488
    %v1815 = vunpack.c.h.b16 %v488
    %v1816 = vunpack.c.l.b16 %v489
    %v1817 = vunpack.c.h.b16 %v489
    %v1818 = vunpack.c.l.b16 %v490
    %v1819 = vunpack.c.h.b16 %v490
    %v1820 = vunpack.c.l.b16 %v491
    %v1821 = vunpack.c.h.b16 %v491
    %v1822 = vunpack.c.l.b16 %v492
    %v1823 = vunpack.c.h.b16 %v492
    %v1824 = vunpack.c.l.b16 %v493
    %v1825 = vunpack.c.h.b16 %v493
    %v1826 = vunpack.c.l.b16 %v494
    %v1827 = vunpack.c.h.b16 %v494
    %v1828 = vunpack.c.l.b16 %v495
    %v1829 = vunpack.c.h.b16 %v495
    %v1830 = vunpack.c.l.b16 %v496
    %v1831 = vunpack.c.h.b16 %v496
    %v1832 = vunpack.c.l.b16 %v497
    %v1833 = vunpack.c.h.b16 %v497
    %v1834 = vunpack.c.l.b16 %v498
    %v1835 = vunpack.c.h.b16 %v498
    %v1836 = vunpack.c.l.b16 %v499
    %v1837 = vunpack.c.h.b16 %v499
    %v1838 = vunpack.c.l.b16 %v500
    %v1839 = vunpack.c.h.b16 %v500
    %v1840 = vunpack.c.l.b16 %v501
    %v1841 = vunpack.c.h.b16 %v501
    %v1842 = vunpack.c.l.b16 %v502
    %v1843 = vunpack.c.h.b16 %v502
    %v1844 = vunpack.c.l.b16 %v503
    %v1845 = vunpack.c.h.b16 %v503
    %v1846 = vunpack.c.l.b16 %v504
    %v1847 = vunpack.c.h.b16 %v504
    %v1848 = vunpack.c.l.b16 %v505
    %v1849 = vunpack.c.h.b16 %v505
    %v1850 = vunpack.c.l.b16 %v506
    %v1851 = vunpack.c.h.b16 %v506
    %v1852 = vunpack.c.l.b16 %v507
    %v1853 = vunpack.c.h.b16 %v507
    %v1854 = vunpack.c.l.b16 %v508
    %v1855 = vunpack.c.h.b16 %v508
    %v1856 = vunpack.c.l.b16 %v509
    %v1857 = vunpack.c.h.b16 %v509
    %v1858 = vunpack.c.l.b16 %v510
    %v1859 = vunpack.c.h.b16 %v510
    %v1860 = vunpack.c.l.b16 %v511
    %v1861 = vunpack.c.h.b16 %v511
    %v1862 = vunpack.c.l.b16 %v512
    %v1863 = vunpack.c.h.b16 %v512
    %v1864 = vunpack.c.l.b16 %v513
    %v1865 = vunpack.c.h.b16 %v513
    %v1866 = vunpack.c.l.b16 %v514
    %v1867 = vunpack.c.h.b16 %v514
    %v1868 = vunpack.c.l.b16 %v515
    %v1869 = vunpack.c.h.b16 %v515
    %v1870 = vunpack.c.l.b16 %v516
    %v1871 = vunpack.c.h.b16 %v516
    %v1872 = vunpack.c.l.b16 %v517
    %v1873 = vunpack.c.h.b16 %v517
    %v1874 = vunpack.c.l.b16 %v518
    %v1875 = vunpack.c.h.b16 %v518
    %v1876 = vunpack.c.l.b16 %v519
    %v1877 = vunpack.c.h.b16 %v519
    %v1878 = vunpack.c.l.b16 %v520
    %v1879 = vunpack.c.h.b16 %v520
    %v1880 = vunpack.c.l.b16 %v521
    %v1881 = vunpack.c.h.b16 %v521
    %v1882 = vunpack.c.l.b16 %v522
    %v1883 = vunpack.c.h.b16 %v522
    %v1884 = vunpack.c.l.b16 %v523
    %v1885 = vunpack.c.h.b16 %v523
    %v1886 = vunpack.c.l.b16 %v524
    %v1887 = vunpack.c.h.b16 %v524
    %v1888 = vunpack.c.l.b16 %v525
    %v1889 = vunpack.c.h.b16 %v525
    %v1890 = vunpack.c.l.b16 %v526
    %v1891 = vunpack.c.h.b16 %v526
    %v1892 = vunpack.c.l.b16 %v527
    %v1893 = vunpack.c.h.b16 %v527
    %v1894 = vunpack.c.l.b16 %v528
    %v1895 = vunpack.c.h.b16 %v528
    %v1896 = vunpack.c.l.b16 %v529
    %v1897 = vunpack.c.h.b16 %v529
    %v1898 = vunpack.c.l.b16 %v530
    %v1899 = vunpack.c.h.b16 %v530
    %v1900 = vunpack.c.l.b16 %v531
    %v1901 = vunpack.c.h.b16 %v531
    %v1902 = vunpack.c.l.b16 %v532
    %v1903 = vunpack.c.h.b16 %v532
    %v1904 = vunpack.c.l.b16 %v533
    %v1905 = vunpack.c.h.b16 %v533
    %v1906 = vunpack.c.l.b16 %v534
    %v1907 = vunpack.c.h.b16 %v534
    %v1908 = vunpack.c.l.b16 %v535
    %v1909 = vunpack.c.h.b16 %v535
    %v1910 = vunpack.c.l.b16 %v536
    %v1911 = vunpack.c.h.b16 %v536
    %v1912 = vunpack.c.l.b16 %v537
    %v1913 = vunpack.c.h.b16 %v537
    %v1914 = vunpack.c.l.b16 %v538
    %v1915 = vunpack.c.h.b16 %v538
    %v1916 = vunpack.c.l.b16 %v539
    %v1917 = vunpack.c.h.b16 %v539
    %v1918 = vunpack.c.l.b16 %v540
    %v1919 = vunpack.c.h.b16 %v540
    %v1920 = vunpack.c.l.b16 %v541
    %v1921 = vunpack.c.h.b16 %v541
    %v1922 = vunpack.c.l.b16 %v542
    %v1923 = vunpack.c.h.b16 %v542
    %v1924 = vunpack.c.l.b16 %v543
    %v1925 = vunpack.c.h.b16 %v543
    %v1926 = vunpack.c.l.b16 %v544
    %v1927 = vunpack.c.h.b16 %v544
    %v1928 = vunpack.c.l.b16 %v545
    %v1929 = vunpack.c.h.b16 %v545
    %v1930 = vunpack.c.l.b16 %v546
    %v1931 = vunpack.c.h.b16 %v546
    %v1932 = vunpack.c.l.b16 %v547
    %v1933 = vunpack.c.h.b16 %v547
    %v1934 = vunpack.c.l.b16 %v548
    %v1935 = vunpack.c.h.b16 %v548
    %v1936 = vunpack.c.l.b16 %v549
    %v1937 = vunpack.c.h.b16 %v549
    %v1938 = vunpack.c.l.b16 %v550
    %v1939 = vunpack.c.h.b16 %v550
    %v1940 = vunpack.c.l.b16 %v551
    %v1941 = vunpack.c.h.b16 %v551
    %v1942 = vunpack.c.l.b16 %v552
    %v1943 = vunpack.c.h.b16 %v552
    %v1944 = vunpack.c.l.b16 %v553
    %v1945 = vunpack.c.h.b16 %v553
    %v1946 = vunpack.c.l.b16 %v554
    %v1947 = vunpack.c.h.b16 %v554
    %v1948 = vunpack.c.l.b16 %v555
    %v1949 = vunpack.c.h.b16 %v555
    %v1950 = vunpack.c.l.b16 %v556
    %v1951 = vunpack.c.h.b16 %v556
    %v1952 = vunpack.c.l.b16 %v557
    %v1953 = vunpack.c.h.b16 %v557
    %v1954 = vunpack.c.l.b16 %v558
    %v1955 = vunpack.c.h.b16 %v558
    %v1956 = vunpack.c.l.b16 %v559
    %v1957 = vunpack.c.h.b16 %v559
    %v1958 = vunpack.c.l.b16 %v560
    %v1959 = vunpack.c.h.b16 %v560
    %v1960 = vunpack.c.l.b16 %v561
    %v1961 = vunpack.c.h.b16 %v561
    %v1962 = vunpack.c.l.b16 %v562
    %v1963 = vunpack.c.h.b16 %v562
    %v1964 = vunpack.c.l.b16 %v563
    %v1965 = vunpack.c.h.b16 %v563
    %v1966 = vunpack.c.l.b16 %v564
    %v1967 = vunpack.c.h.b16 %v564
    %v1968 = vunpack.c.l.b16 %v565
    %v1969 = vunpack.c.h.b16 %v565
    %v1970 = vunpack.c.l.b16 %v566
    %v1971 = vunpack.c.h.b16 %v566
    %v1972 = vunpack.c.l.b16 %v567
    %v1973 = vunpack.c.h.b16 %v567
    %v1974 = vunpack.c.l.b16 %v568
    %v1975 = vunpack.c.h.b16 %v568
    %v1976 = vunpack.c.l.b16 %v569
    %v1977 = vunpack.c.h.b16 %v569
    %v1978 = vunpack.c.l.b16 %v570
    %v1979 = vunpack.c.h.b16 %v570
    %v1980 = vunpack.c.l.b16 %v571
    %v1981 = vunpack.c.h.b16 %v571
    %v1982 = vunpack.c.l.b16 %v572
    %v1983 = vunpack.c.h.b16 %v572
    %v1984 = vunpack.c.l.b16 %v573
    %v1985 = vunpack.c.h.b16 %v573
    %v1986 = vunpack.c.l.b16 %v574
    %v1987 = vunpack.c.h.b16 %v574
    %v1988 = vunpack.c.l.b16 %v575
    %v1989 = vunpack.c.h.b16 %v575
    %v1990 = vunpack.c.l.b16 %v576
    %v1991 = vunpack.c.h.b16 %v576
    %v1992 = vunpack.c.l.b16 %v577
    %v1993 = vunpack.c.h.b16 %v577
    %v1994 = vunpack.c.l.b16 %v578
    %v1995 = vunpack.c.h.b16 %v578
    %v1996 = vunpack.c.l.b16 %v579
    %v1997 = vunpack.c.h.b16 %v579
    %v1998 = vunpack.c.l.b16 %v580
    %v1999 = vunpack.c.h.b16 %v580
    %v2000 = vunpack.c.l.b16 %v581
    %v2001 = vunpack.c.h.b16 %v581
    %v2002 = vunpack.c.l.b16 %v582
    %v2003 = vunpack.c.h.b16 %v582
    %v2004 = vunpack.c.l.b16 %v583
    %v2005 = vunpack.c.h.b16 %v583
    %v2006 = vunpack.c.l.b16 %v584
    %v2007 = vunpack.c.h.b16 %v584
    %v2008 = vunpack.c.l.b16 %v585
    %v2009 = vunpack.c.h.b16 %v585
    %v2010 = vunpack.c.l.b16 %v586
    %v2011 = vunpack.c.h.b16 %v586
    %v2012 = vunpack.c.l.b16 %v587
    %v2013 = vunpack.c.h.b16 %v587
    %v2014 = vunpack.c.l.b16 %v588
    %v2015 = vunpack.c.h.b16 %v588
    %v2016 = vunpack.c.l.b16 %v589
    %v2017 = vunpack.c.h.b16 %v589
    %v2018 = vunpack.c.l.b16 %v590
    %v2019 = vunpack.c.h.b16 %v590
    %v2020 = vunpack.c.l.b16 %v591
    %v2021 = vunpack.c.h.b16 %v591
    %v2022 = vunpack.c.l.b16 %v592
    %v2023 = vunpack.c.h.b16 %v592
    %v2024 = vunpack.c.l.b16 %v593
    %v2025 = vunpack.c.h.b16 %v593
    %v2026 = vunpack.c.l.b16 %v594
    %v2027 = vunpack.c.h.b16 %v594
    %v2028 = vunpack.c.l.b16 %v595
    %v2029 = vunpack.c.h.b16 %v595
    %v2030 = vunpack.c.l.b16 %v596
    %v2031 = vunpack.c.h.b16 %v596
    %v2032 = vunpack.c.l.b16 %v597
    %v2033 = vunpack.c.h.b16 %v597
    %v2034 = vunpack.c.l.b16 %v598
    %v2035 = vunpack.c.h.b16 %v598
    %v2036 = vunpack.c.l.b16 %v599
    %v2037 = vunpack.c.h.b16 %v599
    %v2038 = vunpack.c.l.b16 %v600
    %v2039 = vunpack.c.h.b16 %v600
    %v2040 = vunpack.c.l.b16 %v601
    %v2041 = vunpack.c.h.b16 %v601
    %v2042 = vunpack.c.l.b16 %v602
    %v2043 = vunpack.c.h.b16 %v602
    %v2044 = vunpack.c.l.b16 %v603
    %v2045 = vunpack.c.h.b16 %v603
    %v2046 = vunpack.c.l.b16 %v604
    %v2047 = vunpack.c.h.b16 %v604
    %v2048 = vunpack.c.l.b16 %v605
    %v2049 = vunpack.c.h.b16 %v605
    %v2050 = vunpack.c.l.b16 %v606
    %v2051 = vunpack.c.h.b16 %v606
    %v2052 = vunpack.c.l.b16 %v607
    %v2053 = vunpack.c.h.b16 %v607
    %v2054 = vunpack.c.l.b16 %v608
    %v2055 = vunpack.c.h.b16 %v608
    %v2056 = vunpack.c.l.b16 %v609
    %v2057 = vunpack.c.h.b16 %v609
    %v2058 = vunpack.c.l.b16 %v610
    %v2059 = vunpack.c.h.b16 %v610
    %v2060 = vunpack.c.l.b16 %v611
    %v2061 = vunpack.c.h.b16 %v611
    %v2062 = vunpack.c.l.b16 %v612
    %v2063 = vunpack.c.h.b16 %v612
    %v2064 = vunpack.c.l.b16 %v613
    %v2065 = vunpack.c.h.b16 %v613
    %v2066 = vunpack.c.l.b16 %v614
    %v2067 = vunpack.c.h.b16 %v614
    %v2068 = vunpack.c.l.b16 %v615
    %v2069 = vunpack.c.h.b16 %v615
    %v2070 = vunpack.c.l.b16 %v616
    %v2071 = vunpack.c.h.b16 %v616
    %v2072 = vunpack.c.l.b16 %v617
    %v2073 = vunpack.c.h.b16 %v617
    %v2074 = vunpack.c.l.b16 %v618
    %v2075 = vunpack.c.h.b16 %v618
    %v2076 = vunpack.c.l.b16 %v619
    %v2077 = vunpack.c.h.b16 %v619
    %v2078 = vunpack.c.l.b16 %v620
    %v2079 = vunpack.c.h.b16 %v620
    %v2080 = vunpack.c.l.b16 %v621
    %v2081 = vunpack.c.h.b16 %v621
    %v2082 = vunpack.c.l.b16 %v622
    %v2083 = vunpack.c.h.b16 %v622
    %v2084 = vunpack.c.l.b16 %v623
    %v2085 = vunpack.c.h.b16 %v623
    %v2086 = vunpack.c.l.b16 %v624
    %v2087 = vunpack.c.h.b16 %v624
    %v2088 = vunpack.c.l.b16 %v625
    %v2089 = vunpack.c.h.b16 %v625
    %v2090 = vunpack.c.l.b16 %v626
    %v2091 = vunpack.c.h.b16 %v626
    %v2092 = vunpack.c.l.b16 %v627
    %v2093 = vunpack.c.h.b16 %v627
    %v2094 = vunpack.c.l.b16 %v628
    %v2095 = vunpack.c.h.b16 %v628
    %v2096 = vunpack.c.l.b16 %v629
    %v2097 = vunpack.c.h.b16 %v629
    %v2098 = vunpack.c.l.b16 %v630
    %v2099 = vunpack.c.h.b16 %v630
    %v2100 = vunpack.c.l.b16 %v631
    %v2101 = vunpack.c.h.b16 %v631
    %v2102 = vunpack.c.l.b16 %v632
    %v2103 = vunpack.c.h.b16 %v632
    %v2104 = vunpack.c.l.b16 %v633
    %v2105 = vunpack.c.h.b16 %v633
    %v2106 = vunpack.c.l.b16 %v634
    %v2107 = vunpack.c.h.b16 %v634
    %v2108 = vunpack.c.l.b16 %v635
    %v2109 = vunpack.c.h.b16 %v635
    %v2110 = vunpack.c.l.b16 %v636
    %v2111 = vunpack.c.h.b16 %v636
    %v2112 = vunpack.c.l.b16 %v637
    %v2113 = vunpack.c.h.b16 %v637
    %v2114 = vunpack.c.l.b16 %v638
    %v2115 = vunpack.c.h.b16 %v638
    %v2116 = vunpack.c.l.b16 %v639
    %v2117 = vunpack.c.h.b16 %v639
    %v2118 = vunpack.c.l.b16 %v640
    %v2119 = vunpack.c.h.b16 %v640
    %v2120 = vunpack.c.l.b16 %v641
    %v2121 = vunpack.c.h.b16 %v641
    %v2122 = vunpack.c.l.b16 %v642
    %v2123 = vunpack.c.h.b16 %v642
    %v2124 = vunpack.c.l.b16 %v643
    %v2125 = vunpack.c.h.b16 %v643
    %v2126 = vunpack.c.l.b16 %v644
    %v2127 = vunpack.c.h.b16 %v644
    %v2128 = vunpack.c.l.b16 %v645
    %v2129 = vunpack.c.h.b16 %v645
    %v2130 = vunpack.c.l.b16 %v646
    %v2131 = vunpack.c.h.b16 %v646
    %v2132 = vunpack.c.l.b16 %v647
    %v2133 = vunpack.c.h.b16 %v647
    %v2134 = vunpack.c.l.b16 %v648
    %v2135 = vunpack.c.h.b16 %v648
    %v2136 = vunpack.c.l.b16 %v649
    %v2137 = vunpack.c.h.b16 %v649
    %v2138 = vunpack.c.l.b16 %v650
    %v2139 = vunpack.c.h.b16 %v650
    %v2140 = vunpack.c.l.b16 %v651
    %v2141 = vunpack.c.h.b16 %v651
    %v2142 = vunpack.c.l.b16 %v652
    %v2143 = vunpack.c.h.b16 %v652
    %v2144 = vunpack.c.l.b16 %v653
    %v2145 = vunpack.c.h.b16 %v653
    %v2146 = vunpack.c.l.b16 %v654
    %v2147 = vunpack.c.h.b16 %v654
    %v2148 = vunpack.c.l.b16 %v655
    %v2149 = vunpack.c.h.b16 %v655
    %v2150 = vunpack.c.l.b16 %v656
    %v2151 = vunpack.c.h.b16 %v656
    %v2152 = vunpack.c.l.b16 %v657
    %v2153 = vunpack.c.h.b16 %v657
    %v2154 = vunpack.c.l.b16 %v658
    %v2155 = vunpack.c.h.b16 %v658
    %v2156 = vunpack.c.l.b16 %v659
    %v2157 = vunpack.c.h.b16 %v659
    %v2158 = vunpack.c.l.b16 %v660
    %v2159 = vunpack.c.h.b16 %v660
    %v2160 = vunpack.c.l.b16 %v661
    %v2161 = vunpack.c.h.b16 %v661
    %v2162 = vunpack.c.l.b16 %v662
    %v2163 = vunpack.c.h.b16 %v662
    %v2164 = vunpack.c.l.b16 %v663
    %v2165 = vunpack.c.h.b16 %v663
    %v2166 = vunpack.c.l.b16 %v664
    %v2167 = vunpack.c.h.b16 %v664
    %v2168 = vunpack.c.l.b16 %v665
    %v2169 = vunpack.c.h.b16 %v665
    %v2170 = vunpack.c.l.b16 %v666
    %v2171 = vunpack.c.h.b16 %v666
    %v2172 = vunpack.c.l.b16 %v667
    %v2173 = vunpack.c.h.b16 %v667
    %v2174 = vunpack.c.l.b16 %v668
    %v2175 = vunpack.c.h.b16 %v668
    %v2176 = vunpack.c.l.b16 %v669
    %v2177 = vunpack.c.h.b16 %v669
    %v2178 = vunpack.c.l.b16 %v670
    %v2179 = vunpack.c.h.b16 %v670
    %v2180 = vunpack.c.l.b16 %v671
    %v2181 = vunpack.c.h.b16 %v671
    %v2182 = vunpack.c.l.b16 %v672
    %v2183 = vunpack.c.h.b16 %v672
    %v2184 = vunpack.c.l.b16 %v673
    %v2185 = vunpack.c.h.b16 %v673
    %v2186 = vunpack.c.l.b16 %v674
    %v2187 = vunpack.c.h.b16 %v674
    %v2188 = vunpack.c.l.b16 %v675
    %v2189 = vunpack.c.h.b16 %v675
    %v2190 = vunpack.c.l.b16 %v676
    %v2191 = vunpack.c.h.b16 %v676
    %v2192 = vunpack.c.l.b16 %v677
    %v2193 = vunpack.c.h.b16 %v677
    %v2194 = vunpack.c.l.b16 %v678
    %v2195 = vunpack.c.h.b16 %v678
    %v2196 = vunpack.c.l.b16 %v679
    %v2197 = vunpack.c.h.b16 %v679
    %v2198 = vunpack.c.l.b16 %v680
    %v2199 = vunpack.c.h.b16 %v680
    %v2200 = vunpack.c.l.b16 %v681
    %v2201 = vunpack.c.h.b16 %v681
    %v2202 = vunpack.c.l.b16 %v682
    %v2203 = vunpack.c.h.b16 %v682
    %v2204 = vunpack.c.l.b16 %v683
    %v2205 = vunpack.c.h.b16 %v683
    %v2206 = vunpack.c.l.b16 %v684
    %v2207 = vunpack.c.h.b16 %v684
    %v2208 = vunpack.c.l.b16 %v685
    %v2209 = vunpack.c.h.b16 %v685
    %v2210 = vunpack.c.l.b16 %v686
    %v2211 = vunpack.c.h.b16 %v686
    %v2212 = vunpack.c.l.b16 %v687
    %v2213 = vunpack.c.h.b16 %v687
    %v2214 = vunpack.c.l.b16 %v688
    %v2215 = vunpack.c.h.b16 %v688
    %v2216 = vunpack.c.l.b16 %v689
    %v2217 = vunpack.c.h.b16 %v689
    %v2218 = vunpack.c.l.b16 %v690
    %v2219 = vunpack.c.h.b16 %v690
    %v2220 = vunpack.c.l.b16 %v691
    %v2221 = vunpack.c.h.b16 %v691
    %v2222 = vunpack.c.l.b16 %v692
    %v2223 = vunpack.c.h.b16 %v692
    %v2224 = vunpack.c.l.b16 %v693
    %v2225 = vunpack.c.h.b16 %v693
    %v2226 = vunpack.c.l.b16 %v694
    %v2227 = vunpack.c.h.b16 %v694
    %v2228 = vunpack.c.l.b16 %v695
    %v2229 = vunpack.c.h.b16 %v695
    %v2230 = vunpack.c.l.b16 %v696
    %v2231 = vunpack.c.h.b16 %v696
    %v2232 = vunpack.c.l.b16 %v697
    %v2233 = vunpack.c.h.b16 %v697
    %v2234 = vunpack.c.l.b16 %v698
    %v2235 = vunpack.c.h.b16 %v698
    %v2236 = vunpack.c.l.b16 %v699
    %v2237 = vunpack.c.h.b16 %v699
    %v2238 = vunpack.c.l.b16 %v700
    %v2239 = vunpack.c.h.b16 %v700
    %v2240 = vunpack.c.l.b16 %v701
    %v2241 = vunpack.c.h.b16 %v701
    %v2242 = vunpack.c.l.b16 %v702
    %v2243 = vunpack.c.h.b16 %v702
    %v2244 = vunpack.c.l.b16 %v703
    %v2245 = vunpack.c.h.b16 %v703
    %v2246 = vpack.c.b16 %v1224, %v1222
    %v2247 = vpack.c.b16 %v1225, %v1223
    %v2248 = vpack.c.b16 %v1228, %v1226
    %v2249 = vpack.c.b16 %v1229, %v1227
    %v2250 = vpack.c.b16 %v1232, %v1230
    %v2251 = vpack.c.b16 %v1233, %v1231
    %v2252 = vpack.c.b16 %v1236, %v1234
    %v2253 = vpack.c.b16 %v1237, %v1235
    %v2254 = vpack.c.b16 %v1240, %v1238
    %v2255 = vpack.c.b16 %v1241, %v1239
    %v2256 = vpack.c.b16 %v1244, %v1242
    %v2257 = vpack.c.b16 %v1245, %v1243
    %v2258 = vpack.c.b16 %v1248, %v1246
    %v2259 = vpack.c.b16 %v1249, %v1247
    %v2260 = vpack.c.b16 %v1252, %v1250
    %v2261 = vpack.c.b16 %v1253, %v1251
    %v2262 = vpack.c.b16 %v1256, %v1254
    %v2263 = vpack.c.b16 %v1257, %v1255
    %v2264 = vpack.c.b16 %v1260, %v1258
    %v2265 = vpack.c.b16 %v1261, %v1259
    %v2266 = vpack.c.b16 %v1264, %v1262
    %v2267 = vpack.c.b16 %v1265, %v1263
    %v2268 = vpack.c.b16 %v1268, %v1266
    %v2269 = vpack.c.b16 %v1269, %v1267
    %v2270 = vpack.c.b16 %v1272, %v1270
    %v2271 = vpack.c.b16 %v1273, %v1271
    %v2272 = vpack.c.b16 %v1276, %v1274
    %v2273 = vpack.c.b16 %v1277, %v1275
    %v2274 = vpack.c.b16 %v1280, %v1278
    %v2275 = vpack.c.b16 %v1281, %v1279
    %v2276 = vpack.c.b16 %v1284, %v1282
    %v2277 = vpack.c.b16 %v1285, %v1283
    %v2278 = vpack.c.b16 %v1288, %v1286
    %v2279 = vpack.c.b16 %v1289, %v1287
    %v2280 = vpack.c.b16 %v1292, %v1290
    %v2281 = vpack.c.b16 %v1293, %v1291
    %v2282 = vpack.c.b16 %v1296, %v1294
    %v2283 = vpack.c.b16 %v1297, %v1295
    %v2284 = vpack.c.b16 %v1300, %v1298
    %v2285 = vpack.c.b16 %v1301, %v1299
    %v2286 = vpack.c.b16 %v1304, %v1302
    %v2287 = vpack.c.b16 %v1305, %v1303
    %v2288 = vpack.c.b16 %v1308, %v1306
    %v2289 = vpack.c.b16 %v1309, %v1307
    %v2290 = vpack.c.b16 %v1312, %v1310
    %v2291 = vpack.c.b16 %v1313, %v1311
    %v2292 = vpack.c.b16 %v1316, %v1314
    %v2293 = vpack.c.b16 %v1317, %v1315
    %v2294 = vpack.c.b16 %v1320, %v1318
    %v2295 = vpack.c.b16 %v1321, %v1319
    %v2296 = vpack.c.b16 %v1324, %v1322
    %v2297 = vpack.c.b16 %v1325, %v1323
    %v2298 = vpack.c.b16 %v1328, %v1326
    %v2299 = vpack.c.b16 %v1329, %v1327
    %v2300 = vpack.c.b16 %v1332, %v1330
    %v2301 = vpack.c.b16 %v1333, %v1331
    %v2302 = vpack.c.b16 %v1336, %v1334
    %v2303 = vpack.c.b16 %v1337, %v1335
    %v2304 = vpack.c.b16 %v1340, %v1338
    %v2305 = vpack.c.b16 %v1341, %v1339
    %v2306 = vpack.c.b16 %v1344, %v1342
    %v2307 = vpack.c.b16 %v1345, %v1343
    %v2308 = vpack.c.b16 %v1348, %v1346
    %v2309 = vpack.c.b16 %v1349, %v1347
    %v2310 = vpack.c.b16 %v1352, %v1350
    %v2311 = vpack.c.b16 %v1353, %v1351
    %v2312 = vpack.c.b16 %v1356, %v1354
    %v2313 = vpack.c.b16 %v1357, %v1355
    %v2314 = vpack.c.b16 %v1360, %v1358
    %v2315 = vpack.c.b16 %v1361, %v1359
    %v2316 = vpack.c.b16 %v1364, %v1362
    %v2317 = vpack.c.b16 %v1365, %v1363
    %v2318 = vpack.c.b16 %v1368, %v1366
    %v2319 = vpack.c.b16 %v1369, %v1367
    %v2320 = vpack.c.b16 %v1372, %v1370
    %v2321 = vpack.c.b16 %v1373, %v1371
    %v2322 = vpack.c.b16 %v1376, %v1374
    %v2323 = vpack.c.b16 %v1377, %v1375
    %v2324 = vpack.c.b16 %v1380, %v1378
    %v2325 = vpack.c.b16 %v1381, %v1379
    %v2326 = vpack.c.b16 %v1384, %v1382
    %v2327 = vpack.c.b16 %v1385, %v1383
    %v2328 = vpack.c.b16 %v1388, %v1386
    %v2329 = vpack.c.b16 %v1389, %v1387
    %v2330 = vpack.c.b16 %v1392, %v1390
    %v2331 = vpack.c.b16 %v1393, %v1391
    %v2332 = vpack.c.b16 %v1396, %v1394
    %v2333 = vpack.c.b16 %v1397, %v1395
    %v2334 = vpack.c.b16 %v1400, %v1398
    %v2335 = vpack.c.b16 %v1401, %v1399
    %v2336 = vpack.c.b16 %v1404, %v1402
    %v2337 = vpack.c.b16 %v1405, %v1403
    %v2338 = vpack.c.b16 %v1408, %v1406
    %v2339 = vpack.c.b16 %v1409, %v1407
    %v2340 = vpack.c.b16 %v1412, %v1410
    %v2341 = vpack.c.b16 %v1413, %v1411
    %v2342 = vpack.c.b16 %v1416, %v1414
    %v2343 = vpack.c.b16 %v1417, %v1415
    %v2344 = vpack.c.b16 %v1420, %v1418
    %v2345 = vpack.c.b16 %v1421, %v1419
    %v2346 = vpack.c.b16 %v1424, %v1422
    %v2347 = vpack.c.b16 %v1425, %v1423
    %v2348 = vpack.c.b16 %v1428, %v1426
    %v2349 = vpack.c.b16 %v1429, %v1427
    %v2350 = vpack.c.b16 %v1432, %v1430
    %v2351 = vpack.c.b16 %v1433, %v1431
    %v2352 = vpack.c.b16 %v1436, %v1434
    %v2353 = vpack.c.b16 %v1437, %v1435
    %v2354 = vpack.c.b16 %v1440, %v1438
    %v2355 = vpack.c.b16 %v1441, %v1439
    %v2356 = vpack.c.b16 %v1444, %v1442
    %v2357 = vpack.c.b16 %v1445, %v1443
    %v2358 = vpack.c.b16 %v1448, %v1446
    %v2359 = vpack.c.b16 %v1449, %v1447
    %v2360 = vpack.c.b16 %v1452, %v1450
    %v2361 = vpack.c.b16 %v1453, %v1451
    %v2362 = vpack.c.b16 %v1456, %v1454
    %v2363 = vpack.c.b16 %v1457, %v1455
    %v2364 = vpack.c.b16 %v1460, %v1458
    %v2365 = vpack.c.b16 %v1461, %v1459
    %v2366 = vpack.c.b16 %v1464, %v1462
    %v2367 = vpack.c.b16 %v1465, %v1463
    %v2368 = vpack.c.b16 %v1468, %v1466
    %v2369 = vpack.c.b16 %v1469, %v1467
    %v2370 = vpack.c.b16 %v1472, %v1470
    %v2371 = vpack.c.b16 %v1473, %v1471
    %v2372 = vpack.c.b16 %v1476, %v1474
    %v2373 = vpack.c.b16 %v1477, %v1475
    %v2374 = vpack.c.b16 %v1480, %v1478
    %v2375 = vpack.c.b16 %v1481, %v1479
    %v2376 = vpack.c.b16 %v1484, %v1482
    %v2377 = vpack.c.b16 %v1485, %v1483
    %v2378 = vpack.c.b16 %v1488, %v1486
    %v2379 = vpack.c.b16 %v1489, %v1487
    %v2380 = vpack.c.b16 %v1492, %v1490
    %v2381 = vpack.c.b16 %v1493, %v1491
    %v2382 = vpack.c.b16 %v1496, %v1494
    %v2383 = vpack.c.b16 %v1497, %v1495
    %v2384 = vpack.c.b16 %v1500, %v1498
    %v2385 = vpack.c.b16 %v1501, %v1499
    %v2386 = vpack.c.b16 %v1504, %v1502
    %v2387 = vpack.c.b16 %v1505, %v1503
    %v2388 = vpack.c.b16 %v1508, %v1506
    %v2389 = vpack.c.b16 %v1509, %v1507
    %v2390 = vpack.c.b16 %v1512, %v1510
    %v2391 = vpack.c.b16 %v1513, %v1511
    %v2392 = vpack.c.b16 %v1516, %v1514
    %v2393 = vpack.c.b16 %v1517, %v1515
    %v2394 = vpack.c.b16 %v1520, %v1518
    %v2395 = vpack.c.b16 %v1521, %v1519
    %v2396 = vpack.c.b16 %v1524, %v1522
    %v2397 = vpack.c.b16 %v1525, %v1523
    %v2398 = vpack.c.b16 %v1528, %v1526
    %v2399 = vpack.c.b16 %v1529, %v1527
    %v2400 = vpack.c.b16 %v1532, %v1530
    %v2401 = vpack.c.b16 %v1533, %v1531
    %v2402 = vpack.c.b16 %v1536, %v1534
    %v2403 = vpack.c.b16 %v1537, %v1535
    %v2404 = vpack.c.b16 %v1540, %v1538
    %v2405 = vpack.c.b16 %v1541, %v1539
    %v2406 = vpack.c.b16 %v1544, %v1542
    %v2407 = vpack.c.b16 %v1545, %v1543
    %v2408 = vpack.c.b16 %v1548, %v1546
    %v2409 = vpack.c.b16 %v1549, %v1547
    %v2410 = vpack.c.b16 %v1552, %v1550
    %v2411 = vpack.c.b16 %v1553, %v1551
    %v2412 = vpack.c.b16 %v1556, %v1554
    %v2413 = vpack.c.b16 %v1557, %v1555
    %v2414 = vpack.c.b16 %v1560, %v1558
    %v2415 = vpack.c.b16 %v1561, %v1559
    %v2416 = vpack.c.b16 %v1564, %v1562
    %v2417 = vpack.c.b16 %v1565, %v1563
    %v2418 = vpack.c.b16 %v1568, %v1566
    %v2419 = vpack.c.b16 %v1569, %v1567
    %v2420 = vpack.c.b16 %v1572, %v1570
    %v2421 = vpack.c.b16 %v1573, %v1571
    %v2422 = vpack.c.b16 %v1576, %v1574
    %v2423 = vpack.c.b16 %v1577, %v1575
    %v2424 = vpack.c.b16 %v1580, %v1578
    %v2425 = vpack.c.b16 %v1581, %v1579
    %v2426 = vpack.c.b16 %v1584, %v1582
    %v2427 = vpack.c.b16 %v1585, %v1583
    %v2428 = vpack.c.b16 %v1588, %v1586
    %v2429 = vpack.c.b16 %v1589, %v1587
    %v2430 = vpack.c.b16 %v1592, %v1590
    %v2431 = vpack.c.b16 %v1593, %v1591
    %v2432 = vpack.c.b16 %v1596, %v1594
    %v2433 = vpack.c.b16 %v1597, %v1595
    %v2434 = vpack.c.b16 %v1600, %v1598
    %v2435 = vpack.c.b16 %v1601, %v1599
    %v2436 = vpack.c.b16 %v1604, %v1602
    %v2437 = vpack.c.b16 %v1605, %v1603
    %v2438 = vpack.c.b16 %v1608, %v1606
    %v2439 = vpack.c.b16 %v1609, %v1607
    %v2440 = vpack.c.b16 %v1612, %v1610
    %v2441 = vpack.c.b16 %v1613, %v1611
    %v2442 = vpack.c.b16 %v1616, %v1614
    %v2443 = vpack.c.b16 %v1617, %v1615
    %v2444 = vpack.c.b16 %v1620, %v1618
    %v2445 = vpack.c.b16 %v1621, %v1619
    %v2446 = vpack.c.b16 %v1624, %v1622
    %v2447 = vpack.c.b16 %v1625, %v1623
    %v2448 = vpack.c.b16 %v1628, %v1626
    %v2449 = vpack.c.b16 %v1629, %v1627
    %v2450 = vpack.c.b16 %v1632, %v1630
    %v2451 = vpack.c.b16 %v1633, %v1631
    %v2452 = vpack.c.b16 %v1636, %v1634
    %v2453 = vpack.c.b16 %v1637, %v1635
    %v2454 = vpack.c.b16 %v1640, %v1638
    %v2455 = vpack.c.b16 %v1641, %v1639
    %v2456 = vpack.c.b16 %v1644, %v1642
    %v2457 = vpack.c.b16 %v1645, %v1643
    %v2458 = vpack.c.b16 %v1648, %v1646
    %v2459 = vpack.c.b16 %v1649, %v1647
    %v2460 = vpack.c.b16 %v1652, %v1650
    %v2461 = vpack.c.b16 %v1653, %v1651
    %v2462 = vpack.c.b16 %v1656, %v1654
    %v2463 = vpack.c.b16 %v1657, %v1655
    %v2464 = vpack.c.b16 %v1660, %v1658
    %v2465 = vpack.c.b16 %v1661, %v1659
    %v2466 = vpack.c.b16 %v1664, %v1662
    %v2467 = vpack.c.b16 %v1665, %v1663
    %v2468 = vpack.c.b16 %v1668, %v1666
    %v2469 = vpack.c.b16 %v1669, %v1667
    %v2470 = vpack.c.b16 %v1672, %v1670
    %v2471 = vpack.c.b16 %v1673, %v1671
    %v2472 = vpack.c.b16 %v1676, %v1674
    %v2473 = vpack.c.b16 %v1677, %v1675
    %v2474 = vpack.c.b16 %v1680, %v1678
    %v2475 = vpack.c.b16 %v1681, %v1679
    %v2476 = vpack.c.b16 %v1684, %v1682
    %v2477 = vpack.c.b16 %v1685, %v1683
    %v2478 = vpack.c.b16 %v1688, %v1686
    %v2479 = vpack.c.b16 %v1689, %v1687
    %v2480 = vpack.c.b16 %v1692, %v1690
    %v2481 = vpack.c.b16 %v1693, %v1691
    %v2482 = vpack.c.b16 %v1696, %v1694
    %v2483 = vpack.c.b16 %v1697, %v1695
    %v2484 = vpack.c.b16 %v1700, %v1698
    %v2485 = vpack.c.b16 %v1701, %v1699
    %v2486 = vpack.c.b16 %v1704, %v1702
    %v2487 = vpack.c.b16 %v1705, %v1703
    %v2488 = vpack.c.b16 %v1708, %v1706
    %v2489 = vpack.c.b16 %v1709, %v1707
    %v2490 = vpack.c.b16 %v1712, %v1710
    %v2491 = vpack.c.b16 %v1713, %v1711
    %v2492 = vpack.c.b16 %v1716, %v1714
    %v2493 = vpack.c.b16 %v1717, %v1715
    %v2494 = vpack.c.b16 %v1720, %v1718
    %v2495 = vpack.c.b16 %v1721, %v1719
    %v2496 = vpack.c.b16 %v1724, %v1722
    %v2497 = vpack.c.b16 %v1725, %v1723
    %v2498 = vpack.c.b16 %v1728, %v1726
    %v2499 = vpack.c.b16 %v1729, %v1727
    %v2500 = vpack.c.b16 %v1732, %v1730
    %v2501 = vpack.c.b16 %v1733, %v1731
    %v2502 = vpack.c.b16 %v1736, %v1734
    %v2503 = vpack.c.b16 %v1737, %v1735
    %v2504 = vpack.c.b16 %v1740, %v1738
    %v2505 = vpack.c.b16 %v1741, %v1739
    %v2506 = vpack.c.b16 %v1744, %v1742
    %v2507 = vpack.c.b16 %v1745, %v1743
    %v2508 = vpack.c.b16 %v1748, %v1746
    %v2509 = vpack.c.b16 %v1749, %v1747
    %v2510 = vpack.c.b16 %v1752, %v1750
    %v2511 = vpack.c.b16 %v1753, %v1751
    %v2512 = vpack.c.b16 %v1756, %v1754
    %v2513 = vpack.c.b16 %v1757, %v1755
    %v2514 = vpack.c.b16 %v1760, %v1758
    %v2515 = vpack.c.b16 %v1761, %v1759
    %v2516 = vpack.c.b16 %v1764, %v1762
    %v2517 = vpack.c.b16 %v1765, %v1763
    %v2518 = vpack.c.b16 %v1768, %v1766
    %v2519 = vpack.c.b16 %v1769, %v1767
    %v2520 = vpack.c.b16 %v1772, %v1770
    %v2521 = vpack.c.b16 %v1773, %v1771
    %v2522 = vpack.c.b16 %v1776, %v1774
    %v2523 = vpack.c.b16 %v1777, %v1775
    %v2524 = vpack.c.b16 %v1780, %v1778
    %v2525 = vpack.c.b16 %v1781, %v1779
    %v2526 = vpack.c.b16 %v1784, %v1782
    %v2527 = vpack.c.b16 %v1785, %v1783
    %v2528 = vpack.c.b16 %v1788, %v1786
    %v2529 = vpack.c.b16 %v1789, %v1787
    %v2530 = vpack.c.b16 %v1792, %v1790
    %v2531 = vpack.c.b16 %v1793, %v1791
    %v2532 = vpack.c.b16 %v1796, %v1794
    %v2533 = vpack.c.b16 %v1797, %v1795
    %v2534 = vpack.c.b16 %v1800, %v1798
    %v2535 = vpack.c.b16 %v1801, %v1799
    %v2536 = vpack.c.b16 %v1804, %v1802
    %v2537 = vpack.c.b16 %v1805, %v1803
    %v2538 = vpack.c.b16 %v1808, %v1806
    %v2539 = vpack.c.b16 %v1809, %v1807
    %v2540 = vpack.c.b16 %v1812, %v1810
    %v2541 = vpack.c.b16 %v1813, %v1811
    %v2542 = vpack.c.b16 %v1816, %v1814
    %v2543 = vpack.c.b16 %v1817, %v1815
    %v2544 = vpack.c.b16 %v1820, %v1818
    %v2545 = vpack.c.b16 %v1821, %v1819
    %v2546 = vpack.c.b16 %v1824, %v1822
    %v2547 = vpack.c.b16 %v1825, %v1823
    %v2548 = vpack.c.b16 %v1828, %v1826
    %v2549 = vpack.c.b16 %v1829, %v1827
    %v2550 = vpack.c.b16 %v1832, %v1830
    %v2551 = vpack.c.b16 %v1833, %v1831
    %v2552 = vpack.c.b16 %v1836, %v1834
    %v2553 = vpack.c.b16 %v1837, %v1835
    %v2554 = vpack.c.b16 %v1840, %v1838
    %v2555 = vpack.c.b16 %v1841, %v1839
    %v2556 = vpack.c.b16 %v1844, %v1842
    %v2557 = vpack.c.b16 %v1845, %v1843
    %v2558 = vpack.c.b16 %v1848, %v1846
    %v2559 = vpack.c.b16 %v1849, %v1847
    %v2560 = vpack.c.b16 %v1852, %v1850
    %v2561 = vpack.c.b16 %v1853, %v1851
    %v2562 = vpack.c.b16 %v1856, %v1854
    %v2563 = vpack.c.b16 %v1857, %v1855
    %v2564 = vpack.c.b16 %v1860, %v1858
    %v2565 = vpack.c.b16 %v1861, %v1859
    %v2566 = vpack.c.b16 %v1864, %v1862
    %v2567 = vpack.c.b16 %v1865, %v1863
    %v2568 = vpack.c.b16 %v1868, %v1866
    %v2569 = vpack.c.b16 %v1869, %v1867
    %v2570 = vpack.c.b16 %v1872, %v1870
    %v2571 = vpack.c.b16 %v1873, %v1871
    %v2572 = vpack.c.b16 %v1876, %v1874
    %v2573 = vpack.c.b16 %v1877, %v1875
    %v2574 = vpack.c.b16 %v1880, %v1878
    %v2575 = vpack.c.b16 %v1881, %v1879
    %v2576 = vpack.c.b16 %v1884, %v1882
    %v2577 = vpack.c.b16 %v1885, %v1883
    %v2578 = vpack.c.b16 %v1888, %v1886
    %v2579 = vpack.c.b16 %v1889, %v1887
    %v2580 = vpack.c.b16 %v1892, %v1890
    %v2581 = vpack.c.b16 %v1893, %v1891
    %v2582 = vpack.c.b16 %v1896, %v1894
    %v2583 = vpack.c.b16 %v1897, %v1895
    %v2584 = vpack.c.b16 %v1900, %v1898
    %v2585 = vpack.c.b16 %v1901, %v1899
    %v2586 = vpack.c.b16 %v1904, %v1902
    %v2587 = vpack.c.b16 %v1905, %v1903
    %v2588 = vpack.c.b16 %v1908, %v1906
    %v2589 = vpack.c.b16 %v1909, %v1907
    %v2590 = vpack.c.b16 %v1912, %v1910
    %v2591 = vpack.c.b16 %v1913, %v1911
    %v2592 = vpack.c.b16 %v1916, %v1914
    %v2593 = vpack.c.b16 %v1917, %v1915
    %v2594 = vpack.c.b16 %v1920, %v1918
    %v2595 = vpack.c.b16 %v1921, %v1919
    %v2596 = vpack.c.b16 %v1924, %v1922
    %v2597 = vpack.c.b16 %v1925, %v1923
    %v2598 = vpack.c.b16 %v1928, %v1926
    %v2599 = vpack.c.b16 %v1929, %v1927
    %v2600 = vpack.c.b16 %v1932, %v1930
    %v2601 = vpack.c.b16 %v1933, %v1931
    %v2602 = vpack.c.b16 %v1936, %v1934
    %v2603 = vpack.c.b16 %v1937, %v1935
    %v2604 = vpack.c.b16 %v1940, %v1938
    %v2605 = vpack.c.b16 %v1941, %v1939
    %v2606 = vpack.c.b16 %v1944, %v1942
    %v2607 = vpack.c.b16 %v1945, %v1943
    %v2608 = vpack.c.b16 %v1948, %v1946
    %v2609 = vpack.c.b16 %v1949, %v1947
    %v2610 = vpack.c.b16 %v1952, %v1950
    %v2611 = vpack.c.b16 %v1953, %v1951
    %v2612 = vpack.c.b16 %v1956, %v1954
    %v2613 = vpack.c.b16 %v1957, %v1955
    %v2614 = vpack.c.b16 %v1960, %v1958
    %v2615 = vpack.c.b16 %v1961, %v1959
    %v2616 = vpack.c.b16 %v1964, %v1962
    %v2617 = vpack.c.b16 %v1965, %v1963
    %v2618 = vpack.c.b16 %v1968, %v1966
    %v2619 = vpack.c.b16 %v1969, %v1967
    %v2620 = vpack.c.b16 %v1972, %v1970
    %v2621 = vpack.c.b16 %v1973, %v1971
    %v2622 = vpack.c.b16 %v1976, %v1974
    %v2623 = vpack.c.b16 %v1977, %v1975
    %v2624 = vpack.c.b16 %v1980, %v1978
    %v2625 = vpack.c.b16 %v1981, %v1979
    %v2626 = vpack.c.b16 %v1984, %v1982
    %v2627 = vpack.c.b16 %v1985, %v1983
    %v2628 = vpack.c.b16 %v1988, %v1986
    %v2629 = vpack.c.b16 %v1989, %v1987
    %v2630 = vpack.c.b16 %v1992, %v1990
    %v2631 = vpack.c.b16 %v1993, %v1991
    %v2632 = vpack.c.b16 %v1996, %v1994
    %v2633 = vpack.c.b16 %v1997, %v1995
    %v2634 = vpack.c.b16 %v2000, %v1998
    %v2635 = vpack.c.b16 %v2001, %v1999
    %v2636 = vpack.c.b16 %v2004, %v2002
    %v2637 = vpack.c.b16 %v2005, %v2003
    %v2638 = vpack.c.b16 %v2008, %v2006
    %v2639 = vpack.c.b16 %v2009, %v2007
    %v2640 = vpack.c.b16 %v2012, %v2010
    %v2641 = vpack.c.b16 %v2013, %v2011
    %v2642 = vpack.c.b16 %v2016, %v2014
    %v2643 = vpack.c.b16 %v2017, %v2015
    %v2644 = vpack.c.b16 %v2020, %v2018
    %v2645 = vpack.c.b16 %v2021, %v2019
    %v2646 = vpack.c.b16 %v2024, %v2022
    %v2647 = vpack.c.b16 %v2025, %v2023
    %v2648 = vpack.c.b16 %v2028, %v2026
    %v2649 = vpack.c.b16 %v2029, %v2027
    %v2650 = vpack.c.b16 %v2032, %v2030
    %v2651 = vpack.c.b16 %v2033, %v2031
    %v2652 = vpack.c.b16 %v2036, %v2034
    %v2653 = vpack.c.b16 %v2037, %v2035
    %v2654 = vpack.c.b16 %v2040, %v2038
    %v2655 = vpack.c.b16 %v2041, %v2039
    %v2656 = vpack.c.b16 %v2044, %v2042
    %v2657 = vpack.c.b16 %v2045, %v2043
    %v2658 = vpack.c.b16 %v2048, %v2046
    %v2659 = vpack.c.b16 %v2049, %v2047
    %v2660 = vpack.c.b16 %v2052, %v2050
    %v2661 = vpack.c.b16 %v2053, %v2051
    %v2662 = vpack.c.b16 %v2056, %v2054
    %v2663 = vpack.c.b16 %v2057, %v2055
    %v2664 = vpack.c.b16 %v2060, %v2058
    %v2665 = vpack.c.b16 %v2061, %v2059
    %v2666 = vpack.c.b16 %v2064, %v2062
    %v2667 = vpack.c.b16 %v2065, %v2063
    %v2668 = vpack.c.b16 %v2068, %v2066
    %v2669 = vpack.c.b16 %v2069, %v2067
    %v2670 = vpack.c.b16 %v2072, %v2070
    %v2671 = vpack.c.b16 %v2073, %v2071
    %v2672 = vpack.c.b16 %v2076, %v2074
    %v2673 = vpack.c.b16 %v2077, %v2075
    %v2674 = vpack.c.b16 %v2080, %v2078
    %v2675 = vpack.c.b16 %v2081, %v2079
    %v2676 = vpack.c.b16 %v2084, %v2082
    %v2677 = vpack.c.b16 %v2085, %v2083
    %v2678 = vpack.c.b16 %v2088, %v2086
    %v2679 = vpack.c.b16 %v2089, %v2087
    %v2680 = vpack.c.b16 %v2092, %v2090
    %v2681 = vpack.c.b16 %v2093, %v2091
    %v2682 = vpack.c.b16 %v2096, %v2094
    %v2683 = vpack.c.b16 %v2097, %v2095
    %v2684 = vpack.c.b16 %v2100, %v2098
    %v2685 = vpack.c.b16 %v2101, %v2099
    %v2686 = vpack.c.b16 %v2104, %v2102
    %v2687 = vpack.c.b16 %v2105, %v2103
    %v2688 = vpack.c.b16 %v2108, %v2106
    %v2689 = vpack.c.b16 %v2109, %v2107
    %v2690 = vpack.c.b16 %v2112, %v2110
    %v2691 = vpack.c.b16 %v2113, %v2111
    %v2692 = vpack.c.b16 %v2116, %v2114
    %v2693 = vpack.c.b16 %v2117, %v2115
    %v2694 = vpack.c.b16 %v2120, %v2118
    %v2695 = vpack.c.b16 %v2121, %v2119
    %v2696 = vpack.c.b16 %v2124, %v2122
    %v2697 = vpack.c.b16 %v2125, %v2123
    %v2698 = vpack.c.b16 %v2128, %v2126
    %v2699 = vpack.c.b16 %v2129, %v2127
    %v2700 = vpack.c.b16 %v2132, %v2130
    %v2701 = vpack.c.b16 %v2133, %v2131
    %v2702 = vpack.c.b16 %v2136, %v2134
    %v2703 = vpack.c.b16 %v2137, %v2135
    %v2704 = vpack.c.b16 %v2140, %v2138
    %v2705 = vpack.c.b16 %v2141, %v2139
    %v2706 = vpack.c.b16 %v2144, %v2142
    %v2707 = vpack.c.b16 %v2145, %v2143
    %v2708 = vpack.c.b16 %v2148, %v2146
    %v2709 = vpack.c.b16 %v2149, %v2147
    %v2710 = vpack.c.b16 %v2152, %v2150
    %v2711 = vpack.c.b16 %v2153, %v2151
    %v2712 = vpack.c.b16 %v2156, %v2154
    %v2713 = vpack.c.b16 %v2157, %v2155
    %v2714 = vpack.c.b16 %v2160, %v2158
    %v2715 = vpack.c.b16 %v2161, %v2159
    %v2716 = vpack.c.b16 %v2164, %v2162
    %v2717 = vpack.c.b16 %v2165, %v2163
    %v2718 = vpack.c.b16 %v2168, %v2166
    %v2719 = vpack.c.b16 %v2169, %v2167
    %v2720 = vpack.c.b16 %v2172, %v2170
    %v2721 = vpack.c.b16 %v2173, %v2171
    %v2722 = vpack.c.b16 %v2176, %v2174
    %v2723 = vpack.c.b16 %v2177, %v2175
    %v2724 = vpack.c.b16 %v2180, %v2178
    %v2725 = vpack.c.b16 %v2181, %v2179
    %v2726 = vpack.c.b16 %v2184, %v2182
    %v2727 = vpack.c.b16 %v2185, %v2183
    %v2728 = vpack.c.b16 %v2188, %v2186
    %v2729 = vpack.c.b16 %v2189, %v2187
    %v2730 = vpack.c.b16 %v2192, %v2190
    %v2731 = vpack.c.b16 %v2193, %v2191
    %v2732 = vpack.c.b16 %v2196, %v2194
    %v2733 = vpack.c.b16 %v2197, %v2195
    %v2734 = vpack.c.b16 %v2200, %v2198
    %v2735 = vpack.c.b16 %v2201, %v2199
    %v2736 = vpack.c.b16 %v2204, %v2202
    %v2737 = vpack.c.b16 %v2205, %v2203
    %v2738 = vpack.c.b16 %v2208, %v2206
    %v2739 = vpack.c.b16 %v2209, %v2207
    %v2740 = vpack.c.b16 %v2212, %v2210
    %v2741 = vpack.c.b16 %v2213, %v2211
    %v2742 = vpack.c.b16 %v2216, %v2214
    %v2743 = vpack.c.b16 %v2217, %v2215
    %v2744 = vpack.c.b16 %v2220, %v2218
    %v2745 = vpack.c.b16 %v2221, %v2219
    %v2746 = vpack.c.b16 %v2224, %v2222
    %v2747 = vpack.c.b16 %v2225, %v2223
    %v2748 = vpack.c.b16 %v2228, %v2226
    %v2749 = vpack.c.b16 %v2229, %v2227
    %v2750 = vpack.c.b16 %v2232, %v2230
    %v2751 = vpack.c.b16 %v2233, %v2231
    %v2752 = vpack.c.b16 %v2236, %v2234
    %v2753 = vpack.c.b16 %v2237, %v2235
    %v2754 = vpack.c.b16 %v2240, %v2238
    %v2755 = vpack.c.b16 %v2241, %v2239
    %v2756 = vpack.c.b16 %v2244, %v2242
    %v2757 = vpack.c.b16 %v2245, %v2243
    %3270 = vmatpush.bf16.msra.mxu0 %v2260
    %3271 = vmatpush.bf16.msra.mxu0 %v2258
    %3272 = vmatpush.bf16.msra.mxu0 %v2256
    %3273 = vmatpush.bf16.msra.mxu0 %v2254
    %3274 = vmatpush.bf16.msra.mxu0 %v2252
    %3275 = vmatpush.bf16.msra.mxu0 %v2250
    %3276 = vmatpush.bf16.msra.mxu0 %v2248
    %3277 = vmatpush.bf16.msra.mxu0 %v2246
    %3278 = vmatmul.bf16.gmra.mxu0 %v160
    %v3279 = vpop.f32.mrf.mxu0
    %v3280 = vadd.f32 %v706, %v3279
    %v3281 = vpop.f32.mrf.mxu0
    %3282 = vdwg.mxu0
    %3283 = vmatpush.bf16.msra.mxu0 %v2276
    %3284 = vmatpush.bf16.msra.mxu0 %v2274
    %3285 = vmatpush.bf16.msra.mxu0 %v2272
    %3286 = vmatpush.bf16.msra.mxu0 %v2270
    %3287 = vmatpush.bf16.msra.mxu0 %v2268
    %3288 = vmatpush.bf16.msra.mxu0 %v2266
    %3289 = vmatpush.bf16.msra.mxu0 %v2264
    %3290 = vmatpush.bf16.msra.mxu0 %v2262
    %3291 = vmatmul.bf16.gmra.mxu0 %v161
    %v3292 = vpop.f32.mrf.mxu0
    %v3293 = vadd.f32 %v3280, %v3292
    %v3294 = vpop.f32.mrf.mxu0
    %3295 = vdwg.mxu0
    %3296 = vmatpush.bf16.msra.mxu0 %v2292
    %3297 = vmatpush.bf16.msra.mxu0 %v2290
    %3298 = vmatpush.bf16.msra.mxu0 %v2288
    %3299 = vmatpush.bf16.msra.mxu0 %v2286
    %3300 = vmatpush.bf16.msra.mxu0 %v2284
    %3301 = vmatpush.bf16.msra.mxu0 %v2282
    %3302 = vmatpush.bf16.msra.mxu0 %v2280
    %3303 = vmatpush.bf16.msra.mxu0 %v2278
    %3304 = vmatmul.bf16.gmra.mxu0 %v162
    %v3305 = vpop.f32.mrf.mxu0
    %v3306 = vadd.f32 %v3293, %v3305
    %v3307 = vpop.f32.mrf.mxu0
    %3308 = vdwg.mxu0
    %3309 = vmatpush.bf16.msra.mxu0 %v2308
    %3310 = vmatpush.bf16.msra.mxu0 %v2306
    %3311 = vmatpush.bf16.msra.mxu0 %v2304
    %3312 = vmatpush.bf16.msra.mxu0 %v2302
    %3313 = vmatpush.bf16.msra.mxu0 %v2300
    %3314 = vmatpush.bf16.msra.mxu0 %v2298
    %3315 = vmatpush.bf16.msra.mxu0 %v2296
    %3316 = vmatpush.bf16.msra.mxu0 %v2294
    %3317 = vmatmul.bf16.gmra.mxu0 %v163
    %v3318 = vpop.f32.mrf.mxu0
    %v3319 = vadd.f32 %v3306, %v3318
    %v3320 = vpop.f32.mrf.mxu0
    %3321 = vdwg.mxu0
    %3322 = vmatpush.bf16.msra.mxu0 %v2324
    %3323 = vmatpush.bf16.msra.mxu0 %v2322
    %3324 = vmatpush.bf16.msra.mxu0 %v2320
    %3325 = vmatpush.bf16.msra.mxu0 %v2318
    %3326 = vmatpush.bf16.msra.mxu0 %v2316
    %3327 = vmatpush.bf16.msra.mxu0 %v2314
    %3328 = vmatpush.bf16.msra.mxu0 %v2312
    %3329 = vmatpush.bf16.msra.mxu0 %v2310
    %3330 = vmatmul.bf16.gmra.mxu0 %v164
    %v3331 = vpop.f32.mrf.mxu0
    %v3332 = vadd.f32 %v3319, %v3331
    %v3333 = vpop.f32.mrf.mxu0
    %3334 = vdwg.mxu0
    %3335 = vmatpush.bf16.msra.mxu0 %v2340
    %3336 = vmatpush.bf16.msra.mxu0 %v2338
    %3337 = vmatpush.bf16.msra.mxu0 %v2336
    %3338 = vmatpush.bf16.msra.mxu0 %v2334
    %3339 = vmatpush.bf16.msra.mxu0 %v2332
    %3340 = vmatpush.bf16.msra.mxu0 %v2330
    %3341 = vmatpush.bf16.msra.mxu0 %v2328
    %3342 = vmatpush.bf16.msra.mxu0 %v2326
    %3343 = vmatmul.bf16.gmra.mxu0 %v165
    %v3344 = vpop.f32.mrf.mxu0
    %v3345 = vadd.f32 %v3332, %v3344
    %v3346 = vpop.f32.mrf.mxu0
    %3347 = vdwg.mxu0
    %3348 = vmatpush.bf16.msra.mxu0 %v2356
    %3349 = vmatpush.bf16.msra.mxu0 %v2354
    %3350 = vmatpush.bf16.msra.mxu0 %v2352
    %3351 = vmatpush.bf16.msra.mxu0 %v2350
    %3352 = vmatpush.bf16.msra.mxu0 %v2348
    %3353 = vmatpush.bf16.msra.mxu0 %v2346
    %3354 = vmatpush.bf16.msra.mxu0 %v2344
    %3355 = vmatpush.bf16.msra.mxu0 %v2342
    %3356 = vmatmul.bf16.gmra.mxu0 %v166
    %v3357 = vpop.f32.mrf.mxu0
    %v3358 = vadd.f32 %v3345, %v3357
    %v3359 = vpop.f32.mrf.mxu0
    %3360 = vdwg.mxu0
    %3361 = vmatpush.bf16.msra.mxu0 %v2372
    %3362 = vmatpush.bf16.msra.mxu0 %v2370
    %3363 = vmatpush.bf16.msra.mxu0 %v2368
    %3364 = vmatpush.bf16.msra.mxu0 %v2366
    %3365 = vmatpush.bf16.msra.mxu0 %v2364
    %3366 = vmatpush.bf16.msra.mxu0 %v2362
    %3367 = vmatpush.bf16.msra.mxu0 %v2360
    %3368 = vmatpush.bf16.msra.mxu0 %v2358
    %3369 = vmatmul.bf16.gmra.mxu0 %v167
    %v3370 = vpop.f32.mrf.mxu0
    %v3371 = vadd.f32 %v3358, %v3370
    %v3372 = vpop.f32.mrf.mxu0
    %3373 = vdwg.mxu0
    %3374 = vmatpush.bf16.msra.mxu0 %v2388
    %3375 = vmatpush.bf16.msra.mxu0 %v2386
    %3376 = vmatpush.bf16.msra.mxu0 %v2384
    %3377 = vmatpush.bf16.msra.mxu0 %v2382
    %3378 = vmatpush.bf16.msra.mxu0 %v2380
    %3379 = vmatpush.bf16.msra.mxu0 %v2378
    %3380 = vmatpush.bf16.msra.mxu0 %v2376
    %3381 = vmatpush.bf16.msra.mxu0 %v2374
    %3382 = vmatmul.bf16.gmra.mxu0 %v168
    %v3383 = vpop.f32.mrf.mxu0
    %v3384 = vadd.f32 %v3371, %v3383
    %v3385 = vpop.f32.mrf.mxu0
    %3386 = vdwg.mxu0
    %3387 = vmatpush.bf16.msra.mxu0 %v2404
    %3388 = vmatpush.bf16.msra.mxu0 %v2402
    %3389 = vmatpush.bf16.msra.mxu0 %v2400
    %3390 = vmatpush.bf16.msra.mxu0 %v2398
    %3391 = vmatpush.bf16.msra.mxu0 %v2396
    %3392 = vmatpush.bf16.msra.mxu0 %v2394
    %3393 = vmatpush.bf16.msra.mxu0 %v2392
    %3394 = vmatpush.bf16.msra.mxu0 %v2390
    %3395 = vmatmul.bf16.gmra.mxu0 %v169
    %v3396 = vpop.f32.mrf.mxu0
    %v3397 = vadd.f32 %v3384, %v3396
    %v3398 = vpop.f32.mrf.mxu0
    %3399 = vdwg.mxu0
    %3400 = vmatpush.bf16.msra.mxu0 %v2420
    %3401 = vmatpush.bf16.msra.mxu0 %v2418
    %3402 = vmatpush.bf16.msra.mxu0 %v2416
    %3403 = vmatpush.bf16.msra.mxu0 %v2414
    %3404 = vmatpush.bf16.msra.mxu0 %v2412
    %3405 = vmatpush.bf16.msra.mxu0 %v2410
    %3406 = vmatpush.bf16.msra.mxu0 %v2408
    %3407 = vmatpush.bf16.msra.mxu0 %v2406
    %3408 = vmatmul.bf16.gmra.mxu0 %v170
    %v3409 = vpop.f32.mrf.mxu0
    %v3410 = vadd.f32 %v3397, %v3409
    %v3411 = vpop.f32.mrf.mxu0
    %3412 = vdwg.mxu0
    %3413 = vmatpush.bf16.msra.mxu0 %v2436
    %3414 = vmatpush.bf16.msra.mxu0 %v2434
    %3415 = vmatpush.bf16.msra.mxu0 %v2432
    %3416 = vmatpush.bf16.msra.mxu0 %v2430
    %3417 = vmatpush.bf16.msra.mxu0 %v2428
    %3418 = vmatpush.bf16.msra.mxu0 %v2426
    %3419 = vmatpush.bf16.msra.mxu0 %v2424
    %3420 = vmatpush.bf16.msra.mxu0 %v2422
    %3421 = vmatmul.bf16.gmra.mxu0 %v171
    %v3422 = vpop.f32.mrf.mxu0
    %v3423 = vadd.f32 %v3410, %v3422
    %v3424 = vpop.f32.mrf.mxu0
    %3425 = vdwg.mxu0
    %3426 = vmatpush.bf16.msra.mxu0 %v2452
    %3427 = vmatpush.bf16.msra.mxu0 %v2450
    %3428 = vmatpush.bf16.msra.mxu0 %v2448
    %3429 = vmatpush.bf16.msra.mxu0 %v2446
    %3430 = vmatpush.bf16.msra.mxu0 %v2444
    %3431 = vmatpush.bf16.msra.mxu0 %v2442
    %3432 = vmatpush.bf16.msra.mxu0 %v2440
    %3433 = vmatpush.bf16.msra.mxu0 %v2438
    %3434 = vmatmul.bf16.gmra.mxu0 %v172
    %v3435 = vpop.f32.mrf.mxu0
    %v3436 = vadd.f32 %v3423, %v3435
    %v3437 = vpop.f32.mrf.mxu0
    %3438 = vdwg.mxu0
    %3439 = vmatpush.bf16.msra.mxu0 %v2468
    %3440 = vmatpush.bf16.msra.mxu0 %v2466
    %3441 = vmatpush.bf16.msra.mxu0 %v2464
    %3442 = vmatpush.bf16.msra.mxu0 %v2462
    %3443 = vmatpush.bf16.msra.mxu0 %v2460
    %3444 = vmatpush.bf16.msra.mxu0 %v2458
    %3445 = vmatpush.bf16.msra.mxu0 %v2456
    %3446 = vmatpush.bf16.msra.mxu0 %v2454
    %3447 = vmatmul.bf16.gmra.mxu0 %v173
    %v3448 = vpop.f32.mrf.mxu0
    %v3449 = vadd.f32 %v3436, %v3448
    %v3450 = vpop.f32.mrf.mxu0
    %3451 = vdwg.mxu0
    %3452 = vmatpush.bf16.msra.mxu0 %v2484
    %3453 = vmatpush.bf16.msra.mxu0 %v2482
    %3454 = vmatpush.bf16.msra.mxu0 %v2480
    %3455 = vmatpush.bf16.msra.mxu0 %v2478
    %3456 = vmatpush.bf16.msra.mxu0 %v2476
    %3457 = vmatpush.bf16.msra.mxu0 %v2474
    %3458 = vmatpush.bf16.msra.mxu0 %v2472
    %3459 = vmatpush.bf16.msra.mxu0 %v2470
    %3460 = vmatmul.bf16.gmra.mxu0 %v174
    %v3461 = vpop.f32.mrf.mxu0
    %v3462 = vadd.f32 %v3449, %v3461
    %v3463 = vpop.f32.mrf.mxu0
    %3464 = vdwg.mxu0
    %3465 = vmatpush.bf16.msra.mxu0 %v2500
    %3466 = vmatpush.bf16.msra.mxu0 %v2498
    %3467 = vmatpush.bf16.msra.mxu0 %v2496
    %3468 = vmatpush.bf16.msra.mxu0 %v2494
    %3469 = vmatpush.bf16.msra.mxu0 %v2492
    %3470 = vmatpush.bf16.msra.mxu0 %v2490
    %3471 = vmatpush.bf16.msra.mxu0 %v2488
    %3472 = vmatpush.bf16.msra.mxu0 %v2486
    %3473 = vmatmul.bf16.gmra.mxu0 %v175
    %v3474 = vpop.f32.mrf.mxu0
    %v3475 = vadd.f32 %v3462, %v3474
    %v3476 = vpop.f32.mrf.mxu0
    %3477 = vdwg.mxu0
    %3478 = vmatpush.bf16.msra.mxu0 %v2516
    %3479 = vmatpush.bf16.msra.mxu0 %v2514
    %3480 = vmatpush.bf16.msra.mxu0 %v2512
    %3481 = vmatpush.bf16.msra.mxu0 %v2510
    %3482 = vmatpush.bf16.msra.mxu0 %v2508
    %3483 = vmatpush.bf16.msra.mxu0 %v2506
    %3484 = vmatpush.bf16.msra.mxu0 %v2504
    %3485 = vmatpush.bf16.msra.mxu0 %v2502
    %3486 = vmatmul.bf16.gmra.mxu0 %v176
    %v3487 = vpop.f32.mrf.mxu0
    %v3488 = vadd.f32 %v3475, %v3487
    %v3489 = vpop.f32.mrf.mxu0
    %3490 = vdwg.mxu0
    %3491 = vmatpush.bf16.msra.mxu0 %v2532
    %3492 = vmatpush.bf16.msra.mxu0 %v2530
    %3493 = vmatpush.bf16.msra.mxu0 %v2528
    %3494 = vmatpush.bf16.msra.mxu0 %v2526
    %3495 = vmatpush.bf16.msra.mxu0 %v2524
    %3496 = vmatpush.bf16.msra.mxu0 %v2522
    %3497 = vmatpush.bf16.msra.mxu0 %v2520
    %3498 = vmatpush.bf16.msra.mxu0 %v2518
    %3499 = vmatmul.bf16.gmra.mxu0 %v177
    %v3500 = vpop.f32.mrf.mxu0
    %v3501 = vadd.f32 %v3488, %v3500
    %v3502 = vpop.f32.mrf.mxu0
    %3503 = vdwg.mxu0
    %3504 = vmatpush.bf16.msra.mxu0 %v2548
    %3505 = vmatpush.bf16.msra.mxu0 %v2546
    %3506 = vmatpush.bf16.msra.mxu0 %v2544
    %3507 = vmatpush.bf16.msra.mxu0 %v2542
    %3508 = vmatpush.bf16.msra.mxu0 %v2540
    %3509 = vmatpush.bf16.msra.mxu0 %v2538
    %3510 = vmatpush.bf16.msra.mxu0 %v2536
    %3511 = vmatpush.bf16.msra.mxu0 %v2534
    %3512 = vmatmul.bf16.gmra.mxu0 %v178
    %v3513 = vpop.f32.mrf.mxu0
    %v3514 = vadd.f32 %v3501, %v3513
    %v3515 = vpop.f32.mrf.mxu0
    %3516 = vdwg.mxu0
    %3517 = vmatpush.bf16.msra.mxu0 %v2564
    %3518 = vmatpush.bf16.msra.mxu0 %v2562
    %3519 = vmatpush.bf16.msra.mxu0 %v2560
    %3520 = vmatpush.bf16.msra.mxu0 %v2558
    %3521 = vmatpush.bf16.msra.mxu0 %v2556
    %3522 = vmatpush.bf16.msra.mxu0 %v2554
    %3523 = vmatpush.bf16.msra.mxu0 %v2552
    %3524 = vmatpush.bf16.msra.mxu0 %v2550
    %3525 = vmatmul.bf16.gmra.mxu0 %v179
    %v3526 = vpop.f32.mrf.mxu0
    %v3527 = vadd.f32 %v3514, %v3526
    %v3528 = vpop.f32.mrf.mxu0
    %3529 = vdwg.mxu0
    %3530 = vmatpush.bf16.msra.mxu0 %v2580
    %3531 = vmatpush.bf16.msra.mxu0 %v2578
    %3532 = vmatpush.bf16.msra.mxu0 %v2576
    %3533 = vmatpush.bf16.msra.mxu0 %v2574
    %3534 = vmatpush.bf16.msra.mxu0 %v2572
    %3535 = vmatpush.bf16.msra.mxu0 %v2570
    %3536 = vmatpush.bf16.msra.mxu0 %v2568
    %3537 = vmatpush.bf16.msra.mxu0 %v2566
    %3538 = vmatmul.bf16.gmra.mxu0 %v180
    %v3539 = vpop.f32.mrf.mxu0
    %v3540 = vadd.f32 %v3527, %v3539
    %v3541 = vpop.f32.mrf.mxu0
    %3542 = vdwg.mxu0
    %3543 = vmatpush.bf16.msra.mxu0 %v2596
    %3544 = vmatpush.bf16.msra.mxu0 %v2594
    %3545 = vmatpush.bf16.msra.mxu0 %v2592
    %3546 = vmatpush.bf16.msra.mxu0 %v2590
    %3547 = vmatpush.bf16.msra.mxu0 %v2588
    %3548 = vmatpush.bf16.msra.mxu0 %v2586
    %3549 = vmatpush.bf16.msra.mxu0 %v2584
    %3550 = vmatpush.bf16.msra.mxu0 %v2582
    %3551 = vmatmul.bf16.gmra.mxu0 %v181
    %v3552 = vpop.f32.mrf.mxu0
    %v3553 = vadd.f32 %v3540, %v3552
    %v3554 = vpop.f32.mrf.mxu0
    %3555 = vdwg.mxu0
    %3556 = vmatpush.bf16.msra.mxu0 %v2612
    %3557 = vmatpush.bf16.msra.mxu0 %v2610
    %3558 = vmatpush.bf16.msra.mxu0 %v2608
    %3559 = vmatpush.bf16.msra.mxu0 %v2606
    %3560 = vmatpush.bf16.msra.mxu0 %v2604
    %3561 = vmatpush.bf16.msra.mxu0 %v2602
    %3562 = vmatpush.bf16.msra.mxu0 %v2600
    %3563 = vmatpush.bf16.msra.mxu0 %v2598
    %3564 = vmatmul.bf16.gmra.mxu0 %v182
    %v3565 = vpop.f32.mrf.mxu0
    %v3566 = vadd.f32 %v3553, %v3565
    %v3567 = vpop.f32.mrf.mxu0
    %3568 = vdwg.mxu0
    %3569 = vmatpush.bf16.msra.mxu0 %v2628
    %3570 = vmatpush.bf16.msra.mxu0 %v2626
    %3571 = vmatpush.bf16.msra.mxu0 %v2624
    %3572 = vmatpush.bf16.msra.mxu0 %v2622
    %3573 = vmatpush.bf16.msra.mxu0 %v2620
    %3574 = vmatpush.bf16.msra.mxu0 %v2618
    %3575 = vmatpush.bf16.msra.mxu0 %v2616
    %3576 = vmatpush.bf16.msra.mxu0 %v2614
    %3577 = vmatmul.bf16.gmra.mxu0 %v183
    %v3578 = vpop.f32.mrf.mxu0
    %v3579 = vadd.f32 %v3566, %v3578
    %v3580 = vpop.f32.mrf.mxu0
    %3581 = vdwg.mxu0
    %3582 = vmatpush.bf16.msra.mxu0 %v2644
    %3583 = vmatpush.bf16.msra.mxu0 %v2642
    %3584 = vmatpush.bf16.msra.mxu0 %v2640
    %3585 = vmatpush.bf16.msra.mxu0 %v2638
    %3586 = vmatpush.bf16.msra.mxu0 %v2636
    %3587 = vmatpush.bf16.msra.mxu0 %v2634
    %3588 = vmatpush.bf16.msra.mxu0 %v2632
    %3589 = vmatpush.bf16.msra.mxu0 %v2630
    %3590 = vmatmul.bf16.gmra.mxu0 %v184
    %v3591 = vpop.f32.mrf.mxu0
    %v3592 = vadd.f32 %v3579, %v3591
    %v3593 = vpop.f32.mrf.mxu0
    %3594 = vdwg.mxu0
    %3595 = vmatpush.bf16.msra.mxu0 %v2660
    %3596 = vmatpush.bf16.msra.mxu0 %v2658
    %3597 = vmatpush.bf16.msra.mxu0 %v2656
    %3598 = vmatpush.bf16.msra.mxu0 %v2654
    %3599 = vmatpush.bf16.msra.mxu0 %v2652
    %3600 = vmatpush.bf16.msra.mxu0 %v2650
    %3601 = vmatpush.bf16.msra.mxu0 %v2648
    %3602 = vmatpush.bf16.msra.mxu0 %v2646
    %3603 = vmatmul.bf16.gmra.mxu0 %v185
    %v3604 = vpop.f32.mrf.mxu0
    %v3605 = vadd.f32 %v3592, %v3604
    %v3606 = vpop.f32.mrf.mxu0
    %3607 = vdwg.mxu0
    %3608 = vmatpush.bf16.msra.mxu0 %v2676
    %3609 = vmatpush.bf16.msra.mxu0 %v2674
    %3610 = vmatpush.bf16.msra.mxu0 %v2672
    %3611 = vmatpush.bf16.msra.mxu0 %v2670
    %3612 = vmatpush.bf16.msra.mxu0 %v2668
    %3613 = vmatpush.bf16.msra.mxu0 %v2666
    %3614 = vmatpush.bf16.msra.mxu0 %v2664
    %3615 = vmatpush.bf16.msra.mxu0 %v2662
    %3616 = vmatmul.bf16.gmra.mxu0 %v186
    %v3617 = vpop.f32.mrf.mxu0
    %v3618 = vadd.f32 %v3605, %v3617
    %v3619 = vpop.f32.mrf.mxu0
    %3620 = vdwg.mxu0
    %3621 = vmatpush.bf16.msra.mxu0 %v2692
    %3622 = vmatpush.bf16.msra.mxu0 %v2690
    %3623 = vmatpush.bf16.msra.mxu0 %v2688
    %3624 = vmatpush.bf16.msra.mxu0 %v2686
    %3625 = vmatpush.bf16.msra.mxu0 %v2684
    %3626 = vmatpush.bf16.msra.mxu0 %v2682
    %3627 = vmatpush.bf16.msra.mxu0 %v2680
    %3628 = vmatpush.bf16.msra.mxu0 %v2678
    %3629 = vmatmul.bf16.gmra.mxu0 %v187
    %v3630 = vpop.f32.mrf.mxu0
    %v3631 = vadd.f32 %v3618, %v3630
    %v3632 = vpop.f32.mrf.mxu0
    %3633 = vdwg.mxu0
    %3634 = vmatpush.bf16.msra.mxu0 %v2708
    %3635 = vmatpush.bf16.msra.mxu0 %v2706
    %3636 = vmatpush.bf16.msra.mxu0 %v2704
    %3637 = vmatpush.bf16.msra.mxu0 %v2702
    %3638 = vmatpush.bf16.msra.mxu0 %v2700
    %3639 = vmatpush.bf16.msra.mxu0 %v2698
    %3640 = vmatpush.bf16.msra.mxu0 %v2696
    %3641 = vmatpush.bf16.msra.mxu0 %v2694
    %3642 = vmatmul.bf16.gmra.mxu0 %v188
    %v3643 = vpop.f32.mrf.mxu0
    %v3644 = vadd.f32 %v3631, %v3643
    %v3645 = vpop.f32.mrf.mxu0
    %3646 = vdwg.mxu0
    %3647 = vmatpush.bf16.msra.mxu0 %v2724
    %3648 = vmatpush.bf16.msra.mxu0 %v2722
    %3649 = vmatpush.bf16.msra.mxu0 %v2720
    %3650 = vmatpush.bf16.msra.mxu0 %v2718
    %3651 = vmatpush.bf16.msra.mxu0 %v2716
    %3652 = vmatpush.bf16.msra.mxu0 %v2714
    %3653 = vmatpush.bf16.msra.mxu0 %v2712
    %3654 = vmatpush.bf16.msra.mxu0 %v2710
    %3655 = vmatmul.bf16.gmra.mxu0 %v189
    %v3656 = vpop.f32.mrf.mxu0
    %v3657 = vadd.f32 %v3644, %v3656
    %v3658 = vpop.f32.mrf.mxu0
    %3659 = vdwg.mxu0
    %3660 = vmatpush.bf16.msra.mxu0 %v2740
    %3661 = vmatpush.bf16.msra.mxu0 %v2738
    %3662 = vmatpush.bf16.msra.mxu0 %v2736
    %3663 = vmatpush.bf16.msra.mxu0 %v2734
    %3664 = vmatpush.bf16.msra.mxu0 %v2732
    %3665 = vmatpush.bf16.msra.mxu0 %v2730
    %3666 = vmatpush.bf16.msra.mxu0 %v2728
    %3667 = vmatpush.bf16.msra.mxu0 %v2726
    %3668 = vmatmul.bf16.gmra.mxu0 %v190
    %v3669 = vpop.f32.mrf.mxu0
    %v3670 = vadd.f32 %v3657, %v3669
    %v3671 = vpop.f32.mrf.mxu0
    %3672 = vdwg.mxu0
    %3673 = vmatpush.bf16.msra.mxu0 %v2756
    %3674 = vmatpush.bf16.msra.mxu0 %v2754
    %3675 = vmatpush.bf16.msra.mxu0 %v2752
    %3676 = vmatpush.bf16.msra.mxu0 %v2750
    %3677 = vmatpush.bf16.msra.mxu0 %v2748
    %3678 = vmatpush.bf16.msra.mxu0 %v2746
    %3679 = vmatpush.bf16.msra.mxu0 %v2744
    %3680 = vmatpush.bf16.msra.mxu0 %v2742
    %3681 = vmatmul.bf16.gmra.mxu0 %v191
    %v3682 = vpop.f32.mrf.mxu0
    %v3683 = vadd.f32 %v3670, %v3682
    %v3684 = vpop.f32.mrf.mxu0
    %3685 = vdwg.mxu0
    %3686 = vmatpush.bf16.msra.mxu0 %v2261
    %3687 = vmatpush.bf16.msra.mxu0 %v2259
    %3688 = vmatpush.bf16.msra.mxu0 %v2257
    %3689 = vmatpush.bf16.msra.mxu0 %v2255
    %3690 = vmatpush.bf16.msra.mxu0 %v2253
    %3691 = vmatpush.bf16.msra.mxu0 %v2251
    %3692 = vmatpush.bf16.msra.mxu0 %v2249
    %3693 = vmatpush.bf16.msra.mxu0 %v2247
    %3694 = vmatmul.bf16.gmra.mxu0 %v160
    %v3695 = vpop.f32.mrf.mxu0
    %v3696 = vadd.f32 %v707, %v3695
    %v3697 = vpop.f32.mrf.mxu0
    %3698 = vdwg.mxu0
    %3699 = vmatpush.bf16.msra.mxu0 %v2277
    %3700 = vmatpush.bf16.msra.mxu0 %v2275
    %3701 = vmatpush.bf16.msra.mxu0 %v2273
    %3702 = vmatpush.bf16.msra.mxu0 %v2271
    %3703 = vmatpush.bf16.msra.mxu0 %v2269
    %3704 = vmatpush.bf16.msra.mxu0 %v2267
    %3705 = vmatpush.bf16.msra.mxu0 %v2265
    %3706 = vmatpush.bf16.msra.mxu0 %v2263
    %3707 = vmatmul.bf16.gmra.mxu0 %v161
    %v3708 = vpop.f32.mrf.mxu0
    %v3709 = vadd.f32 %v3696, %v3708
    %v3710 = vpop.f32.mrf.mxu0
    %3711 = vdwg.mxu0
    %3712 = vmatpush.bf16.msra.mxu0 %v2293
    %3713 = vmatpush.bf16.msra.mxu0 %v2291
    %3714 = vmatpush.bf16.msra.mxu0 %v2289
    %3715 = vmatpush.bf16.msra.mxu0 %v2287
    %3716 = vmatpush.bf16.msra.mxu0 %v2285
    %3717 = vmatpush.bf16.msra.mxu0 %v2283
    %3718 = vmatpush.bf16.msra.mxu0 %v2281
    %3719 = vmatpush.bf16.msra.mxu0 %v2279
    %3720 = vmatmul.bf16.gmra.mxu0 %v162
    %v3721 = vpop.f32.mrf.mxu0
    %v3722 = vadd.f32 %v3709, %v3721
    %v3723 = vpop.f32.mrf.mxu0
    %3724 = vdwg.mxu0
    %3725 = vmatpush.bf16.msra.mxu0 %v2309
    %3726 = vmatpush.bf16.msra.mxu0 %v2307
    %3727 = vmatpush.bf16.msra.mxu0 %v2305
    %3728 = vmatpush.bf16.msra.mxu0 %v2303
    %3729 = vmatpush.bf16.msra.mxu0 %v2301
    %3730 = vmatpush.bf16.msra.mxu0 %v2299
    %3731 = vmatpush.bf16.msra.mxu0 %v2297
    %3732 = vmatpush.bf16.msra.mxu0 %v2295
    %3733 = vmatmul.bf16.gmra.mxu0 %v163
    %v3734 = vpop.f32.mrf.mxu0
    %v3735 = vadd.f32 %v3722, %v3734
    %v3736 = vpop.f32.mrf.mxu0
    %3737 = vdwg.mxu0
    %3738 = vmatpush.bf16.msra.mxu0 %v2325
    %3739 = vmatpush.bf16.msra.mxu0 %v2323
    %3740 = vmatpush.bf16.msra.mxu0 %v2321
    %3741 = vmatpush.bf16.msra.mxu0 %v2319
    %3742 = vmatpush.bf16.msra.mxu0 %v2317
    %3743 = vmatpush.bf16.msra.mxu0 %v2315
    %3744 = vmatpush.bf16.msra.mxu0 %v2313
    %3745 = vmatpush.bf16.msra.mxu0 %v2311
    %3746 = vmatmul.bf16.gmra.mxu0 %v164
    %v3747 = vpop.f32.mrf.mxu0
    %v3748 = vadd.f32 %v3735, %v3747
    %v3749 = vpop.f32.mrf.mxu0
    %3750 = vdwg.mxu0
    %3751 = vmatpush.bf16.msra.mxu0 %v2341
    %3752 = vmatpush.bf16.msra.mxu0 %v2339
    %3753 = vmatpush.bf16.msra.mxu0 %v2337
    %3754 = vmatpush.bf16.msra.mxu0 %v2335
    %3755 = vmatpush.bf16.msra.mxu0 %v2333
    %3756 = vmatpush.bf16.msra.mxu0 %v2331
    %3757 = vmatpush.bf16.msra.mxu0 %v2329
    %3758 = vmatpush.bf16.msra.mxu0 %v2327
    %3759 = vmatmul.bf16.gmra.mxu0 %v165
    %v3760 = vpop.f32.mrf.mxu0
    %v3761 = vadd.f32 %v3748, %v3760
    %v3762 = vpop.f32.mrf.mxu0
    %3763 = vdwg.mxu0
    %3764 = vmatpush.bf16.msra.mxu0 %v2357
    %3765 = vmatpush.bf16.msra.mxu0 %v2355
    %3766 = vmatpush.bf16.msra.mxu0 %v2353
    %3767 = vmatpush.bf16.msra.mxu0 %v2351
    %3768 = vmatpush.bf16.msra.mxu0 %v2349
    %3769 = vmatpush.bf16.msra.mxu0 %v2347
    %3770 = vmatpush.bf16.msra.mxu0 %v2345
    %3771 = vmatpush.bf16.msra.mxu0 %v2343
    %3772 = vmatmul.bf16.gmra.mxu0 %v166
    %v3773 = vpop.f32.mrf.mxu0
    %v3774 = vadd.f32 %v3761, %v3773
    %v3775 = vpop.f32.mrf.mxu0
    %3776 = vdwg.mxu0
    %3777 = vmatpush.bf16.msra.mxu0 %v2373
    %3778 = vmatpush.bf16.msra.mxu0 %v2371
    %3779 = vmatpush.bf16.msra.mxu0 %v2369
    %3780 = vmatpush.bf16.msra.mxu0 %v2367
    %3781 = vmatpush.bf16.msra.mxu0 %v2365
    %3782 = vmatpush.bf16.msra.mxu0 %v2363
    %3783 = vmatpush.bf16.msra.mxu0 %v2361
    %3784 = vmatpush.bf16.msra.mxu0 %v2359
    %3785 = vmatmul.bf16.gmra.mxu0 %v167
    %v3786 = vpop.f32.mrf.mxu0
    %v3787 = vadd.f32 %v3774, %v3786
    %v3788 = vpop.f32.mrf.mxu0
    %3789 = vdwg.mxu0
    %3790 = vmatpush.bf16.msra.mxu0 %v2389
    %3791 = vmatpush.bf16.msra.mxu0 %v2387
    %3792 = vmatpush.bf16.msra.mxu0 %v2385
    %3793 = vmatpush.bf16.msra.mxu0 %v2383
    %3794 = vmatpush.bf16.msra.mxu0 %v2381
    %3795 = vmatpush.bf16.msra.mxu0 %v2379
    %3796 = vmatpush.bf16.msra.mxu0 %v2377
    %3797 = vmatpush.bf16.msra.mxu0 %v2375
    %3798 = vmatmul.bf16.gmra.mxu0 %v168
    %v3799 = vpop.f32.mrf.mxu0
    %v3800 = vadd.f32 %v3787, %v3799
    %v3801 = vpop.f32.mrf.mxu0
    %3802 = vdwg.mxu0
    %3803 = vmatpush.bf16.msra.mxu0 %v2405
    %3804 = vmatpush.bf16.msra.mxu0 %v2403
    %3805 = vmatpush.bf16.msra.mxu0 %v2401
    %3806 = vmatpush.bf16.msra.mxu0 %v2399
    %3807 = vmatpush.bf16.msra.mxu0 %v2397
    %3808 = vmatpush.bf16.msra.mxu0 %v2395
    %3809 = vmatpush.bf16.msra.mxu0 %v2393
    %3810 = vmatpush.bf16.msra.mxu0 %v2391
    %3811 = vmatmul.bf16.gmra.mxu0 %v169
    %v3812 = vpop.f32.mrf.mxu0
    %v3813 = vadd.f32 %v3800, %v3812
    %v3814 = vpop.f32.mrf.mxu0
    %3815 = vdwg.mxu0
    %3816 = vmatpush.bf16.msra.mxu0 %v2421
    %3817 = vmatpush.bf16.msra.mxu0 %v2419
    %3818 = vmatpush.bf16.msra.mxu0 %v2417
    %3819 = vmatpush.bf16.msra.mxu0 %v2415
    %3820 = vmatpush.bf16.msra.mxu0 %v2413
    %3821 = vmatpush.bf16.msra.mxu0 %v2411
    %3822 = vmatpush.bf16.msra.mxu0 %v2409
    %3823 = vmatpush.bf16.msra.mxu0 %v2407
    %3824 = vmatmul.bf16.gmra.mxu0 %v170
    %v3825 = vpop.f32.mrf.mxu0
    %v3826 = vadd.f32 %v3813, %v3825
    %v3827 = vpop.f32.mrf.mxu0
    %3828 = vdwg.mxu0
    %3829 = vmatpush.bf16.msra.mxu0 %v2437
    %3830 = vmatpush.bf16.msra.mxu0 %v2435
    %3831 = vmatpush.bf16.msra.mxu0 %v2433
    %3832 = vmatpush.bf16.msra.mxu0 %v2431
    %3833 = vmatpush.bf16.msra.mxu0 %v2429
    %3834 = vmatpush.bf16.msra.mxu0 %v2427
    %3835 = vmatpush.bf16.msra.mxu0 %v2425
    %3836 = vmatpush.bf16.msra.mxu0 %v2423
    %3837 = vmatmul.bf16.gmra.mxu0 %v171
    %v3838 = vpop.f32.mrf.mxu0
    %v3839 = vadd.f32 %v3826, %v3838
    %v3840 = vpop.f32.mrf.mxu0
    %3841 = vdwg.mxu0
    %3842 = vmatpush.bf16.msra.mxu0 %v2453
    %3843 = vmatpush.bf16.msra.mxu0 %v2451
    %3844 = vmatpush.bf16.msra.mxu0 %v2449
    %3845 = vmatpush.bf16.msra.mxu0 %v2447
    %3846 = vmatpush.bf16.msra.mxu0 %v2445
    %3847 = vmatpush.bf16.msra.mxu0 %v2443
    %3848 = vmatpush.bf16.msra.mxu0 %v2441
    %3849 = vmatpush.bf16.msra.mxu0 %v2439
    %3850 = vmatmul.bf16.gmra.mxu0 %v172
    %v3851 = vpop.f32.mrf.mxu0
    %v3852 = vadd.f32 %v3839, %v3851
    %v3853 = vpop.f32.mrf.mxu0
    %3854 = vdwg.mxu0
    %3855 = vmatpush.bf16.msra.mxu0 %v2469
    %3856 = vmatpush.bf16.msra.mxu0 %v2467
    %3857 = vmatpush.bf16.msra.mxu0 %v2465
    %3858 = vmatpush.bf16.msra.mxu0 %v2463
    %3859 = vmatpush.bf16.msra.mxu0 %v2461
    %3860 = vmatpush.bf16.msra.mxu0 %v2459
    %3861 = vmatpush.bf16.msra.mxu0 %v2457
    %3862 = vmatpush.bf16.msra.mxu0 %v2455
    %3863 = vmatmul.bf16.gmra.mxu0 %v173
    %v3864 = vpop.f32.mrf.mxu0
    %v3865 = vadd.f32 %v3852, %v3864
    %v3866 = vpop.f32.mrf.mxu0
    %3867 = vdwg.mxu0
    %3868 = vmatpush.bf16.msra.mxu0 %v2485
    %3869 = vmatpush.bf16.msra.mxu0 %v2483
    %3870 = vmatpush.bf16.msra.mxu0 %v2481
    %3871 = vmatpush.bf16.msra.mxu0 %v2479
    %3872 = vmatpush.bf16.msra.mxu0 %v2477
    %3873 = vmatpush.bf16.msra.mxu0 %v2475
    %3874 = vmatpush.bf16.msra.mxu0 %v2473
    %3875 = vmatpush.bf16.msra.mxu0 %v2471
    %3876 = vmatmul.bf16.gmra.mxu0 %v174
    %v3877 = vpop.f32.mrf.mxu0
    %v3878 = vadd.f32 %v3865, %v3877
    %v3879 = vpop.f32.mrf.mxu0
    %3880 = vdwg.mxu0
    %3881 = vmatpush.bf16.msra.mxu0 %v2501
    %3882 = vmatpush.bf16.msra.mxu0 %v2499
    %3883 = vmatpush.bf16.msra.mxu0 %v2497
    %3884 = vmatpush.bf16.msra.mxu0 %v2495
    %3885 = vmatpush.bf16.msra.mxu0 %v2493
    %3886 = vmatpush.bf16.msra.mxu0 %v2491
    %3887 = vmatpush.bf16.msra.mxu0 %v2489
    %3888 = vmatpush.bf16.msra.mxu0 %v2487
    %3889 = vmatmul.bf16.gmra.mxu0 %v175
    %v3890 = vpop.f32.mrf.mxu0
    %v3891 = vadd.f32 %v3878, %v3890
    %v3892 = vpop.f32.mrf.mxu0
    %3893 = vdwg.mxu0
    %3894 = vmatpush.bf16.msra.mxu0 %v2517
    %3895 = vmatpush.bf16.msra.mxu0 %v2515
    %3896 = vmatpush.bf16.msra.mxu0 %v2513
    %3897 = vmatpush.bf16.msra.mxu0 %v2511
    %3898 = vmatpush.bf16.msra.mxu0 %v2509
    %3899 = vmatpush.bf16.msra.mxu0 %v2507
    %3900 = vmatpush.bf16.msra.mxu0 %v2505
    %3901 = vmatpush.bf16.msra.mxu0 %v2503
    %3902 = vmatmul.bf16.gmra.mxu0 %v176
    %v3903 = vpop.f32.mrf.mxu0
    %v3904 = vadd.f32 %v3891, %v3903
    %v3905 = vpop.f32.mrf.mxu0
    %3906 = vdwg.mxu0
    %3907 = vmatpush.bf16.msra.mxu0 %v2533
    %3908 = vmatpush.bf16.msra.mxu0 %v2531
    %3909 = vmatpush.bf16.msra.mxu0 %v2529
    %3910 = vmatpush.bf16.msra.mxu0 %v2527
    %3911 = vmatpush.bf16.msra.mxu0 %v2525
    %3912 = vmatpush.bf16.msra.mxu0 %v2523
    %3913 = vmatpush.bf16.msra.mxu0 %v2521
    %3914 = vmatpush.bf16.msra.mxu0 %v2519
    %3915 = vmatmul.bf16.gmra.mxu0 %v177
    %v3916 = vpop.f32.mrf.mxu0
    %v3917 = vadd.f32 %v3904, %v3916
    %v3918 = vpop.f32.mrf.mxu0
    %3919 = vdwg.mxu0
    %3920 = vmatpush.bf16.msra.mxu0 %v2549
    %3921 = vmatpush.bf16.msra.mxu0 %v2547
    %3922 = vmatpush.bf16.msra.mxu0 %v2545
    %3923 = vmatpush.bf16.msra.mxu0 %v2543
    %3924 = vmatpush.bf16.msra.mxu0 %v2541
    %3925 = vmatpush.bf16.msra.mxu0 %v2539
    %3926 = vmatpush.bf16.msra.mxu0 %v2537
    %3927 = vmatpush.bf16.msra.mxu0 %v2535
    %3928 = vmatmul.bf16.gmra.mxu0 %v178
    %v3929 = vpop.f32.mrf.mxu0
    %v3930 = vadd.f32 %v3917, %v3929
    %v3931 = vpop.f32.mrf.mxu0
    %3932 = vdwg.mxu0
    %3933 = vmatpush.bf16.msra.mxu0 %v2565
    %3934 = vmatpush.bf16.msra.mxu0 %v2563
    %3935 = vmatpush.bf16.msra.mxu0 %v2561
    %3936 = vmatpush.bf16.msra.mxu0 %v2559
    %3937 = vmatpush.bf16.msra.mxu0 %v2557
    %3938 = vmatpush.bf16.msra.mxu0 %v2555
    %3939 = vmatpush.bf16.msra.mxu0 %v2553
    %3940 = vmatpush.bf16.msra.mxu0 %v2551
    %3941 = vmatmul.bf16.gmra.mxu0 %v179
    %v3942 = vpop.f32.mrf.mxu0
    %v3943 = vadd.f32 %v3930, %v3942
    %v3944 = vpop.f32.mrf.mxu0
    %3945 = vdwg.mxu0
    %3946 = vmatpush.bf16.msra.mxu0 %v2581
    %3947 = vmatpush.bf16.msra.mxu0 %v2579
    %3948 = vmatpush.bf16.msra.mxu0 %v2577
    %3949 = vmatpush.bf16.msra.mxu0 %v2575
    %3950 = vmatpush.bf16.msra.mxu0 %v2573
    %3951 = vmatpush.bf16.msra.mxu0 %v2571
    %3952 = vmatpush.bf16.msra.mxu0 %v2569
    %3953 = vmatpush.bf16.msra.mxu0 %v2567
    %3954 = vmatmul.bf16.gmra.mxu0 %v180
    %v3955 = vpop.f32.mrf.mxu0
    %v3956 = vadd.f32 %v3943, %v3955
    %v3957 = vpop.f32.mrf.mxu0
    %3958 = vdwg.mxu0
    %3959 = vmatpush.bf16.msra.mxu0 %v2597
    %3960 = vmatpush.bf16.msra.mxu0 %v2595
    %3961 = vmatpush.bf16.msra.mxu0 %v2593
    %3962 = vmatpush.bf16.msra.mxu0 %v2591
    %3963 = vmatpush.bf16.msra.mxu0 %v2589
    %3964 = vmatpush.bf16.msra.mxu0 %v2587
    %3965 = vmatpush.bf16.msra.mxu0 %v2585
    %3966 = vmatpush.bf16.msra.mxu0 %v2583
    %3967 = vmatmul.bf16.gmra.mxu0 %v181
    %v3968 = vpop.f32.mrf.mxu0
    %v3969 = vadd.f32 %v3956, %v3968
    %v3970 = vpop.f32.mrf.mxu0
    %3971 = vdwg.mxu0
    %3972 = vmatpush.bf16.msra.mxu0 %v2613
    %3973 = vmatpush.bf16.msra.mxu0 %v2611
    %3974 = vmatpush.bf16.msra.mxu0 %v2609
    %3975 = vmatpush.bf16.msra.mxu0 %v2607
    %3976 = vmatpush.bf16.msra.mxu0 %v2605
    %3977 = vmatpush.bf16.msra.mxu0 %v2603
    %3978 = vmatpush.bf16.msra.mxu0 %v2601
    %3979 = vmatpush.bf16.msra.mxu0 %v2599
    %3980 = vmatmul.bf16.gmra.mxu0 %v182
    %v3981 = vpop.f32.mrf.mxu0
    %v3982 = vadd.f32 %v3969, %v3981
    %v3983 = vpop.f32.mrf.mxu0
    %3984 = vdwg.mxu0
    %3985 = vmatpush.bf16.msra.mxu0 %v2629
    %3986 = vmatpush.bf16.msra.mxu0 %v2627
    %3987 = vmatpush.bf16.msra.mxu0 %v2625
    %3988 = vmatpush.bf16.msra.mxu0 %v2623
    %3989 = vmatpush.bf16.msra.mxu0 %v2621
    %3990 = vmatpush.bf16.msra.mxu0 %v2619
    %3991 = vmatpush.bf16.msra.mxu0 %v2617
    %3992 = vmatpush.bf16.msra.mxu0 %v2615
    %3993 = vmatmul.bf16.gmra.mxu0 %v183
    %v3994 = vpop.f32.mrf.mxu0
    %v3995 = vadd.f32 %v3982, %v3994
    %v3996 = vpop.f32.mrf.mxu0
    %3997 = vdwg.mxu0
    %3998 = vmatpush.bf16.msra.mxu0 %v2645
    %3999 = vmatpush.bf16.msra.mxu0 %v2643
    %4000 = vmatpush.bf16.msra.mxu0 %v2641
    %4001 = vmatpush.bf16.msra.mxu0 %v2639
    %4002 = vmatpush.bf16.msra.mxu0 %v2637
    %4003 = vmatpush.bf16.msra.mxu0 %v2635
    %4004 = vmatpush.bf16.msra.mxu0 %v2633
    %4005 = vmatpush.bf16.msra.mxu0 %v2631
    %4006 = vmatmul.bf16.gmra.mxu0 %v184
    %v4007 = vpop.f32.mrf.mxu0
    %v4008 = vadd.f32 %v3995, %v4007
    %v4009 = vpop.f32.mrf.mxu0
    %4010 = vdwg.mxu0
    %4011 = vmatpush.bf16.msra.mxu0 %v2661
    %4012 = vmatpush.bf16.msra.mxu0 %v2659
    %4013 = vmatpush.bf16.msra.mxu0 %v2657
    %4014 = vmatpush.bf16.msra.mxu0 %v2655
    %4015 = vmatpush.bf16.msra.mxu0 %v2653
    %4016 = vmatpush.bf16.msra.mxu0 %v2651
    %4017 = vmatpush.bf16.msra.mxu0 %v2649
    %4018 = vmatpush.bf16.msra.mxu0 %v2647
    %4019 = vmatmul.bf16.gmra.mxu0 %v185
    %v4020 = vpop.f32.mrf.mxu0
    %v4021 = vadd.f32 %v4008, %v4020
    %v4022 = vpop.f32.mrf.mxu0
    %4023 = vdwg.mxu0
    %4024 = vmatpush.bf16.msra.mxu0 %v2677
    %4025 = vmatpush.bf16.msra.mxu0 %v2675
    %4026 = vmatpush.bf16.msra.mxu0 %v2673
    %4027 = vmatpush.bf16.msra.mxu0 %v2671
    %4028 = vmatpush.bf16.msra.mxu0 %v2669
    %4029 = vmatpush.bf16.msra.mxu0 %v2667
    %4030 = vmatpush.bf16.msra.mxu0 %v2665
    %4031 = vmatpush.bf16.msra.mxu0 %v2663
    %4032 = vmatmul.bf16.gmra.mxu0 %v186
    %v4033 = vpop.f32.mrf.mxu0
    %v4034 = vadd.f32 %v4021, %v4033
    %v4035 = vpop.f32.mrf.mxu0
    %4036 = vdwg.mxu0
    %4037 = vmatpush.bf16.msra.mxu0 %v2693
    %4038 = vmatpush.bf16.msra.mxu0 %v2691
    %4039 = vmatpush.bf16.msra.mxu0 %v2689
    %4040 = vmatpush.bf16.msra.mxu0 %v2687
    %4041 = vmatpush.bf16.msra.mxu0 %v2685
    %4042 = vmatpush.bf16.msra.mxu0 %v2683
    %4043 = vmatpush.bf16.msra.mxu0 %v2681
    %4044 = vmatpush.bf16.msra.mxu0 %v2679
    %4045 = vmatmul.bf16.gmra.mxu0 %v187
    %v4046 = vpop.f32.mrf.mxu0
    %v4047 = vadd.f32 %v4034, %v4046
    %v4048 = vpop.f32.mrf.mxu0
    %4049 = vdwg.mxu0
    %4050 = vmatpush.bf16.msra.mxu0 %v2709
    %4051 = vmatpush.bf16.msra.mxu0 %v2707
    %4052 = vmatpush.bf16.msra.mxu0 %v2705
    %4053 = vmatpush.bf16.msra.mxu0 %v2703
    %4054 = vmatpush.bf16.msra.mxu0 %v2701
    %4055 = vmatpush.bf16.msra.mxu0 %v2699
    %4056 = vmatpush.bf16.msra.mxu0 %v2697
    %4057 = vmatpush.bf16.msra.mxu0 %v2695
    %4058 = vmatmul.bf16.gmra.mxu0 %v188
    %v4059 = vpop.f32.mrf.mxu0
    %v4060 = vadd.f32 %v4047, %v4059
    %v4061 = vpop.f32.mrf.mxu0
    %4062 = vdwg.mxu0
    %4063 = vmatpush.bf16.msra.mxu0 %v2725
    %4064 = vmatpush.bf16.msra.mxu0 %v2723
    %4065 = vmatpush.bf16.msra.mxu0 %v2721
    %4066 = vmatpush.bf16.msra.mxu0 %v2719
    %4067 = vmatpush.bf16.msra.mxu0 %v2717
    %4068 = vmatpush.bf16.msra.mxu0 %v2715
    %4069 = vmatpush.bf16.msra.mxu0 %v2713
    %4070 = vmatpush.bf16.msra.mxu0 %v2711
    %4071 = vmatmul.bf16.gmra.mxu0 %v189
    %v4072 = vpop.f32.mrf.mxu0
    %v4073 = vadd.f32 %v4060, %v4072
    %v4074 = vpop.f32.mrf.mxu0
    %4075 = vdwg.mxu0
    %4076 = vmatpush.bf16.msra.mxu0 %v2741
    %4077 = vmatpush.bf16.msra.mxu0 %v2739
    %4078 = vmatpush.bf16.msra.mxu0 %v2737
    %4079 = vmatpush.bf16.msra.mxu0 %v2735
    %4080 = vmatpush.bf16.msra.mxu0 %v2733
    %4081 = vmatpush.bf16.msra.mxu0 %v2731
    %4082 = vmatpush.bf16.msra.mxu0 %v2729
    %4083 = vmatpush.bf16.msra.mxu0 %v2727
    %4084 = vmatmul.bf16.gmra.mxu0 %v190
    %v4085 = vpop.f32.mrf.mxu0
    %v4086 = vadd.f32 %v4073, %v4085
    %v4087 = vpop.f32.mrf.mxu0
    %4088 = vdwg.mxu0
    %4089 = vmatpush.bf16.msra.mxu0 %v2757
    %4090 = vmatpush.bf16.msra.mxu0 %v2755
    %4091 = vmatpush.bf16.msra.mxu0 %v2753
    %4092 = vmatpush.bf16.msra.mxu0 %v2751
    %4093 = vmatpush.bf16.msra.mxu0 %v2749
    %4094 = vmatpush.bf16.msra.mxu0 %v2747
    %4095 = vmatpush.bf16.msra.mxu0 %v2745
    %4096 = vmatpush.bf16.msra.mxu0 %v2743
    %4097 = vmatmul.bf16.gmra.mxu0 %v191
    %v4098 = vpop.f32.mrf.mxu0
    %v4099 = vadd.f32 %v4086, %v4098
    %v4100 = vpop.f32.mrf.mxu0
    %4101 = vdwg.mxu0
    %v4102 = vmax.f32 %v3683, 0.0
    %v4103 = vmax.f32 %v4099, 0.0
    %v4104 = vpack.c.bf16 %v4102, %v4102
    %v4105 = vpack.c.bf16 %v4103, %v4103
    %v4106 = vld [vmem:[#allocation8] sm:$0xf]
    %v4107 = vld [vmem:[#allocation8 + $0x4] sm:$0xf]
    %v4108 = vld [vmem:[#allocation8 + $0x8] sm:$0xf]
    %v4109 = vld [vmem:[#allocation8 + $0xc] sm:$0xf]
    %v4110 = vld [vmem:[#allocation8 + $0x10] sm:$0xf]
    %v4111 = vld [vmem:[#allocation8 + $0x14] sm:$0xf]
    %v4112 = vld [vmem:[#allocation8 + $0x18] sm:$0xf]
    %v4113 = vld [vmem:[#allocation8 + $0x1c] sm:$0xf]
    %v4114 = vld [vmem:[#allocation8 + $0x20] sm:$0xf]
    %v4115 = vld [vmem:[#allocation8 + $0x24] sm:$0xf]
    %v4116 = vld [vmem:[#allocation8 + $0x28] sm:$0xf]
    %v4117 = vld [vmem:[#allocation8 + $0x2c] sm:$0xf]
    %v4118 = vld [vmem:[#allocation8 + $0x30] sm:$0xf]
    %v4119 = vld [vmem:[#allocation8 + $0x34] sm:$0xf]
    %v4120 = vld [vmem:[#allocation8 + $0x38] sm:$0xf]
    %v4121 = vld [vmem:[#allocation8 + $0x3c] sm:$0xf]
    %v4122 = vld [vmem:[#allocation8 + $0x40] sm:$0xf]
    %v4123 = vld [vmem:[#allocation8 + $0x44] sm:$0xf]
    %v4124 = vld [vmem:[#allocation8 + $0x48] sm:$0xf]
    %v4125 = vld [vmem:[#allocation8 + $0x4c] sm:$0xf]
    %v4126 = vld [vmem:[#allocation8 + $0x50] sm:$0xf]
    %v4127 = vld [vmem:[#allocation8 + $0x54] sm:$0xf]
    %v4128 = vld [vmem:[#allocation8 + $0x58] sm:$0xf]
    %v4129 = vld [vmem:[#allocation8 + $0x5c] sm:$0xf]
    %v4130 = vld [vmem:[#allocation8 + $0x60] sm:$0xf]
    %v4131 = vld [vmem:[#allocation8 + $0x64] sm:$0xf]
    %v4132 = vld [vmem:[#allocation8 + $0x68] sm:$0xf]
    %v4133 = vld [vmem:[#allocation8 + $0x6c] sm:$0xf]
    %v4134 = vld [vmem:[#allocation8 + $0x70] sm:$0xf]
    %v4135 = vld [vmem:[#allocation8 + $0x74] sm:$0xf]
    %v4136 = vld [vmem:[#allocation8 + $0x78] sm:$0xf]
    %v4137 = vld [vmem:[#allocation8 + $0x7c] sm:$0xf]
    %v4138 = vld [vmem:[#allocation10] sm:$0x1]
    %v4140 = vperm.slane %v4138, 0
    %v4174 = vunpack.c.l.b16 %v4106
    %v4175 = vunpack.c.l.b16 %v4107
    %v4176 = vunpack.c.l.b16 %v4108
    %v4177 = vunpack.c.l.b16 %v4109
    %v4178 = vunpack.c.l.b16 %v4110
    %v4179 = vunpack.c.l.b16 %v4111
    %v4180 = vunpack.c.l.b16 %v4112
    %v4181 = vunpack.c.l.b16 %v4113
    %v4182 = vunpack.c.l.b16 %v4114
    %v4183 = vunpack.c.l.b16 %v4115
    %v4184 = vunpack.c.l.b16 %v4116
    %v4185 = vunpack.c.l.b16 %v4117
    %v4186 = vunpack.c.l.b16 %v4118
    %v4187 = vunpack.c.l.b16 %v4119
    %v4188 = vunpack.c.l.b16 %v4120
    %v4189 = vunpack.c.l.b16 %v4121
    %v4190 = vunpack.c.l.b16 %v4122
    %v4191 = vunpack.c.l.b16 %v4123
    %v4192 = vunpack.c.l.b16 %v4124
    %v4193 = vunpack.c.l.b16 %v4125
    %v4194 = vunpack.c.l.b16 %v4126
    %v4195 = vunpack.c.l.b16 %v4127
    %v4196 = vunpack.c.l.b16 %v4128
    %v4197 = vunpack.c.l.b16 %v4129
    %v4198 = vunpack.c.l.b16 %v4130
    %v4199 = vunpack.c.l.b16 %v4131
    %v4200 = vunpack.c.l.b16 %v4132
    %v4201 = vunpack.c.l.b16 %v4133
    %v4202 = vunpack.c.l.b16 %v4134
    %v4203 = vunpack.c.l.b16 %v4135
    %v4204 = vunpack.c.l.b16 %v4136
    %v4205 = vunpack.c.l.b16 %v4137
    %v4206 = vpack.c.b16 %v4175, %v4174
    %v4207 = vpack.c.b16 %v4177, %v4176
    %v4208 = vpack.c.b16 %v4179, %v4178
    %v4209 = vpack.c.b16 %v4181, %v4180
    %v4210 = vpack.c.b16 %v4183, %v4182
    %v4211 = vpack.c.b16 %v4185, %v4184
    %v4212 = vpack.c.b16 %v4187, %v4186
    %v4213 = vpack.c.b16 %v4189, %v4188
    %v4214 = vpack.c.b16 %v4191, %v4190
    %v4215 = vpack.c.b16 %v4193, %v4192
    %v4216 = vpack.c.b16 %v4195, %v4194
    %v4217 = vpack.c.b16 %v4197, %v4196
    %v4218 = vpack.c.b16 %v4199, %v4198
    %v4219 = vpack.c.b16 %v4201, %v4200
    %v4220 = vpack.c.b16 %v4203, %v4202
    %v4221 = vpack.c.b16 %v4205, %v4204
    %4238 = vmatpush.bf16.msra.mxu0 %v4213
    %4239 = vmatpush.bf16.msra.mxu0 %v4212
    %4240 = vmatpush.bf16.msra.mxu0 %v4211
    %4241 = vmatpush.bf16.msra.mxu0 %v4210
    %4242 = vmatpush.bf16.msra.mxu0 %v4209
    %4243 = vmatpush.bf16.msra.mxu0 %v4208
    %4244 = vmatpush.bf16.msra.mxu0 %v4207
    %4245 = vmatpush.bf16.msra.mxu0 %v4206
    %4246 = vmatmul.bf16.gmra.mxu0 %v4104
    %v4247 = vpop.f32.mrf.mxu0
    %v4248 = vadd.f32 %v4140, %v4247
    %v4249 = vpop.f32.mrf.mxu0
    %4250 = vdwg.mxu0
    %4251 = vmatpush.bf16.msra.mxu0 %v4221
    %4252 = vmatpush.bf16.msra.mxu0 %v4220
    %4253 = vmatpush.bf16.msra.mxu0 %v4219
    %4254 = vmatpush.bf16.msra.mxu0 %v4218
    %4255 = vmatpush.bf16.msra.mxu0 %v4217
    %4256 = vmatpush.bf16.msra.mxu0 %v4216
    %4257 = vmatpush.bf16.msra.mxu0 %v4215
    %4258 = vmatpush.bf16.msra.mxu0 %v4214
    %4259 = vmatmul.bf16.gmra.mxu0 %v4105
    %v4260 = vpop.f32.mrf.mxu0
    %v4261 = vadd.f32 %v4248, %v4260
    %v4262 = vpop.f32.mrf.mxu0
    %4263 = vdwg.mxu0
    %v4264 = vmax.f32 %v4261, 0.0
    %v4265 = vpack.c.bf16 %v4264, %v4264
    %v4266 = vld [vmem:[#allocation11] sm:$0xf]
    %v4267 = vld [vmem:[#allocation11 + $0x4] sm:$0xf]
    %v4268 = vld [vmem:[#allocation11 + $0x8] sm:$0xf]
    %v4269 = vld [vmem:[#allocation11 + $0xc] sm:$0xf]
    %v4270 = vld [vmem:[#allocation11 + $0x10] sm:$0xf]
    %v4271 = vld [vmem:[#allocation11 + $0x14] sm:$0xf]
    %v4272 = vld [vmem:[#allocation11 + $0x18] sm:$0xf]
    %v4273 = vld [vmem:[#allocation11 + $0x1c] sm:$0xf]
    %v4274 = vld [vmem:[#allocation11 + $0x20] sm:$0xf]
    %v4275 = vld [vmem:[#allocation11 + $0x24] sm:$0xf]
    %v4276 = vld [vmem:[#allocation11 + $0x28] sm:$0xf]
    %v4277 = vld [vmem:[#allocation11 + $0x2c] sm:$0xf]
    %v4278 = vld [vmem:[#allocation11 + $0x30] sm:$0xf]
    %v4279 = vld [vmem:[#allocation11 + $0x34] sm:$0xf]
    %v4280 = vld [vmem:[#allocation11 + $0x38] sm:$0xf]
    %v4281 = vld [vmem:[#allocation11 + $0x3c] sm:$0xf]
    %v4282 = vld [vmem:[#allocation13] sm:$0x1]
    %v4284 = vperm.slane %v4282, 0
    %v4302 = vunpack.c.l.b16 %v4266
    %v4303 = vunpack.c.l.b16 %v4267
    %v4304 = vunpack.c.l.b16 %v4268
    %v4305 = vunpack.c.l.b16 %v4269
    %v4306 = vunpack.c.l.b16 %v4270
    %v4307 = vunpack.c.l.b16 %v4271
    %v4308 = vunpack.c.l.b16 %v4272
    %v4309 = vunpack.c.l.b16 %v4273
    %v4310 = vunpack.c.l.b16 %v4274
    %v4311 = vunpack.c.l.b16 %v4275
    %v4312 = vunpack.c.l.b16 %v4276
    %v4313 = vunpack.c.l.b16 %v4277
    %v4314 = vunpack.c.l.b16 %v4278
    %v4315 = vunpack.c.l.b16 %v4279
    %v4316 = vunpack.c.l.b16 %v4280
    %v4317 = vunpack.c.l.b16 %v4281
    %v4318 = vpack.c.b16 %v4303, %v4302
    %v4319 = vpack.c.b16 %v4305, %v4304
    %v4320 = vpack.c.b16 %v4307, %v4306
    %v4321 = vpack.c.b16 %v4309, %v4308
    %v4322 = vpack.c.b16 %v4311, %v4310
    %v4323 = vpack.c.b16 %v4313, %v4312
    %v4324 = vpack.c.b16 %v4315, %v4314
    %v4325 = vpack.c.b16 %v4317, %v4316
    %4334 = vmatpush.bf16.msra.mxu0 %v4325
    %4335 = vmatpush.bf16.msra.mxu0 %v4324
    %4336 = vmatpush.bf16.msra.mxu0 %v4323
    %4337 = vmatpush.bf16.msra.mxu0 %v4322
    %4338 = vmatpush.bf16.msra.mxu0 %v4321
    %4339 = vmatpush.bf16.msra.mxu0 %v4320
    %4340 = vmatpush.bf16.msra.mxu0 %v4319
    %4341 = vmatpush.bf16.msra.mxu0 %v4318
    %4342 = vmatmul.bf16.gmra.mxu0 %v4265
    %v4343 = vpop.f32.mrf.mxu0
    %v4344 = vadd.f32 %v4284, %v4343
    %v4345 = vpop.f32.mrf.mxu0
    %4346 = vdwg.mxu0
    %4347 = vst [vmem:[#allocation14] sm:$0xff] %v4344
    // Predicated region
    $region58: #{tpu_custom_call.1} parent=1 // pred_check
      _
    $region59: #{tpu_custom_call.1} parent=1 // pred_check_branch
      %4349 = sbr.rel (0) target = $region61
    $region60: #{tpu_custom_call.1} parent=1 // pred_region
      %4351 = vsyncadd [#allocation4], 0
      %s4353 = sshll.u32 [#allocation14], 4
      %s4354 = int_to_ptr.vmem [resolvable:$true] %s4353
      %s4355 = sshll.u32 %s7, 4
      %s4356 = int_to_ptr.hbm [resolvable:$true] %s4355
      %4358 = dma.vmem_to_hbm [thread:$0]  %s4354, 128, %s4356, [#allocation4]
    $region61: #{tpu_custom_call.1} parent=1 // pred_fallthru
      _
    // Predicated region
    $region62: #{tpu_custom_call.1} parent=1 // pred_check
      _
    $region63: #{tpu_custom_call.1} parent=1 // pred_check_branch
      %4360 = sbr.rel (0) target = $region65
    $region64: #{tpu_custom_call.1} parent=1 // pred_region
      %4362 = dma.done [#allocation4], 128
    $region65: #{tpu_custom_call.1} parent=1 // pred_fallthru
      _
    %4363 = vsyncpa [#allocation3], 1
    %4364 = vsyncpa [#allocation6], 1
    %4365 = vsyncpa [#allocation9], 1
    %4366 = vsyncpa [#allocation12], 1
    %4367 = vsyncpa [#allocation4], 1

</llo_original>
